<compile_context>
chip_gen: v7x
topology: tpu7x:2x2x1
jax: 0.10.0
libtpu: 0.0.40
codegen_flags: <defaults>
</compile_context>

<pallas_src>
import numpy as np
import jax
import jax.numpy as jnp
from jax import lax
from jax.experimental import pallas as pl
from jax.experimental.pallas import tpu as pltpu


# ------------------------------------------------------------------
# haar filter bank (mirrors create_wavelet_filter for wt_type='haar')
# ------------------------------------------------------------------
def _haar_banks():
    s = float(1.0 / np.sqrt(2.0))
    # pywt 'haar': dec_lo=[s,s], dec_hi=[-s,s], rec_lo=[s,s], rec_hi=[s,-s]
    dec_lo = np.array([s, s], np.float32)[::-1]            # [ s,  s]
    dec_hi = np.array([-s, s], np.float32)[::-1]           # [ s, -s]
    rec_lo = np.array([s, s], np.float32)[::-1][::-1]      # [ s,  s]
    rec_hi = np.array([s, -s], np.float32)[::-1][::-1]     # [ s, -s]
    return dec_lo, dec_hi, rec_lo, rec_hi


def _analysis_pair(n, lo, hi):
    """Stride-2 2-tap analysis matrices A (2, n//2, n): A[f, p, 2p+i] = filt_f[i]."""
    nh = n // 2
    A = np.zeros((2, nh, n), np.float32)
    for p in range(nh):
        A[0, p, 2 * p] = lo[0]
        A[0, p, 2 * p + 1] = lo[1]
        A[1, p, 2 * p] = hi[0]
        A[1, p, 2 * p + 1] = hi[1]
    return A


# ------------------------------------------------------------------
# in-kernel helpers
# ------------------------------------------------------------------
def _taps_from_smem(ref, c, base):
    """Read 25 scalar taps for channel c from an SMEM table (row c, cols base..base+24)."""
    return [[ref[c, base + 5 * i + j] for j in range(5)] for i in range(5)]


def _dw5x5_same(v, taps):
    """Depthwise 5x5 cross-correlation with 'same' zero padding on a (M, N) plane.

    Shifts are done with pltpu.roll (XLU) + boundary masks, in a separable
    accumulation: 4 lane rolls + 4 sublane rolls total (offset 0 skipped),
    instead of 25 shifted-slice relayout copies.
    """
    M, N = v.shape
    col = lax.broadcasted_iota(jnp.int32, (M, N), 1)
    row = lax.broadcasted_iota(jnp.int32, (M, N), 0)

    cols = []
    for j in range(5):
        d = j - 2
        if d == 0:
            cols.append(v)
        else:
            r = pltpu.roll(v, (-d) % N, axis=1)                    # r[m,n] = v[m, n+d]
            cols.append(jnp.where((col + d >= 0) & (col + d < N), r, 0.0))

    acc = None
    for i in range(5):
        di = i - 2
        t = cols[0] * taps[i][0]
        for j in range(1, 5):
            t = t + cols[j] * taps[i][j]
        if di != 0:
            t = pltpu.roll(t, (-di) % M, axis=0)                   # t[m,n] <- t[m+di, n]
            t = jnp.where((row + di >= 0) & (row + di < M), t, 0.0)
        acc = t if acc is None else acc + t
    return acc


# ------------------------------------------------------------------
# fused WTConv2d kernel (one (H, W) plane per grid step)
# ------------------------------------------------------------------
def _wtconv_fused_kernel(x_ref, wtr_ref, wtc_ref, iwtr_ref, iwtc_ref,
                         bw_ref, bb_ref, ww_ref, o_ref):
    # x_ref/o_ref : (1, 1, He, We) VMEM
    # wtr_ref     : (2, Hh, He)    haar analysis along H (lo, hi)
    # wtc_ref     : (2, We, Wh)    haar analysis along W, transposed
    # iwtr_ref    : (2, He, Hh)    haar synthesis along H
    # iwtc_ref    : (2, Wh, We)    haar synthesis along W, transposed
    # bw_ref      : (C, 25)  SMEM  base taps  (base_scale folded in)
    # bb_ref      : (C,)     SMEM  base bias  (base_scale folded in)
    # ww_ref      : (C, 100) SMEM  wavelet taps per band (wavelet_scale folded in)
    c = pl.program_id(1)
    x = x_ref[0, 0].astype(jnp.float32)                            # (He, We)

    # ---- base path: depthwise 5x5 'same' + bias (scale pre-folded) ----
    out = _dw5x5_same(x, _taps_from_smem(bw_ref, c, 0)) + bb_ref[c]

    # ---- wavelet path (single level): WT -> dw5x5 conv -> inverse WT ----
    for k in range(4):                       # bands (LL, LH, HL, HH) in torch order
        ri = k % 2                           # height filter: 0=lo, 1=hi
        ci = k // 2                          # width  filter: 0=lo, 1=hi
        band = jnp.dot(wtr_ref[ri],
                       jnp.dot(x, wtc_ref[ci], preferred_element_type=jnp.float32),
                       preferred_element_type=jnp.float32)          # (Hh, Wh)
        band = _dw5x5_same(band, _taps_from_smem(ww_ref, c, 25 * k))
        out = out + jnp.dot(iwtr_ref[ri],
                            jnp.dot(band, iwtc_ref[ci],
                                    preferred_element_type=jnp.float32),
                            preferred_element_type=jnp.float32)     # (He, We)

    o_ref[0, 0] = out.astype(o_ref.dtype)


# ------------------------------------------------------------------
# parameter init (deterministic, synthetic; matches torch layouts)
# ------------------------------------------------------------------
def init_params(C, wt_levels=1, stride=1, key=jax.random.PRNGKey(0)):
    k1, k2, k3 = jax.random.split(key, 3)
    return {
        "wt_levels": wt_levels,
        "stride": stride,
        # base depthwise conv: torch (C,1,5,5) <-> (C,5,5); bias (C,)
        "base_w": 0.1 * jax.random.normal(k1, (C, 5, 5), jnp.float32),
        "base_b": 0.1 * jax.random.normal(k2, (C,), jnp.float32),
        "base_scale": jnp.ones((C,), jnp.float32),                 # _ScaleModule init 1.0
        # wavelet depthwise conv: torch (4C,1,5,5) <-> (C,4,5,5) (channel-major, band-minor)
        "wave_w": 0.1 * jax.random.normal(k3, (C, 4, 5, 5), jnp.float32),
        "wave_scale": 0.1 * jnp.ones((C, 4), jnp.float32),         # _ScaleModule init 0.1
    }


# ------------------------------------------------------------------
# WTConv2d forward (public interface: NCHW in / NCHW out, dtype preserved)
# ------------------------------------------------------------------
def wtconv2d_forward(x_nchw, params):
    assert params["wt_levels"] == 1  # TODO(synk): multi-level wavelet pyramid (wt_levels > 1)
    B, C, H, W = x_nchw.shape
    ph, pw = H % 2, W % 2
    xk = jnp.pad(x_nchw, ((0, 0), (0, 0), (0, ph), (0, pw))) if (ph or pw) else x_nchw
    He, We = H + ph, W + pw
    Hh, Wh = He // 2, We // 2

    dec_lo, dec_hi, rec_lo, rec_hi = _haar_banks()
    wt_rows = jnp.asarray(_analysis_pair(He, dec_lo, dec_hi))                            # (2,Hh,He)
    wt_colsT = jnp.asarray(np.transpose(_analysis_pair(We, dec_lo, dec_hi), (0, 2, 1)))  # (2,We,Wh)
    iwt_rows = jnp.asarray(np.transpose(_analysis_pair(He, rec_lo, rec_hi), (0, 2, 1)))  # (2,He,Hh)
    iwt_colsT = jnp.asarray(_analysis_pair(We, rec_lo, rec_hi))                          # (2,Wh,We)

    # fold the _ScaleModule multipliers into the taps / bias (pure per-channel scaling)
    bw = (params["base_w"] * params["base_scale"][:, None, None]).reshape(C, 25)
    bb = params["base_b"] * params["base_scale"]
    ww = (params["wave_w"] * params["wave_scale"][:, :, None, None]).reshape(C, 100)

    out = pl.pallas_call(
        _wtconv_fused_kernel,
        out_shape=jax.ShapeDtypeStruct((B, C, He, We), x_nchw.dtype),
        grid=(B, C),
        in_specs=[
            pl.BlockSpec((1, 1, He, We), lambda b, c: (b, c, 0, 0)),
            pl.BlockSpec((2, Hh, He), lambda b, c: (0, 0, 0)),
            pl.BlockSpec((2, We, Wh), lambda b, c: (0, 0, 0)),
            pl.BlockSpec((2, He, Hh), lambda b, c: (0, 0, 0)),
            pl.BlockSpec((2, Wh, We), lambda b, c: (0, 0, 0)),
            pl.BlockSpec(memory_space=pltpu.MemorySpace.SMEM),
            pl.BlockSpec(memory_space=pltpu.MemorySpace.SMEM),
            pl.BlockSpec(memory_space=pltpu.MemorySpace.SMEM),
        ],
        out_specs=pl.BlockSpec((1, 1, He, We), lambda b, c: (b, c, 0, 0)),
        compiler_params=pltpu.CompilerParams(
            dimension_semantics=("parallel", "parallel")),
    )(xk, wt_rows, wt_colsT, iwt_rows, iwt_colsT, bw, bb, ww)

    out = out[:, :, :H, :W]
    if params["stride"] > 1:
        # TODO(synk): fold the stride-s subsampling into the output BlockSpec instead.
        out = out[:, :, ::params["stride"], ::params["stride"]]
    return out


# ------------------------------------------------------------------
# pure-JAX reference (mirrors the PyTorch module) for a self-check
# ------------------------------------------------------------------
def _reference_forward(x, params):
    B, C, H, W = x.shape
    s = float(1.0 / np.sqrt(2.0))
    lo, hi = (s, s), (s, -s)                     # haar dec (reversed) == rec (rev+flip)
    ab = [(lo, lo), (lo, hi), (hi, lo), (hi, hi)]  # (width filter a, height filter b) per band

    def dw5(u, w):                               # 'same' 5x5 depthwise cross-correlation
        M, N = u.shape[-2], u.shape[-1]
        up = jnp.pad(u, [(0, 0)] * (u.ndim - 2) + [(2, 2), (2, 2)])
        acc = 0.0
        for i in range(5):
            for j in range(5):
                acc = acc + w[..., i, j][..., None, None] * up[..., i:i + M, j:j + N]
        return acc

    ph, pw = H % 2, W % 2
    xe = jnp.pad(x, ((0, 0), (0, 0), (0, ph), (0, pw)))
    He, We = H + ph, W + pw
    p = xe.reshape(B, C, He // 2, 2, We // 2, 2)
    e = [[p[:, :, :, i, :, j] for j in range(2)] for i in range(2)]
    bands = jnp.stack(
        [sum(a[j] * b[i] * e[i][j] for i in range(2) for j in range(2)) for (a, b) in ab],
        axis=2)                                  # (B, C, 4, Hh, Wh)
    conv_b = params["wave_scale"][None, :, :, None, None] * dw5(bands, params["wave_w"][None])
    cells = [[sum(ab[k][0][j] * ab[k][1][i] * conv_b[:, :, k] for k in range(4))
              for j in range(2)] for i in range(2)]
    row0 = jnp.stack([cells[0][0], cells[0][1]], axis=-1)
    row1 = jnp.stack([cells[1][0], cells[1][1]], axis=-1)
    x_tag = jnp.stack([row0, row1], axis=-3).reshape(B, C, He, We)[:, :, :H, :W]
    base = params["base_scale"][None, :, None, None] * (
        dw5(x, params["base_w"][None]) + params["base_b"][None, :, None, None])
    out = base + x_tag
    if params["stride"] > 1:
        out = out[:, :, ::params["stride"], ::params["stride"]]
    return out


# ------------------------------------------------------------------
if __name__ == "__main__":
    B, C, H, W = 2, 4, 16, 16
    key = jax.random.PRNGKey(0)
    kx, kp = jax.random.split(key)
    x = jax.random.normal(kx, (B, C, H, W), jnp.float32)
    params = init_params(C, wt_levels=1, stride=1, key=kp)

    fwd = jax.jit(lambda inp: wtconv2d_forward(inp, params))
    out = fwd(x)
    jax.block_until_ready(out)

    assert out.shape == (B, C, H, W), out.shape
    assert bool(jnp.all(jnp.isfinite(out)))

    ref = _reference_forward(x, params)
    max_err = float(jnp.max(jnp.abs(out - ref)))
    assert max_err < 5e-2, max_err            # loose bound: MXU f32 path may round internally

    print("KERNEL_OK")
</pallas_src>

<mosaic_0001>
module attributes {stable_mosaic.version = 11 : i64} {
  func.func @_wtconv_fused_kernel(%arg0: i32, %arg1: i32, %arg2: memref<1x1x16x16xf32, #tpu.memory_space<vmem>>, %arg3: memref<2x8x16xf32, #tpu.memory_space<vmem>>, %arg4: memref<2x16x8xf32, #tpu.memory_space<vmem>>, %arg5: memref<2x16x8xf32, #tpu.memory_space<vmem>>, %arg6: memref<2x8x16xf32, #tpu.memory_space<vmem>>, %arg7: memref<4x25xf32, #tpu.memory_space<smem>>, %arg8: memref<4xf32, #tpu.memory_space<smem>>, %arg9: memref<4x100xf32, #tpu.memory_space<smem>>, %arg10: memref<1x1x16x16xf32, #tpu.memory_space<vmem>>) attributes {dimension_semantics = [#tpu.dimension_semantics<parallel>, #tpu.dimension_semantics<parallel>], iteration_bounds = array<i64: 2, 4>, scalar_prefetch = 0 : i64, scratch_operands = 0 : i64, tpu.core_type = #tpu.core_type<tc>, window_params = [{transform_indices = @transform_0, window_bounds = array<i64: 1, 1, 16, 16>}, {pipeline_mode = #tpu.pipeline_mode<synchronous>, transform_indices = @transform_1, window_bounds = array<i64: 2, 8, 16>}, {pipeline_mode = #tpu.pipeline_mode<synchronous>, transform_indices = @transform_2, window_bounds = array<i64: 2, 16, 8>}, {pipeline_mode = #tpu.pipeline_mode<synchronous>, transform_indices = @transform_3, window_bounds = array<i64: 2, 16, 8>}, {pipeline_mode = #tpu.pipeline_mode<synchronous>, transform_indices = @transform_4, window_bounds = array<i64: 2, 8, 16>}, {transform_indices = @transform_5, window_bounds = array<i64: 4, 25>}, {transform_indices = @transform_6, window_bounds = array<i64: 4>}, {transform_indices = @transform_7, window_bounds = array<i64: 4, 100>}, {transform_indices = @transform_8, window_bounds = array<i64: 1, 1, 16, 16>}]} {
    %c0 = arith.constant 0 : index
    %c0_0 = arith.constant 0 : index
    %c0_1 = arith.constant 0 : index
    %c0_2 = arith.constant 0 : index
    %0 = vector.load %arg2[%c0, %c0_0, %c0_1, %c0_2] : memref<1x1x16x16xf32, #tpu.memory_space<vmem>>, vector<1x1x16x16xf32>
    %1 = vector.shape_cast %0 : vector<1x1x16x16xf32> to vector<16x16xf32>
    %2 = arith.index_cast %arg1 : i32 to index
    %c0_3 = arith.constant 0 : index
    %3 = memref.load %arg7[%2, %c0_3] : memref<4x25xf32, #tpu.memory_space<smem>>
    %4 = arith.index_cast %arg1 : i32 to index
    %c1 = arith.constant 1 : index
    %5 = memref.load %arg7[%4, %c1] : memref<4x25xf32, #tpu.memory_space<smem>>
    %6 = arith.index_cast %arg1 : i32 to index
    %c2 = arith.constant 2 : index
    %7 = memref.load %arg7[%6, %c2] : memref<4x25xf32, #tpu.memory_space<smem>>
    %8 = arith.index_cast %arg1 : i32 to index
    %c3 = arith.constant 3 : index
    %9 = memref.load %arg7[%8, %c3] : memref<4x25xf32, #tpu.memory_space<smem>>
    %10 = arith.index_cast %arg1 : i32 to index
    %c4 = arith.constant 4 : index
    %11 = memref.load %arg7[%10, %c4] : memref<4x25xf32, #tpu.memory_space<smem>>
    %12 = arith.index_cast %arg1 : i32 to index
    %c5 = arith.constant 5 : index
    %13 = memref.load %arg7[%12, %c5] : memref<4x25xf32, #tpu.memory_space<smem>>
    %14 = arith.index_cast %arg1 : i32 to index
    %c6 = arith.constant 6 : index
    %15 = memref.load %arg7[%14, %c6] : memref<4x25xf32, #tpu.memory_space<smem>>
    %16 = arith.index_cast %arg1 : i32 to index
    %c7 = arith.constant 7 : index
    %17 = memref.load %arg7[%16, %c7] : memref<4x25xf32, #tpu.memory_space<smem>>
    %18 = arith.index_cast %arg1 : i32 to index
    %c8 = arith.constant 8 : index
    %19 = memref.load %arg7[%18, %c8] : memref<4x25xf32, #tpu.memory_space<smem>>
    %20 = arith.index_cast %arg1 : i32 to index
    %c9 = arith.constant 9 : index
    %21 = memref.load %arg7[%20, %c9] : memref<4x25xf32, #tpu.memory_space<smem>>
    %22 = arith.index_cast %arg1 : i32 to index
    %c10 = arith.constant 10 : index
    %23 = memref.load %arg7[%22, %c10] : memref<4x25xf32, #tpu.memory_space<smem>>
    %24 = arith.index_cast %arg1 : i32 to index
    %c11 = arith.constant 11 : index
    %25 = memref.load %arg7[%24, %c11] : memref<4x25xf32, #tpu.memory_space<smem>>
    %26 = arith.index_cast %arg1 : i32 to index
    %c12 = arith.constant 12 : index
    %27 = memref.load %arg7[%26, %c12] : memref<4x25xf32, #tpu.memory_space<smem>>
    %28 = arith.index_cast %arg1 : i32 to index
    %c13 = arith.constant 13 : index
    %29 = memref.load %arg7[%28, %c13] : memref<4x25xf32, #tpu.memory_space<smem>>
    %30 = arith.index_cast %arg1 : i32 to index
    %c14 = arith.constant 14 : index
    %31 = memref.load %arg7[%30, %c14] : memref<4x25xf32, #tpu.memory_space<smem>>
    %32 = arith.index_cast %arg1 : i32 to index
    %c15 = arith.constant 15 : index
    %33 = memref.load %arg7[%32, %c15] : memref<4x25xf32, #tpu.memory_space<smem>>
    %34 = arith.index_cast %arg1 : i32 to index
    %c16 = arith.constant 16 : index
    %35 = memref.load %arg7[%34, %c16] : memref<4x25xf32, #tpu.memory_space<smem>>
    %36 = arith.index_cast %arg1 : i32 to index
    %c17 = arith.constant 17 : index
    %37 = memref.load %arg7[%36, %c17] : memref<4x25xf32, #tpu.memory_space<smem>>
    %38 = arith.index_cast %arg1 : i32 to index
    %c18 = arith.constant 18 : index
    %39 = memref.load %arg7[%38, %c18] : memref<4x25xf32, #tpu.memory_space<smem>>
    %40 = arith.index_cast %arg1 : i32 to index
    %c19 = arith.constant 19 : index
    %41 = memref.load %arg7[%40, %c19] : memref<4x25xf32, #tpu.memory_space<smem>>
    %42 = arith.index_cast %arg1 : i32 to index
    %c20 = arith.constant 20 : index
    %43 = memref.load %arg7[%42, %c20] : memref<4x25xf32, #tpu.memory_space<smem>>
    %44 = arith.index_cast %arg1 : i32 to index
    %c21 = arith.constant 21 : index
    %45 = memref.load %arg7[%44, %c21] : memref<4x25xf32, #tpu.memory_space<smem>>
    %46 = arith.index_cast %arg1 : i32 to index
    %c22 = arith.constant 22 : index
    %47 = memref.load %arg7[%46, %c22] : memref<4x25xf32, #tpu.memory_space<smem>>
    %48 = arith.index_cast %arg1 : i32 to index
    %c23 = arith.constant 23 : index
    %49 = memref.load %arg7[%48, %c23] : memref<4x25xf32, #tpu.memory_space<smem>>
    %50 = arith.index_cast %arg1 : i32 to index
    %c24 = arith.constant 24 : index
    %51 = memref.load %arg7[%50, %c24] : memref<4x25xf32, #tpu.memory_space<smem>>
    %52 = tpu.iota {dimensions = array<i32: 1>} : vector<16x16xi32>
    %53 = tpu.iota {dimensions = array<i32: 0>} : vector<16x16xi32>
    %c2_i32 = arith.constant 2 : i32
    %54 = tpu.dynamic_rotate %1 by %c2_i32 dim 1 : vector<16x16xf32>, i32 -> vector<16x16xf32>
    %c-2_i32 = arith.constant -2 : i32
    %55 = vector.broadcast %c-2_i32 : i32 to vector<16x16xi32>
    %56 = arith.addi %52, %55 : vector<16x16xi32>
    %c0_i32 = arith.constant 0 : i32
    %57 = vector.broadcast %c0_i32 : i32 to vector<16x16xi32>
    %58 = arith.cmpi sge, %56, %57 : vector<16x16xi32>
    %c-2_i32_4 = arith.constant -2 : i32
    %59 = vector.broadcast %c-2_i32_4 : i32 to vector<16x16xi32>
    %60 = arith.addi %52, %59 : vector<16x16xi32>
    %c16_i32 = arith.constant 16 : i32
    %61 = vector.broadcast %c16_i32 : i32 to vector<16x16xi32>
    %62 = arith.cmpi slt, %60, %61 : vector<16x16xi32>
    %63 = arith.andi %58, %62 : vector<16x16xi1>
    %cst = arith.constant 0.000000e+00 : f32
    %64 = vector.broadcast %cst : f32 to vector<16x16xf32>
    %65 = arith.select %63, %54, %64 : vector<16x16xi1>, vector<16x16xf32>
    %c1_i32 = arith.constant 1 : i32
    %66 = tpu.dynamic_rotate %1 by %c1_i32 dim 1 : vector<16x16xf32>, i32 -> vector<16x16xf32>
    %c-1_i32 = arith.constant -1 : i32
    %67 = vector.broadcast %c-1_i32 : i32 to vector<16x16xi32>
    %68 = arith.addi %52, %67 : vector<16x16xi32>
    %c0_i32_5 = arith.constant 0 : i32
    %69 = vector.broadcast %c0_i32_5 : i32 to vector<16x16xi32>
    %70 = arith.cmpi sge, %68, %69 : vector<16x16xi32>
    %c-1_i32_6 = arith.constant -1 : i32
    %71 = vector.broadcast %c-1_i32_6 : i32 to vector<16x16xi32>
    %72 = arith.addi %52, %71 : vector<16x16xi32>
    %c16_i32_7 = arith.constant 16 : i32
    %73 = vector.broadcast %c16_i32_7 : i32 to vector<16x16xi32>
    %74 = arith.cmpi slt, %72, %73 : vector<16x16xi32>
    %75 = arith.andi %70, %74 : vector<16x16xi1>
    %cst_8 = arith.constant 0.000000e+00 : f32
    %76 = vector.broadcast %cst_8 : f32 to vector<16x16xf32>
    %77 = arith.select %75, %66, %76 : vector<16x16xi1>, vector<16x16xf32>
    %c15_i32 = arith.constant 15 : i32
    %78 = tpu.dynamic_rotate %1 by %c15_i32 dim 1 : vector<16x16xf32>, i32 -> vector<16x16xf32>
    %c1_i32_9 = arith.constant 1 : i32
    %79 = vector.broadcast %c1_i32_9 : i32 to vector<16x16xi32>
    %80 = arith.addi %52, %79 : vector<16x16xi32>
    %c0_i32_10 = arith.constant 0 : i32
    %81 = vector.broadcast %c0_i32_10 : i32 to vector<16x16xi32>
    %82 = arith.cmpi sge, %80, %81 : vector<16x16xi32>
    %c1_i32_11 = arith.constant 1 : i32
    %83 = vector.broadcast %c1_i32_11 : i32 to vector<16x16xi32>
    %84 = arith.addi %52, %83 : vector<16x16xi32>
    %c16_i32_12 = arith.constant 16 : i32
    %85 = vector.broadcast %c16_i32_12 : i32 to vector<16x16xi32>
    %86 = arith.cmpi slt, %84, %85 : vector<16x16xi32>
    %87 = arith.andi %82, %86 : vector<16x16xi1>
    %cst_13 = arith.constant 0.000000e+00 : f32
    %88 = vector.broadcast %cst_13 : f32 to vector<16x16xf32>
    %89 = arith.select %87, %78, %88 : vector<16x16xi1>, vector<16x16xf32>
    %c14_i32 = arith.constant 14 : i32
    %90 = tpu.dynamic_rotate %1 by %c14_i32 dim 1 : vector<16x16xf32>, i32 -> vector<16x16xf32>
    %c2_i32_14 = arith.constant 2 : i32
    %91 = vector.broadcast %c2_i32_14 : i32 to vector<16x16xi32>
    %92 = arith.addi %52, %91 : vector<16x16xi32>
    %c0_i32_15 = arith.constant 0 : i32
    %93 = vector.broadcast %c0_i32_15 : i32 to vector<16x16xi32>
    %94 = arith.cmpi sge, %92, %93 : vector<16x16xi32>
    %c2_i32_16 = arith.constant 2 : i32
    %95 = vector.broadcast %c2_i32_16 : i32 to vector<16x16xi32>
    %96 = arith.addi %52, %95 : vector<16x16xi32>
    %c16_i32_17 = arith.constant 16 : i32
    %97 = vector.broadcast %c16_i32_17 : i32 to vector<16x16xi32>
    %98 = arith.cmpi slt, %96, %97 : vector<16x16xi32>
    %99 = arith.andi %94, %98 : vector<16x16xi1>
    %cst_18 = arith.constant 0.000000e+00 : f32
    %100 = vector.broadcast %cst_18 : f32 to vector<16x16xf32>
    %101 = arith.select %99, %90, %100 : vector<16x16xi1>, vector<16x16xf32>
    %102 = vector.broadcast %3 : f32 to vector<16x16xf32>
    %103 = arith.mulf %65, %102 : vector<16x16xf32>
    %104 = vector.broadcast %5 : f32 to vector<16x16xf32>
    %105 = arith.mulf %77, %104 : vector<16x16xf32>
    %106 = arith.addf %103, %105 : vector<16x16xf32>
    %107 = vector.broadcast %7 : f32 to vector<16x16xf32>
    %108 = arith.mulf %1, %107 : vector<16x16xf32>
    %109 = arith.addf %106, %108 : vector<16x16xf32>
    %110 = vector.broadcast %9 : f32 to vector<16x16xf32>
    %111 = arith.mulf %89, %110 : vector<16x16xf32>
    %112 = arith.addf %109, %111 : vector<16x16xf32>
    %113 = vector.broadcast %11 : f32 to vector<16x16xf32>
    %114 = arith.mulf %101, %113 : vector<16x16xf32>
    %115 = arith.addf %112, %114 : vector<16x16xf32>
    %c2_i32_19 = arith.constant 2 : i32
    %116 = tpu.dynamic_rotate %115 by %c2_i32_19 dim 0 : vector<16x16xf32>, i32 -> vector<16x16xf32>
    %c-2_i32_20 = arith.constant -2 : i32
    %117 = vector.broadcast %c-2_i32_20 : i32 to vector<16x16xi32>
    %118 = arith.addi %53, %117 : vector<16x16xi32>
    %c0_i32_21 = arith.constant 0 : i32
    %119 = vector.broadcast %c0_i32_21 : i32 to vector<16x16xi32>
    %120 = arith.cmpi sge, %118, %119 : vector<16x16xi32>
    %c-2_i32_22 = arith.constant -2 : i32
    %121 = vector.broadcast %c-2_i32_22 : i32 to vector<16x16xi32>
    %122 = arith.addi %53, %121 : vector<16x16xi32>
    %c16_i32_23 = arith.constant 16 : i32
    %123 = vector.broadcast %c16_i32_23 : i32 to vector<16x16xi32>
    %124 = arith.cmpi slt, %122, %123 : vector<16x16xi32>
    %125 = arith.andi %120, %124 : vector<16x16xi1>
    %cst_24 = arith.constant 0.000000e+00 : f32
    %126 = vector.broadcast %cst_24 : f32 to vector<16x16xf32>
    %127 = arith.select %125, %116, %126 : vector<16x16xi1>, vector<16x16xf32>
    %128 = vector.broadcast %13 : f32 to vector<16x16xf32>
    %129 = arith.mulf %65, %128 : vector<16x16xf32>
    %130 = vector.broadcast %15 : f32 to vector<16x16xf32>
    %131 = arith.mulf %77, %130 : vector<16x16xf32>
    %132 = arith.addf %129, %131 : vector<16x16xf32>
    %133 = vector.broadcast %17 : f32 to vector<16x16xf32>
    %134 = arith.mulf %1, %133 : vector<16x16xf32>
    %135 = arith.addf %132, %134 : vector<16x16xf32>
    %136 = vector.broadcast %19 : f32 to vector<16x16xf32>
    %137 = arith.mulf %89, %136 : vector<16x16xf32>
    %138 = arith.addf %135, %137 : vector<16x16xf32>
    %139 = vector.broadcast %21 : f32 to vector<16x16xf32>
    %140 = arith.mulf %101, %139 : vector<16x16xf32>
    %141 = arith.addf %138, %140 : vector<16x16xf32>
    %c1_i32_25 = arith.constant 1 : i32
    %142 = tpu.dynamic_rotate %141 by %c1_i32_25 dim 0 : vector<16x16xf32>, i32 -> vector<16x16xf32>
    %c-1_i32_26 = arith.constant -1 : i32
    %143 = vector.broadcast %c-1_i32_26 : i32 to vector<16x16xi32>
    %144 = arith.addi %53, %143 : vector<16x16xi32>
    %c0_i32_27 = arith.constant 0 : i32
    %145 = vector.broadcast %c0_i32_27 : i32 to vector<16x16xi32>
    %146 = arith.cmpi sge, %144, %145 : vector<16x16xi32>
    %c-1_i32_28 = arith.constant -1 : i32
    %147 = vector.broadcast %c-1_i32_28 : i32 to vector<16x16xi32>
    %148 = arith.addi %53, %147 : vector<16x16xi32>
    %c16_i32_29 = arith.constant 16 : i32
    %149 = vector.broadcast %c16_i32_29 : i32 to vector<16x16xi32>
    %150 = arith.cmpi slt, %148, %149 : vector<16x16xi32>
    %151 = arith.andi %146, %150 : vector<16x16xi1>
    %cst_30 = arith.constant 0.000000e+00 : f32
    %152 = vector.broadcast %cst_30 : f32 to vector<16x16xf32>
    %153 = arith.select %151, %142, %152 : vector<16x16xi1>, vector<16x16xf32>
    %154 = arith.addf %127, %153 : vector<16x16xf32>
    %155 = vector.broadcast %23 : f32 to vector<16x16xf32>
    %156 = arith.mulf %65, %155 : vector<16x16xf32>
    %157 = vector.broadcast %25 : f32 to vector<16x16xf32>
    %158 = arith.mulf %77, %157 : vector<16x16xf32>
    %159 = arith.addf %156, %158 : vector<16x16xf32>
    %160 = vector.broadcast %27 : f32 to vector<16x16xf32>
    %161 = arith.mulf %1, %160 : vector<16x16xf32>
    %162 = arith.addf %159, %161 : vector<16x16xf32>
    %163 = vector.broadcast %29 : f32 to vector<16x16xf32>
    %164 = arith.mulf %89, %163 : vector<16x16xf32>
    %165 = arith.addf %162, %164 : vector<16x16xf32>
    %166 = vector.broadcast %31 : f32 to vector<16x16xf32>
    %167 = arith.mulf %101, %166 : vector<16x16xf32>
    %168 = arith.addf %165, %167 : vector<16x16xf32>
    %169 = arith.addf %154, %168 : vector<16x16xf32>
    %170 = vector.broadcast %33 : f32 to vector<16x16xf32>
    %171 = arith.mulf %65, %170 : vector<16x16xf32>
    %172 = vector.broadcast %35 : f32 to vector<16x16xf32>
    %173 = arith.mulf %77, %172 : vector<16x16xf32>
    %174 = arith.addf %171, %173 : vector<16x16xf32>
    %175 = vector.broadcast %37 : f32 to vector<16x16xf32>
    %176 = arith.mulf %1, %175 : vector<16x16xf32>
    %177 = arith.addf %174, %176 : vector<16x16xf32>
    %178 = vector.broadcast %39 : f32 to vector<16x16xf32>
    %179 = arith.mulf %89, %178 : vector<16x16xf32>
    %180 = arith.addf %177, %179 : vector<16x16xf32>
    %181 = vector.broadcast %41 : f32 to vector<16x16xf32>
    %182 = arith.mulf %101, %181 : vector<16x16xf32>
    %183 = arith.addf %180, %182 : vector<16x16xf32>
    %c15_i32_31 = arith.constant 15 : i32
    %184 = tpu.dynamic_rotate %183 by %c15_i32_31 dim 0 : vector<16x16xf32>, i32 -> vector<16x16xf32>
    %c1_i32_32 = arith.constant 1 : i32
    %185 = vector.broadcast %c1_i32_32 : i32 to vector<16x16xi32>
    %186 = arith.addi %53, %185 : vector<16x16xi32>
    %c0_i32_33 = arith.constant 0 : i32
    %187 = vector.broadcast %c0_i32_33 : i32 to vector<16x16xi32>
    %188 = arith.cmpi sge, %186, %187 : vector<16x16xi32>
    %c1_i32_34 = arith.constant 1 : i32
    %189 = vector.broadcast %c1_i32_34 : i32 to vector<16x16xi32>
    %190 = arith.addi %53, %189 : vector<16x16xi32>
    %c16_i32_35 = arith.constant 16 : i32
    %191 = vector.broadcast %c16_i32_35 : i32 to vector<16x16xi32>
    %192 = arith.cmpi slt, %190, %191 : vector<16x16xi32>
    %193 = arith.andi %188, %192 : vector<16x16xi1>
    %cst_36 = arith.constant 0.000000e+00 : f32
    %194 = vector.broadcast %cst_36 : f32 to vector<16x16xf32>
    %195 = arith.select %193, %184, %194 : vector<16x16xi1>, vector<16x16xf32>
    %196 = arith.addf %169, %195 : vector<16x16xf32>
    %197 = vector.broadcast %43 : f32 to vector<16x16xf32>
    %198 = arith.mulf %65, %197 : vector<16x16xf32>
    %199 = vector.broadcast %45 : f32 to vector<16x16xf32>
    %200 = arith.mulf %77, %199 : vector<16x16xf32>
    %201 = arith.addf %198, %200 : vector<16x16xf32>
    %202 = vector.broadcast %47 : f32 to vector<16x16xf32>
    %203 = arith.mulf %1, %202 : vector<16x16xf32>
    %204 = arith.addf %201, %203 : vector<16x16xf32>
    %205 = vector.broadcast %49 : f32 to vector<16x16xf32>
    %206 = arith.mulf %89, %205 : vector<16x16xf32>
    %207 = arith.addf %204, %206 : vector<16x16xf32>
    %208 = vector.broadcast %51 : f32 to vector<16x16xf32>
    %209 = arith.mulf %101, %208 : vector<16x16xf32>
    %210 = arith.addf %207, %209 : vector<16x16xf32>
    %c14_i32_37 = arith.constant 14 : i32
    %211 = tpu.dynamic_rotate %210 by %c14_i32_37 dim 0 : vector<16x16xf32>, i32 -> vector<16x16xf32>
    %c2_i32_38 = arith.constant 2 : i32
    %212 = vector.broadcast %c2_i32_38 : i32 to vector<16x16xi32>
    %213 = arith.addi %53, %212 : vector<16x16xi32>
    %c0_i32_39 = arith.constant 0 : i32
    %214 = vector.broadcast %c0_i32_39 : i32 to vector<16x16xi32>
    %215 = arith.cmpi sge, %213, %214 : vector<16x16xi32>
    %c2_i32_40 = arith.constant 2 : i32
    %216 = vector.broadcast %c2_i32_40 : i32 to vector<16x16xi32>
    %217 = arith.addi %53, %216 : vector<16x16xi32>
    %c16_i32_41 = arith.constant 16 : i32
    %218 = vector.broadcast %c16_i32_41 : i32 to vector<16x16xi32>
    %219 = arith.cmpi slt, %217, %218 : vector<16x16xi32>
    %220 = arith.andi %215, %219 : vector<16x16xi1>
    %cst_42 = arith.constant 0.000000e+00 : f32
    %221 = vector.broadcast %cst_42 : f32 to vector<16x16xf32>
    %222 = arith.select %220, %211, %221 : vector<16x16xi1>, vector<16x16xf32>
    %223 = arith.addf %196, %222 : vector<16x16xf32>
    %224 = arith.index_cast %arg1 : i32 to index
    %225 = memref.load %arg8[%224] : memref<4xf32, #tpu.memory_space<smem>>
    %226 = vector.broadcast %225 : f32 to vector<16x16xf32>
    %227 = arith.addf %223, %226 : vector<16x16xf32>
    %c0_43 = arith.constant 0 : index
    %c0_44 = arith.constant 0 : index
    %c0_45 = arith.constant 0 : index
    %228 = vector.load %arg3[%c0_43, %c0_44, %c0_45] : memref<2x8x16xf32, #tpu.memory_space<vmem>>, vector<1x8x16xf32>
    %229 = vector.shape_cast %228 : vector<1x8x16xf32> to vector<8x16xf32>
    %c0_46 = arith.constant 0 : index
    %c0_47 = arith.constant 0 : index
    %c0_48 = arith.constant 0 : index
    %230 = vector.load %arg4[%c0_46, %c0_47, %c0_48] : memref<2x16x8xf32, #tpu.memory_space<vmem>>, vector<1x16x8xf32>
    %231 = vector.shape_cast %230 : vector<1x16x8xf32> to vector<16x8xf32>
    %cst_49 = arith.constant dense<0.000000e+00> : vector<16x8xf32>
    %232 = tpu.matmul %1, %231, %cst_49 {dimension_numbers = #tpu.dot_dimension_numbers<[1], [0], [0], [1], [0, 0, 1, 1], [], []>} : vector<16x16xf32>, vector<16x8xf32>, vector<16x8xf32> -> vector<16x8xf32>
    %cst_50 = arith.constant dense<0.000000e+00> : vector<8x8xf32>
    %233 = tpu.matmul %229, %232, %cst_50 {dimension_numbers = #tpu.dot_dimension_numbers<[1], [0], [0], [1], [0, 0, 1, 1], [], []>} : vector<8x16xf32>, vector<16x8xf32>, vector<8x8xf32> -> vector<8x8xf32>
    %234 = arith.index_cast %arg1 : i32 to index
    %c0_51 = arith.constant 0 : index
    %235 = memref.load %arg9[%234, %c0_51] : memref<4x100xf32, #tpu.memory_space<smem>>
    %236 = arith.index_cast %arg1 : i32 to index
    %c1_52 = arith.constant 1 : index
    %237 = memref.load %arg9[%236, %c1_52] : memref<4x100xf32, #tpu.memory_space<smem>>
    %238 = arith.index_cast %arg1 : i32 to index
    %c2_53 = arith.constant 2 : index
    %239 = memref.load %arg9[%238, %c2_53] : memref<4x100xf32, #tpu.memory_space<smem>>
    %240 = arith.index_cast %arg1 : i32 to index
    %c3_54 = arith.constant 3 : index
    %241 = memref.load %arg9[%240, %c3_54] : memref<4x100xf32, #tpu.memory_space<smem>>
    %242 = arith.index_cast %arg1 : i32 to index
    %c4_55 = arith.constant 4 : index
    %243 = memref.load %arg9[%242, %c4_55] : memref<4x100xf32, #tpu.memory_space<smem>>
    %244 = arith.index_cast %arg1 : i32 to index
    %c5_56 = arith.constant 5 : index
    %245 = memref.load %arg9[%244, %c5_56] : memref<4x100xf32, #tpu.memory_space<smem>>
    %246 = arith.index_cast %arg1 : i32 to index
    %c6_57 = arith.constant 6 : index
    %247 = memref.load %arg9[%246, %c6_57] : memref<4x100xf32, #tpu.memory_space<smem>>
    %248 = arith.index_cast %arg1 : i32 to index
    %c7_58 = arith.constant 7 : index
    %249 = memref.load %arg9[%248, %c7_58] : memref<4x100xf32, #tpu.memory_space<smem>>
    %250 = arith.index_cast %arg1 : i32 to index
    %c8_59 = arith.constant 8 : index
    %251 = memref.load %arg9[%250, %c8_59] : memref<4x100xf32, #tpu.memory_space<smem>>
    %252 = arith.index_cast %arg1 : i32 to index
    %c9_60 = arith.constant 9 : index
    %253 = memref.load %arg9[%252, %c9_60] : memref<4x100xf32, #tpu.memory_space<smem>>
    %254 = arith.index_cast %arg1 : i32 to index
    %c10_61 = arith.constant 10 : index
    %255 = memref.load %arg9[%254, %c10_61] : memref<4x100xf32, #tpu.memory_space<smem>>
    %256 = arith.index_cast %arg1 : i32 to index
    %c11_62 = arith.constant 11 : index
    %257 = memref.load %arg9[%256, %c11_62] : memref<4x100xf32, #tpu.memory_space<smem>>
    %258 = arith.index_cast %arg1 : i32 to index
    %c12_63 = arith.constant 12 : index
    %259 = memref.load %arg9[%258, %c12_63] : memref<4x100xf32, #tpu.memory_space<smem>>
    %260 = arith.index_cast %arg1 : i32 to index
    %c13_64 = arith.constant 13 : index
    %261 = memref.load %arg9[%260, %c13_64] : memref<4x100xf32, #tpu.memory_space<smem>>
    %262 = arith.index_cast %arg1 : i32 to index
    %c14_65 = arith.constant 14 : index
    %263 = memref.load %arg9[%262, %c14_65] : memref<4x100xf32, #tpu.memory_space<smem>>
    %264 = arith.index_cast %arg1 : i32 to index
    %c15_66 = arith.constant 15 : index
    %265 = memref.load %arg9[%264, %c15_66] : memref<4x100xf32, #tpu.memory_space<smem>>
    %266 = arith.index_cast %arg1 : i32 to index
    %c16_67 = arith.constant 16 : index
    %267 = memref.load %arg9[%266, %c16_67] : memref<4x100xf32, #tpu.memory_space<smem>>
    %268 = arith.index_cast %arg1 : i32 to index
    %c17_68 = arith.constant 17 : index
    %269 = memref.load %arg9[%268, %c17_68] : memref<4x100xf32, #tpu.memory_space<smem>>
    %270 = arith.index_cast %arg1 : i32 to index
    %c18_69 = arith.constant 18 : index
    %271 = memref.load %arg9[%270, %c18_69] : memref<4x100xf32, #tpu.memory_space<smem>>
    %272 = arith.index_cast %arg1 : i32 to index
    %c19_70 = arith.constant 19 : index
    %273 = memref.load %arg9[%272, %c19_70] : memref<4x100xf32, #tpu.memory_space<smem>>
    %274 = arith.index_cast %arg1 : i32 to index
    %c20_71 = arith.constant 20 : index
    %275 = memref.load %arg9[%274, %c20_71] : memref<4x100xf32, #tpu.memory_space<smem>>
    %276 = arith.index_cast %arg1 : i32 to index
    %c21_72 = arith.constant 21 : index
    %277 = memref.load %arg9[%276, %c21_72] : memref<4x100xf32, #tpu.memory_space<smem>>
    %278 = arith.index_cast %arg1 : i32 to index
    %c22_73 = arith.constant 22 : index
    %279 = memref.load %arg9[%278, %c22_73] : memref<4x100xf32, #tpu.memory_space<smem>>
    %280 = arith.index_cast %arg1 : i32 to index
    %c23_74 = arith.constant 23 : index
    %281 = memref.load %arg9[%280, %c23_74] : memref<4x100xf32, #tpu.memory_space<smem>>
    %282 = arith.index_cast %arg1 : i32 to index
    %c24_75 = arith.constant 24 : index
    %283 = memref.load %arg9[%282, %c24_75] : memref<4x100xf32, #tpu.memory_space<smem>>
    %284 = tpu.iota {dimensions = array<i32: 1>} : vector<8x8xi32>
    %285 = tpu.iota {dimensions = array<i32: 0>} : vector<8x8xi32>
    %c2_i32_76 = arith.constant 2 : i32
    %286 = tpu.dynamic_rotate %233 by %c2_i32_76 dim 1 : vector<8x8xf32>, i32 -> vector<8x8xf32>
    %c-2_i32_77 = arith.constant -2 : i32
    %287 = vector.broadcast %c-2_i32_77 : i32 to vector<8x8xi32>
    %288 = arith.addi %284, %287 : vector<8x8xi32>
    %c0_i32_78 = arith.constant 0 : i32
    %289 = vector.broadcast %c0_i32_78 : i32 to vector<8x8xi32>
    %290 = arith.cmpi sge, %288, %289 : vector<8x8xi32>
    %c-2_i32_79 = arith.constant -2 : i32
    %291 = vector.broadcast %c-2_i32_79 : i32 to vector<8x8xi32>
    %292 = arith.addi %284, %291 : vector<8x8xi32>
    %c8_i32 = arith.constant 8 : i32
    %293 = vector.broadcast %c8_i32 : i32 to vector<8x8xi32>
    %294 = arith.cmpi slt, %292, %293 : vector<8x8xi32>
    %295 = arith.andi %290, %294 : vector<8x8xi1>
    %cst_80 = arith.constant 0.000000e+00 : f32
    %296 = vector.broadcast %cst_80 : f32 to vector<8x8xf32>
    %297 = arith.select %295, %286, %296 : vector<8x8xi1>, vector<8x8xf32>
    %c1_i32_81 = arith.constant 1 : i32
    %298 = tpu.dynamic_rotate %233 by %c1_i32_81 dim 1 : vector<8x8xf32>, i32 -> vector<8x8xf32>
    %c-1_i32_82 = arith.constant -1 : i32
    %299 = vector.broadcast %c-1_i32_82 : i32 to vector<8x8xi32>
    %300 = arith.addi %284, %299 : vector<8x8xi32>
    %c0_i32_83 = arith.constant 0 : i32
    %301 = vector.broadcast %c0_i32_83 : i32 to vector<8x8xi32>
    %302 = arith.cmpi sge, %300, %301 : vector<8x8xi32>
    %c-1_i32_84 = arith.constant -1 : i32
    %303 = vector.broadcast %c-1_i32_84 : i32 to vector<8x8xi32>
    %304 = arith.addi %284, %303 : vector<8x8xi32>
    %c8_i32_85 = arith.constant 8 : i32
    %305 = vector.broadcast %c8_i32_85 : i32 to vector<8x8xi32>
    %306 = arith.cmpi slt, %304, %305 : vector<8x8xi32>
    %307 = arith.andi %302, %306 : vector<8x8xi1>
    %cst_86 = arith.constant 0.000000e+00 : f32
    %308 = vector.broadcast %cst_86 : f32 to vector<8x8xf32>
    %309 = arith.select %307, %298, %308 : vector<8x8xi1>, vector<8x8xf32>
    %c7_i32 = arith.constant 7 : i32
    %310 = tpu.dynamic_rotate %233 by %c7_i32 dim 1 : vector<8x8xf32>, i32 -> vector<8x8xf32>
    %c1_i32_87 = arith.constant 1 : i32
    %311 = vector.broadcast %c1_i32_87 : i32 to vector<8x8xi32>
    %312 = arith.addi %284, %311 : vector<8x8xi32>
    %c0_i32_88 = arith.constant 0 : i32
    %313 = vector.broadcast %c0_i32_88 : i32 to vector<8x8xi32>
    %314 = arith.cmpi sge, %312, %313 : vector<8x8xi32>
    %c1_i32_89 = arith.constant 1 : i32
    %315 = vector.broadcast %c1_i32_89 : i32 to vector<8x8xi32>
    %316 = arith.addi %284, %315 : vector<8x8xi32>
    %c8_i32_90 = arith.constant 8 : i32
    %317 = vector.broadcast %c8_i32_90 : i32 to vector<8x8xi32>
    %318 = arith.cmpi slt, %316, %317 : vector<8x8xi32>
    %319 = arith.andi %314, %318 : vector<8x8xi1>
    %cst_91 = arith.constant 0.000000e+00 : f32
    %320 = vector.broadcast %cst_91 : f32 to vector<8x8xf32>
    %321 = arith.select %319, %310, %320 : vector<8x8xi1>, vector<8x8xf32>
    %c6_i32 = arith.constant 6 : i32
    %322 = tpu.dynamic_rotate %233 by %c6_i32 dim 1 : vector<8x8xf32>, i32 -> vector<8x8xf32>
    %c2_i32_92 = arith.constant 2 : i32
    %323 = vector.broadcast %c2_i32_92 : i32 to vector<8x8xi32>
    %324 = arith.addi %284, %323 : vector<8x8xi32>
    %c0_i32_93 = arith.constant 0 : i32
    %325 = vector.broadcast %c0_i32_93 : i32 to vector<8x8xi32>
    %326 = arith.cmpi sge, %324, %325 : vector<8x8xi32>
    %c2_i32_94 = arith.constant 2 : i32
    %327 = vector.broadcast %c2_i32_94 : i32 to vector<8x8xi32>
    %328 = arith.addi %284, %327 : vector<8x8xi32>
    %c8_i32_95 = arith.constant 8 : i32
    %329 = vector.broadcast %c8_i32_95 : i32 to vector<8x8xi32>
    %330 = arith.cmpi slt, %328, %329 : vector<8x8xi32>
    %331 = arith.andi %326, %330 : vector<8x8xi1>
    %cst_96 = arith.constant 0.000000e+00 : f32
    %332 = vector.broadcast %cst_96 : f32 to vector<8x8xf32>
    %333 = arith.select %331, %322, %332 : vector<8x8xi1>, vector<8x8xf32>
    %334 = vector.broadcast %235 : f32 to vector<8x8xf32>
    %335 = arith.mulf %297, %334 : vector<8x8xf32>
    %336 = vector.broadcast %237 : f32 to vector<8x8xf32>
    %337 = arith.mulf %309, %336 : vector<8x8xf32>
    %338 = arith.addf %335, %337 : vector<8x8xf32>
    %339 = vector.broadcast %239 : f32 to vector<8x8xf32>
    %340 = arith.mulf %233, %339 : vector<8x8xf32>
    %341 = arith.addf %338, %340 : vector<8x8xf32>
    %342 = vector.broadcast %241 : f32 to vector<8x8xf32>
    %343 = arith.mulf %321, %342 : vector<8x8xf32>
    %344 = arith.addf %341, %343 : vector<8x8xf32>
    %345 = vector.broadcast %243 : f32 to vector<8x8xf32>
    %346 = arith.mulf %333, %345 : vector<8x8xf32>
    %347 = arith.addf %344, %346 : vector<8x8xf32>
    %c2_i32_97 = arith.constant 2 : i32
    %348 = tpu.dynamic_rotate %347 by %c2_i32_97 dim 0 : vector<8x8xf32>, i32 -> vector<8x8xf32>
    %c-2_i32_98 = arith.constant -2 : i32
    %349 = vector.broadcast %c-2_i32_98 : i32 to vector<8x8xi32>
    %350 = arith.addi %285, %349 : vector<8x8xi32>
    %c0_i32_99 = arith.constant 0 : i32
    %351 = vector.broadcast %c0_i32_99 : i32 to vector<8x8xi32>
    %352 = arith.cmpi sge, %350, %351 : vector<8x8xi32>
    %c-2_i32_100 = arith.constant -2 : i32
    %353 = vector.broadcast %c-2_i32_100 : i32 to vector<8x8xi32>
    %354 = arith.addi %285, %353 : vector<8x8xi32>
    %c8_i32_101 = arith.constant 8 : i32
    %355 = vector.broadcast %c8_i32_101 : i32 to vector<8x8xi32>
    %356 = arith.cmpi slt, %354, %355 : vector<8x8xi32>
    %357 = arith.andi %352, %356 : vector<8x8xi1>
    %cst_102 = arith.constant 0.000000e+00 : f32
    %358 = vector.broadcast %cst_102 : f32 to vector<8x8xf32>
    %359 = arith.select %357, %348, %358 : vector<8x8xi1>, vector<8x8xf32>
    %360 = vector.broadcast %245 : f32 to vector<8x8xf32>
    %361 = arith.mulf %297, %360 : vector<8x8xf32>
    %362 = vector.broadcast %247 : f32 to vector<8x8xf32>
    %363 = arith.mulf %309, %362 : vector<8x8xf32>
    %364 = arith.addf %361, %363 : vector<8x8xf32>
    %365 = vector.broadcast %249 : f32 to vector<8x8xf32>
    %366 = arith.mulf %233, %365 : vector<8x8xf32>
    %367 = arith.addf %364, %366 : vector<8x8xf32>
    %368 = vector.broadcast %251 : f32 to vector<8x8xf32>
    %369 = arith.mulf %321, %368 : vector<8x8xf32>
    %370 = arith.addf %367, %369 : vector<8x8xf32>
    %371 = vector.broadcast %253 : f32 to vector<8x8xf32>
    %372 = arith.mulf %333, %371 : vector<8x8xf32>
    %373 = arith.addf %370, %372 : vector<8x8xf32>
    %c1_i32_103 = arith.constant 1 : i32
    %374 = tpu.dynamic_rotate %373 by %c1_i32_103 dim 0 : vector<8x8xf32>, i32 -> vector<8x8xf32>
    %c-1_i32_104 = arith.constant -1 : i32
    %375 = vector.broadcast %c-1_i32_104 : i32 to vector<8x8xi32>
    %376 = arith.addi %285, %375 : vector<8x8xi32>
    %c0_i32_105 = arith.constant 0 : i32
    %377 = vector.broadcast %c0_i32_105 : i32 to vector<8x8xi32>
    %378 = arith.cmpi sge, %376, %377 : vector<8x8xi32>
    %c-1_i32_106 = arith.constant -1 : i32
    %379 = vector.broadcast %c-1_i32_106 : i32 to vector<8x8xi32>
    %380 = arith.addi %285, %379 : vector<8x8xi32>
    %c8_i32_107 = arith.constant 8 : i32
    %381 = vector.broadcast %c8_i32_107 : i32 to vector<8x8xi32>
    %382 = arith.cmpi slt, %380, %381 : vector<8x8xi32>
    %383 = arith.andi %378, %382 : vector<8x8xi1>
    %cst_108 = arith.constant 0.000000e+00 : f32
    %384 = vector.broadcast %cst_108 : f32 to vector<8x8xf32>
    %385 = arith.select %383, %374, %384 : vector<8x8xi1>, vector<8x8xf32>
    %386 = arith.addf %359, %385 : vector<8x8xf32>
    %387 = vector.broadcast %255 : f32 to vector<8x8xf32>
    %388 = arith.mulf %297, %387 : vector<8x8xf32>
    %389 = vector.broadcast %257 : f32 to vector<8x8xf32>
    %390 = arith.mulf %309, %389 : vector<8x8xf32>
    %391 = arith.addf %388, %390 : vector<8x8xf32>
    %392 = vector.broadcast %259 : f32 to vector<8x8xf32>
    %393 = arith.mulf %233, %392 : vector<8x8xf32>
    %394 = arith.addf %391, %393 : vector<8x8xf32>
    %395 = vector.broadcast %261 : f32 to vector<8x8xf32>
    %396 = arith.mulf %321, %395 : vector<8x8xf32>
    %397 = arith.addf %394, %396 : vector<8x8xf32>
    %398 = vector.broadcast %263 : f32 to vector<8x8xf32>
    %399 = arith.mulf %333, %398 : vector<8x8xf32>
    %400 = arith.addf %397, %399 : vector<8x8xf32>
    %401 = arith.addf %386, %400 : vector<8x8xf32>
    %402 = vector.broadcast %265 : f32 to vector<8x8xf32>
    %403 = arith.mulf %297, %402 : vector<8x8xf32>
    %404 = vector.broadcast %267 : f32 to vector<8x8xf32>
    %405 = arith.mulf %309, %404 : vector<8x8xf32>
    %406 = arith.addf %403, %405 : vector<8x8xf32>
    %407 = vector.broadcast %269 : f32 to vector<8x8xf32>
    %408 = arith.mulf %233, %407 : vector<8x8xf32>
    %409 = arith.addf %406, %408 : vector<8x8xf32>
    %410 = vector.broadcast %271 : f32 to vector<8x8xf32>
    %411 = arith.mulf %321, %410 : vector<8x8xf32>
    %412 = arith.addf %409, %411 : vector<8x8xf32>
    %413 = vector.broadcast %273 : f32 to vector<8x8xf32>
    %414 = arith.mulf %333, %413 : vector<8x8xf32>
    %415 = arith.addf %412, %414 : vector<8x8xf32>
    %c7_i32_109 = arith.constant 7 : i32
    %416 = tpu.dynamic_rotate %415 by %c7_i32_109 dim 0 : vector<8x8xf32>, i32 -> vector<8x8xf32>
    %c1_i32_110 = arith.constant 1 : i32
    %417 = vector.broadcast %c1_i32_110 : i32 to vector<8x8xi32>
    %418 = arith.addi %285, %417 : vector<8x8xi32>
    %c0_i32_111 = arith.constant 0 : i32
    %419 = vector.broadcast %c0_i32_111 : i32 to vector<8x8xi32>
    %420 = arith.cmpi sge, %418, %419 : vector<8x8xi32>
    %c1_i32_112 = arith.constant 1 : i32
    %421 = vector.broadcast %c1_i32_112 : i32 to vector<8x8xi32>
    %422 = arith.addi %285, %421 : vector<8x8xi32>
    %c8_i32_113 = arith.constant 8 : i32
    %423 = vector.broadcast %c8_i32_113 : i32 to vector<8x8xi32>
    %424 = arith.cmpi slt, %422, %423 : vector<8x8xi32>
    %425 = arith.andi %420, %424 : vector<8x8xi1>
    %cst_114 = arith.constant 0.000000e+00 : f32
    %426 = vector.broadcast %cst_114 : f32 to vector<8x8xf32>
    %427 = arith.select %425, %416, %426 : vector<8x8xi1>, vector<8x8xf32>
    %428 = arith.addf %401, %427 : vector<8x8xf32>
    %429 = vector.broadcast %275 : f32 to vector<8x8xf32>
    %430 = arith.mulf %297, %429 : vector<8x8xf32>
    %431 = vector.broadcast %277 : f32 to vector<8x8xf32>
    %432 = arith.mulf %309, %431 : vector<8x8xf32>
    %433 = arith.addf %430, %432 : vector<8x8xf32>
    %434 = vector.broadcast %279 : f32 to vector<8x8xf32>
    %435 = arith.mulf %233, %434 : vector<8x8xf32>
    %436 = arith.addf %433, %435 : vector<8x8xf32>
    %437 = vector.broadcast %281 : f32 to vector<8x8xf32>
    %438 = arith.mulf %321, %437 : vector<8x8xf32>
    %439 = arith.addf %436, %438 : vector<8x8xf32>
    %440 = vector.broadcast %283 : f32 to vector<8x8xf32>
    %441 = arith.mulf %333, %440 : vector<8x8xf32>
    %442 = arith.addf %439, %441 : vector<8x8xf32>
    %c6_i32_115 = arith.constant 6 : i32
    %443 = tpu.dynamic_rotate %442 by %c6_i32_115 dim 0 : vector<8x8xf32>, i32 -> vector<8x8xf32>
    %c2_i32_116 = arith.constant 2 : i32
    %444 = vector.broadcast %c2_i32_116 : i32 to vector<8x8xi32>
    %445 = arith.addi %285, %444 : vector<8x8xi32>
    %c0_i32_117 = arith.constant 0 : i32
    %446 = vector.broadcast %c0_i32_117 : i32 to vector<8x8xi32>
    %447 = arith.cmpi sge, %445, %446 : vector<8x8xi32>
    %c2_i32_118 = arith.constant 2 : i32
    %448 = vector.broadcast %c2_i32_118 : i32 to vector<8x8xi32>
    %449 = arith.addi %285, %448 : vector<8x8xi32>
    %c8_i32_119 = arith.constant 8 : i32
    %450 = vector.broadcast %c8_i32_119 : i32 to vector<8x8xi32>
    %451 = arith.cmpi slt, %449, %450 : vector<8x8xi32>
    %452 = arith.andi %447, %451 : vector<8x8xi1>
    %cst_120 = arith.constant 0.000000e+00 : f32
    %453 = vector.broadcast %cst_120 : f32 to vector<8x8xf32>
    %454 = arith.select %452, %443, %453 : vector<8x8xi1>, vector<8x8xf32>
    %455 = arith.addf %428, %454 : vector<8x8xf32>
    %c0_121 = arith.constant 0 : index
    %c0_122 = arith.constant 0 : index
    %c0_123 = arith.constant 0 : index
    %456 = vector.load %arg5[%c0_121, %c0_122, %c0_123] : memref<2x16x8xf32, #tpu.memory_space<vmem>>, vector<1x16x8xf32>
    %457 = vector.shape_cast %456 : vector<1x16x8xf32> to vector<16x8xf32>
    %c0_124 = arith.constant 0 : index
    %c0_125 = arith.constant 0 : index
    %c0_126 = arith.constant 0 : index
    %458 = vector.load %arg6[%c0_124, %c0_125, %c0_126] : memref<2x8x16xf32, #tpu.memory_space<vmem>>, vector<1x8x16xf32>
    %459 = vector.shape_cast %458 : vector<1x8x16xf32> to vector<8x16xf32>
    %cst_127 = arith.constant dense<0.000000e+00> : vector<8x16xf32>
    %460 = tpu.matmul %455, %459, %cst_127 {dimension_numbers = #tpu.dot_dimension_numbers<[1], [0], [0], [1], [0, 0, 1, 1], [], []>} : vector<8x8xf32>, vector<8x16xf32>, vector<8x16xf32> -> vector<8x16xf32>
    %cst_128 = arith.constant dense<0.000000e+00> : vector<16x16xf32>
    %461 = tpu.matmul %457, %460, %cst_128 {dimension_numbers = #tpu.dot_dimension_numbers<[1], [0], [0], [1], [0, 0, 1, 1], [], []>} : vector<16x8xf32>, vector<8x16xf32>, vector<16x16xf32> -> vector<16x16xf32>
    %462 = arith.addf %227, %461 : vector<16x16xf32>
    %c1_129 = arith.constant 1 : index
    %c0_130 = arith.constant 0 : index
    %c0_131 = arith.constant 0 : index
    %463 = vector.load %arg3[%c1_129, %c0_130, %c0_131] : memref<2x8x16xf32, #tpu.memory_space<vmem>>, vector<1x8x16xf32>
    %464 = vector.shape_cast %463 : vector<1x8x16xf32> to vector<8x16xf32>
    %c0_132 = arith.constant 0 : index
    %c0_133 = arith.constant 0 : index
    %c0_134 = arith.constant 0 : index
    %465 = vector.load %arg4[%c0_132, %c0_133, %c0_134] : memref<2x16x8xf32, #tpu.memory_space<vmem>>, vector<1x16x8xf32>
    %466 = vector.shape_cast %465 : vector<1x16x8xf32> to vector<16x8xf32>
    %cst_135 = arith.constant dense<0.000000e+00> : vector<16x8xf32>
    %467 = tpu.matmul %1, %466, %cst_135 {dimension_numbers = #tpu.dot_dimension_numbers<[1], [0], [0], [1], [0, 0, 1, 1], [], []>} : vector<16x16xf32>, vector<16x8xf32>, vector<16x8xf32> -> vector<16x8xf32>
    %cst_136 = arith.constant dense<0.000000e+00> : vector<8x8xf32>
    %468 = tpu.matmul %464, %467, %cst_136 {dimension_numbers = #tpu.dot_dimension_numbers<[1], [0], [0], [1], [0, 0, 1, 1], [], []>} : vector<8x16xf32>, vector<16x8xf32>, vector<8x8xf32> -> vector<8x8xf32>
    %469 = arith.index_cast %arg1 : i32 to index
    %c25 = arith.constant 25 : index
    %470 = memref.load %arg9[%469, %c25] : memref<4x100xf32, #tpu.memory_space<smem>>
    %471 = arith.index_cast %arg1 : i32 to index
    %c26 = arith.constant 26 : index
    %472 = memref.load %arg9[%471, %c26] : memref<4x100xf32, #tpu.memory_space<smem>>
    %473 = arith.index_cast %arg1 : i32 to index
    %c27 = arith.constant 27 : index
    %474 = memref.load %arg9[%473, %c27] : memref<4x100xf32, #tpu.memory_space<smem>>
    %475 = arith.index_cast %arg1 : i32 to index
    %c28 = arith.constant 28 : index
    %476 = memref.load %arg9[%475, %c28] : memref<4x100xf32, #tpu.memory_space<smem>>
    %477 = arith.index_cast %arg1 : i32 to index
    %c29 = arith.constant 29 : index
    %478 = memref.load %arg9[%477, %c29] : memref<4x100xf32, #tpu.memory_space<smem>>
    %479 = arith.index_cast %arg1 : i32 to index
    %c30 = arith.constant 30 : index
    %480 = memref.load %arg9[%479, %c30] : memref<4x100xf32, #tpu.memory_space<smem>>
    %481 = arith.index_cast %arg1 : i32 to index
    %c31 = arith.constant 31 : index
    %482 = memref.load %arg9[%481, %c31] : memref<4x100xf32, #tpu.memory_space<smem>>
    %483 = arith.index_cast %arg1 : i32 to index
    %c32 = arith.constant 32 : index
    %484 = memref.load %arg9[%483, %c32] : memref<4x100xf32, #tpu.memory_space<smem>>
    %485 = arith.index_cast %arg1 : i32 to index
    %c33 = arith.constant 33 : index
    %486 = memref.load %arg9[%485, %c33] : memref<4x100xf32, #tpu.memory_space<smem>>
    %487 = arith.index_cast %arg1 : i32 to index
    %c34 = arith.constant 34 : index
    %488 = memref.load %arg9[%487, %c34] : memref<4x100xf32, #tpu.memory_space<smem>>
    %489 = arith.index_cast %arg1 : i32 to index
    %c35 = arith.constant 35 : index
    %490 = memref.load %arg9[%489, %c35] : memref<4x100xf32, #tpu.memory_space<smem>>
    %491 = arith.index_cast %arg1 : i32 to index
    %c36 = arith.constant 36 : index
    %492 = memref.load %arg9[%491, %c36] : memref<4x100xf32, #tpu.memory_space<smem>>
    %493 = arith.index_cast %arg1 : i32 to index
    %c37 = arith.constant 37 : index
    %494 = memref.load %arg9[%493, %c37] : memref<4x100xf32, #tpu.memory_space<smem>>
    %495 = arith.index_cast %arg1 : i32 to index
    %c38 = arith.constant 38 : index
    %496 = memref.load %arg9[%495, %c38] : memref<4x100xf32, #tpu.memory_space<smem>>
    %497 = arith.index_cast %arg1 : i32 to index
    %c39 = arith.constant 39 : index
    %498 = memref.load %arg9[%497, %c39] : memref<4x100xf32, #tpu.memory_space<smem>>
    %499 = arith.index_cast %arg1 : i32 to index
    %c40 = arith.constant 40 : index
    %500 = memref.load %arg9[%499, %c40] : memref<4x100xf32, #tpu.memory_space<smem>>
    %501 = arith.index_cast %arg1 : i32 to index
    %c41 = arith.constant 41 : index
    %502 = memref.load %arg9[%501, %c41] : memref<4x100xf32, #tpu.memory_space<smem>>
    %503 = arith.index_cast %arg1 : i32 to index
    %c42 = arith.constant 42 : index
    %504 = memref.load %arg9[%503, %c42] : memref<4x100xf32, #tpu.memory_space<smem>>
    %505 = arith.index_cast %arg1 : i32 to index
    %c43 = arith.constant 43 : index
    %506 = memref.load %arg9[%505, %c43] : memref<4x100xf32, #tpu.memory_space<smem>>
    %507 = arith.index_cast %arg1 : i32 to index
    %c44 = arith.constant 44 : index
    %508 = memref.load %arg9[%507, %c44] : memref<4x100xf32, #tpu.memory_space<smem>>
    %509 = arith.index_cast %arg1 : i32 to index
    %c45 = arith.constant 45 : index
    %510 = memref.load %arg9[%509, %c45] : memref<4x100xf32, #tpu.memory_space<smem>>
    %511 = arith.index_cast %arg1 : i32 to index
    %c46 = arith.constant 46 : index
    %512 = memref.load %arg9[%511, %c46] : memref<4x100xf32, #tpu.memory_space<smem>>
    %513 = arith.index_cast %arg1 : i32 to index
    %c47 = arith.constant 47 : index
    %514 = memref.load %arg9[%513, %c47] : memref<4x100xf32, #tpu.memory_space<smem>>
    %515 = arith.index_cast %arg1 : i32 to index
    %c48 = arith.constant 48 : index
    %516 = memref.load %arg9[%515, %c48] : memref<4x100xf32, #tpu.memory_space<smem>>
    %517 = arith.index_cast %arg1 : i32 to index
    %c49 = arith.constant 49 : index
    %518 = memref.load %arg9[%517, %c49] : memref<4x100xf32, #tpu.memory_space<smem>>
    %519 = tpu.iota {dimensions = array<i32: 1>} : vector<8x8xi32>
    %520 = tpu.iota {dimensions = array<i32: 0>} : vector<8x8xi32>
    %c2_i32_137 = arith.constant 2 : i32
    %521 = tpu.dynamic_rotate %468 by %c2_i32_137 dim 1 : vector<8x8xf32>, i32 -> vector<8x8xf32>
    %c-2_i32_138 = arith.constant -2 : i32
    %522 = vector.broadcast %c-2_i32_138 : i32 to vector<8x8xi32>
    %523 = arith.addi %519, %522 : vector<8x8xi32>
    %c0_i32_139 = arith.constant 0 : i32
    %524 = vector.broadcast %c0_i32_139 : i32 to vector<8x8xi32>
    %525 = arith.cmpi sge, %523, %524 : vector<8x8xi32>
    %c-2_i32_140 = arith.constant -2 : i32
    %526 = vector.broadcast %c-2_i32_140 : i32 to vector<8x8xi32>
    %527 = arith.addi %519, %526 : vector<8x8xi32>
    %c8_i32_141 = arith.constant 8 : i32
    %528 = vector.broadcast %c8_i32_141 : i32 to vector<8x8xi32>
    %529 = arith.cmpi slt, %527, %528 : vector<8x8xi32>
    %530 = arith.andi %525, %529 : vector<8x8xi1>
    %cst_142 = arith.constant 0.000000e+00 : f32
    %531 = vector.broadcast %cst_142 : f32 to vector<8x8xf32>
    %532 = arith.select %530, %521, %531 : vector<8x8xi1>, vector<8x8xf32>
    %c1_i32_143 = arith.constant 1 : i32
    %533 = tpu.dynamic_rotate %468 by %c1_i32_143 dim 1 : vector<8x8xf32>, i32 -> vector<8x8xf32>
    %c-1_i32_144 = arith.constant -1 : i32
    %534 = vector.broadcast %c-1_i32_144 : i32 to vector<8x8xi32>
    %535 = arith.addi %519, %534 : vector<8x8xi32>
    %c0_i32_145 = arith.constant 0 : i32
    %536 = vector.broadcast %c0_i32_145 : i32 to vector<8x8xi32>
    %537 = arith.cmpi sge, %535, %536 : vector<8x8xi32>
    %c-1_i32_146 = arith.constant -1 : i32
    %538 = vector.broadcast %c-1_i32_146 : i32 to vector<8x8xi32>
    %539 = arith.addi %519, %538 : vector<8x8xi32>
    %c8_i32_147 = arith.constant 8 : i32
    %540 = vector.broadcast %c8_i32_147 : i32 to vector<8x8xi32>
    %541 = arith.cmpi slt, %539, %540 : vector<8x8xi32>
    %542 = arith.andi %537, %541 : vector<8x8xi1>
    %cst_148 = arith.constant 0.000000e+00 : f32
    %543 = vector.broadcast %cst_148 : f32 to vector<8x8xf32>
    %544 = arith.select %542, %533, %543 : vector<8x8xi1>, vector<8x8xf32>
    %c7_i32_149 = arith.constant 7 : i32
    %545 = tpu.dynamic_rotate %468 by %c7_i32_149 dim 1 : vector<8x8xf32>, i32 -> vector<8x8xf32>
    %c1_i32_150 = arith.constant 1 : i32
    %546 = vector.broadcast %c1_i32_150 : i32 to vector<8x8xi32>
    %547 = arith.addi %519, %546 : vector<8x8xi32>
    %c0_i32_151 = arith.constant 0 : i32
    %548 = vector.broadcast %c0_i32_151 : i32 to vector<8x8xi32>
    %549 = arith.cmpi sge, %547, %548 : vector<8x8xi32>
    %c1_i32_152 = arith.constant 1 : i32
    %550 = vector.broadcast %c1_i32_152 : i32 to vector<8x8xi32>
    %551 = arith.addi %519, %550 : vector<8x8xi32>
    %c8_i32_153 = arith.constant 8 : i32
    %552 = vector.broadcast %c8_i32_153 : i32 to vector<8x8xi32>
    %553 = arith.cmpi slt, %551, %552 : vector<8x8xi32>
    %554 = arith.andi %549, %553 : vector<8x8xi1>
    %cst_154 = arith.constant 0.000000e+00 : f32
    %555 = vector.broadcast %cst_154 : f32 to vector<8x8xf32>
    %556 = arith.select %554, %545, %555 : vector<8x8xi1>, vector<8x8xf32>
    %c6_i32_155 = arith.constant 6 : i32
    %557 = tpu.dynamic_rotate %468 by %c6_i32_155 dim 1 : vector<8x8xf32>, i32 -> vector<8x8xf32>
    %c2_i32_156 = arith.constant 2 : i32
    %558 = vector.broadcast %c2_i32_156 : i32 to vector<8x8xi32>
    %559 = arith.addi %519, %558 : vector<8x8xi32>
    %c0_i32_157 = arith.constant 0 : i32
    %560 = vector.broadcast %c0_i32_157 : i32 to vector<8x8xi32>
    %561 = arith.cmpi sge, %559, %560 : vector<8x8xi32>
    %c2_i32_158 = arith.constant 2 : i32
    %562 = vector.broadcast %c2_i32_158 : i32 to vector<8x8xi32>
    %563 = arith.addi %519, %562 : vector<8x8xi32>
    %c8_i32_159 = arith.constant 8 : i32
    %564 = vector.broadcast %c8_i32_159 : i32 to vector<8x8xi32>
    %565 = arith.cmpi slt, %563, %564 : vector<8x8xi32>
    %566 = arith.andi %561, %565 : vector<8x8xi1>
    %cst_160 = arith.constant 0.000000e+00 : f32
    %567 = vector.broadcast %cst_160 : f32 to vector<8x8xf32>
    %568 = arith.select %566, %557, %567 : vector<8x8xi1>, vector<8x8xf32>
    %569 = vector.broadcast %470 : f32 to vector<8x8xf32>
    %570 = arith.mulf %532, %569 : vector<8x8xf32>
    %571 = vector.broadcast %472 : f32 to vector<8x8xf32>
    %572 = arith.mulf %544, %571 : vector<8x8xf32>
    %573 = arith.addf %570, %572 : vector<8x8xf32>
    %574 = vector.broadcast %474 : f32 to vector<8x8xf32>
    %575 = arith.mulf %468, %574 : vector<8x8xf32>
    %576 = arith.addf %573, %575 : vector<8x8xf32>
    %577 = vector.broadcast %476 : f32 to vector<8x8xf32>
    %578 = arith.mulf %556, %577 : vector<8x8xf32>
    %579 = arith.addf %576, %578 : vector<8x8xf32>
    %580 = vector.broadcast %478 : f32 to vector<8x8xf32>
    %581 = arith.mulf %568, %580 : vector<8x8xf32>
    %582 = arith.addf %579, %581 : vector<8x8xf32>
    %c2_i32_161 = arith.constant 2 : i32
    %583 = tpu.dynamic_rotate %582 by %c2_i32_161 dim 0 : vector<8x8xf32>, i32 -> vector<8x8xf32>
    %c-2_i32_162 = arith.constant -2 : i32
    %584 = vector.broadcast %c-2_i32_162 : i32 to vector<8x8xi32>
    %585 = arith.addi %520, %584 : vector<8x8xi32>
    %c0_i32_163 = arith.constant 0 : i32
    %586 = vector.broadcast %c0_i32_163 : i32 to vector<8x8xi32>
    %587 = arith.cmpi sge, %585, %586 : vector<8x8xi32>
    %c-2_i32_164 = arith.constant -2 : i32
    %588 = vector.broadcast %c-2_i32_164 : i32 to vector<8x8xi32>
    %589 = arith.addi %520, %588 : vector<8x8xi32>
    %c8_i32_165 = arith.constant 8 : i32
    %590 = vector.broadcast %c8_i32_165 : i32 to vector<8x8xi32>
    %591 = arith.cmpi slt, %589, %590 : vector<8x8xi32>
    %592 = arith.andi %587, %591 : vector<8x8xi1>
    %cst_166 = arith.constant 0.000000e+00 : f32
    %593 = vector.broadcast %cst_166 : f32 to vector<8x8xf32>
    %594 = arith.select %592, %583, %593 : vector<8x8xi1>, vector<8x8xf32>
    %595 = vector.broadcast %480 : f32 to vector<8x8xf32>
    %596 = arith.mulf %532, %595 : vector<8x8xf32>
    %597 = vector.broadcast %482 : f32 to vector<8x8xf32>
    %598 = arith.mulf %544, %597 : vector<8x8xf32>
    %599 = arith.addf %596, %598 : vector<8x8xf32>
    %600 = vector.broadcast %484 : f32 to vector<8x8xf32>
    %601 = arith.mulf %468, %600 : vector<8x8xf32>
    %602 = arith.addf %599, %601 : vector<8x8xf32>
    %603 = vector.broadcast %486 : f32 to vector<8x8xf32>
    %604 = arith.mulf %556, %603 : vector<8x8xf32>
    %605 = arith.addf %602, %604 : vector<8x8xf32>
    %606 = vector.broadcast %488 : f32 to vector<8x8xf32>
    %607 = arith.mulf %568, %606 : vector<8x8xf32>
    %608 = arith.addf %605, %607 : vector<8x8xf32>
    %c1_i32_167 = arith.constant 1 : i32
    %609 = tpu.dynamic_rotate %608 by %c1_i32_167 dim 0 : vector<8x8xf32>, i32 -> vector<8x8xf32>
    %c-1_i32_168 = arith.constant -1 : i32
    %610 = vector.broadcast %c-1_i32_168 : i32 to vector<8x8xi32>
    %611 = arith.addi %520, %610 : vector<8x8xi32>
    %c0_i32_169 = arith.constant 0 : i32
    %612 = vector.broadcast %c0_i32_169 : i32 to vector<8x8xi32>
    %613 = arith.cmpi sge, %611, %612 : vector<8x8xi32>
    %c-1_i32_170 = arith.constant -1 : i32
    %614 = vector.broadcast %c-1_i32_170 : i32 to vector<8x8xi32>
    %615 = arith.addi %520, %614 : vector<8x8xi32>
    %c8_i32_171 = arith.constant 8 : i32
    %616 = vector.broadcast %c8_i32_171 : i32 to vector<8x8xi32>
    %617 = arith.cmpi slt, %615, %616 : vector<8x8xi32>
    %618 = arith.andi %613, %617 : vector<8x8xi1>
    %cst_172 = arith.constant 0.000000e+00 : f32
    %619 = vector.broadcast %cst_172 : f32 to vector<8x8xf32>
    %620 = arith.select %618, %609, %619 : vector<8x8xi1>, vector<8x8xf32>
    %621 = arith.addf %594, %620 : vector<8x8xf32>
    %622 = vector.broadcast %490 : f32 to vector<8x8xf32>
    %623 = arith.mulf %532, %622 : vector<8x8xf32>
    %624 = vector.broadcast %492 : f32 to vector<8x8xf32>
    %625 = arith.mulf %544, %624 : vector<8x8xf32>
    %626 = arith.addf %623, %625 : vector<8x8xf32>
    %627 = vector.broadcast %494 : f32 to vector<8x8xf32>
    %628 = arith.mulf %468, %627 : vector<8x8xf32>
    %629 = arith.addf %626, %628 : vector<8x8xf32>
    %630 = vector.broadcast %496 : f32 to vector<8x8xf32>
    %631 = arith.mulf %556, %630 : vector<8x8xf32>
    %632 = arith.addf %629, %631 : vector<8x8xf32>
    %633 = vector.broadcast %498 : f32 to vector<8x8xf32>
    %634 = arith.mulf %568, %633 : vector<8x8xf32>
    %635 = arith.addf %632, %634 : vector<8x8xf32>
    %636 = arith.addf %621, %635 : vector<8x8xf32>
    %637 = vector.broadcast %500 : f32 to vector<8x8xf32>
    %638 = arith.mulf %532, %637 : vector<8x8xf32>
    %639 = vector.broadcast %502 : f32 to vector<8x8xf32>
    %640 = arith.mulf %544, %639 : vector<8x8xf32>
    %641 = arith.addf %638, %640 : vector<8x8xf32>
    %642 = vector.broadcast %504 : f32 to vector<8x8xf32>
    %643 = arith.mulf %468, %642 : vector<8x8xf32>
    %644 = arith.addf %641, %643 : vector<8x8xf32>
    %645 = vector.broadcast %506 : f32 to vector<8x8xf32>
    %646 = arith.mulf %556, %645 : vector<8x8xf32>
    %647 = arith.addf %644, %646 : vector<8x8xf32>
    %648 = vector.broadcast %508 : f32 to vector<8x8xf32>
    %649 = arith.mulf %568, %648 : vector<8x8xf32>
    %650 = arith.addf %647, %649 : vector<8x8xf32>
    %c7_i32_173 = arith.constant 7 : i32
    %651 = tpu.dynamic_rotate %650 by %c7_i32_173 dim 0 : vector<8x8xf32>, i32 -> vector<8x8xf32>
    %c1_i32_174 = arith.constant 1 : i32
    %652 = vector.broadcast %c1_i32_174 : i32 to vector<8x8xi32>
    %653 = arith.addi %520, %652 : vector<8x8xi32>
    %c0_i32_175 = arith.constant 0 : i32
    %654 = vector.broadcast %c0_i32_175 : i32 to vector<8x8xi32>
    %655 = arith.cmpi sge, %653, %654 : vector<8x8xi32>
    %c1_i32_176 = arith.constant 1 : i32
    %656 = vector.broadcast %c1_i32_176 : i32 to vector<8x8xi32>
    %657 = arith.addi %520, %656 : vector<8x8xi32>
    %c8_i32_177 = arith.constant 8 : i32
    %658 = vector.broadcast %c8_i32_177 : i32 to vector<8x8xi32>
    %659 = arith.cmpi slt, %657, %658 : vector<8x8xi32>
    %660 = arith.andi %655, %659 : vector<8x8xi1>
    %cst_178 = arith.constant 0.000000e+00 : f32
    %661 = vector.broadcast %cst_178 : f32 to vector<8x8xf32>
    %662 = arith.select %660, %651, %661 : vector<8x8xi1>, vector<8x8xf32>
    %663 = arith.addf %636, %662 : vector<8x8xf32>
    %664 = vector.broadcast %510 : f32 to vector<8x8xf32>
    %665 = arith.mulf %532, %664 : vector<8x8xf32>
    %666 = vector.broadcast %512 : f32 to vector<8x8xf32>
    %667 = arith.mulf %544, %666 : vector<8x8xf32>
    %668 = arith.addf %665, %667 : vector<8x8xf32>
    %669 = vector.broadcast %514 : f32 to vector<8x8xf32>
    %670 = arith.mulf %468, %669 : vector<8x8xf32>
    %671 = arith.addf %668, %670 : vector<8x8xf32>
    %672 = vector.broadcast %516 : f32 to vector<8x8xf32>
    %673 = arith.mulf %556, %672 : vector<8x8xf32>
    %674 = arith.addf %671, %673 : vector<8x8xf32>
    %675 = vector.broadcast %518 : f32 to vector<8x8xf32>
    %676 = arith.mulf %568, %675 : vector<8x8xf32>
    %677 = arith.addf %674, %676 : vector<8x8xf32>
    %c6_i32_179 = arith.constant 6 : i32
    %678 = tpu.dynamic_rotate %677 by %c6_i32_179 dim 0 : vector<8x8xf32>, i32 -> vector<8x8xf32>
    %c2_i32_180 = arith.constant 2 : i32
    %679 = vector.broadcast %c2_i32_180 : i32 to vector<8x8xi32>
    %680 = arith.addi %520, %679 : vector<8x8xi32>
    %c0_i32_181 = arith.constant 0 : i32
    %681 = vector.broadcast %c0_i32_181 : i32 to vector<8x8xi32>
    %682 = arith.cmpi sge, %680, %681 : vector<8x8xi32>
    %c2_i32_182 = arith.constant 2 : i32
    %683 = vector.broadcast %c2_i32_182 : i32 to vector<8x8xi32>
    %684 = arith.addi %520, %683 : vector<8x8xi32>
    %c8_i32_183 = arith.constant 8 : i32
    %685 = vector.broadcast %c8_i32_183 : i32 to vector<8x8xi32>
    %686 = arith.cmpi slt, %684, %685 : vector<8x8xi32>
    %687 = arith.andi %682, %686 : vector<8x8xi1>
    %cst_184 = arith.constant 0.000000e+00 : f32
    %688 = vector.broadcast %cst_184 : f32 to vector<8x8xf32>
    %689 = arith.select %687, %678, %688 : vector<8x8xi1>, vector<8x8xf32>
    %690 = arith.addf %663, %689 : vector<8x8xf32>
    %c1_185 = arith.constant 1 : index
    %c0_186 = arith.constant 0 : index
    %c0_187 = arith.constant 0 : index
    %691 = vector.load %arg5[%c1_185, %c0_186, %c0_187] : memref<2x16x8xf32, #tpu.memory_space<vmem>>, vector<1x16x8xf32>
    %692 = vector.shape_cast %691 : vector<1x16x8xf32> to vector<16x8xf32>
    %c0_188 = arith.constant 0 : index
    %c0_189 = arith.constant 0 : index
    %c0_190 = arith.constant 0 : index
    %693 = vector.load %arg6[%c0_188, %c0_189, %c0_190] : memref<2x8x16xf32, #tpu.memory_space<vmem>>, vector<1x8x16xf32>
    %694 = vector.shape_cast %693 : vector<1x8x16xf32> to vector<8x16xf32>
    %cst_191 = arith.constant dense<0.000000e+00> : vector<8x16xf32>
    %695 = tpu.matmul %690, %694, %cst_191 {dimension_numbers = #tpu.dot_dimension_numbers<[1], [0], [0], [1], [0, 0, 1, 1], [], []>} : vector<8x8xf32>, vector<8x16xf32>, vector<8x16xf32> -> vector<8x16xf32>
    %cst_192 = arith.constant dense<0.000000e+00> : vector<16x16xf32>
    %696 = tpu.matmul %692, %695, %cst_192 {dimension_numbers = #tpu.dot_dimension_numbers<[1], [0], [0], [1], [0, 0, 1, 1], [], []>} : vector<16x8xf32>, vector<8x16xf32>, vector<16x16xf32> -> vector<16x16xf32>
    %697 = arith.addf %462, %696 : vector<16x16xf32>
    %c0_193 = arith.constant 0 : index
    %c0_194 = arith.constant 0 : index
    %c0_195 = arith.constant 0 : index
    %698 = vector.load %arg3[%c0_193, %c0_194, %c0_195] : memref<2x8x16xf32, #tpu.memory_space<vmem>>, vector<1x8x16xf32>
    %699 = vector.shape_cast %698 : vector<1x8x16xf32> to vector<8x16xf32>
    %c1_196 = arith.constant 1 : index
    %c0_197 = arith.constant 0 : index
    %c0_198 = arith.constant 0 : index
    %700 = vector.load %arg4[%c1_196, %c0_197, %c0_198] : memref<2x16x8xf32, #tpu.memory_space<vmem>>, vector<1x16x8xf32>
    %701 = vector.shape_cast %700 : vector<1x16x8xf32> to vector<16x8xf32>
    %cst_199 = arith.constant dense<0.000000e+00> : vector<16x8xf32>
    %702 = tpu.matmul %1, %701, %cst_199 {dimension_numbers = #tpu.dot_dimension_numbers<[1], [0], [0], [1], [0, 0, 1, 1], [], []>} : vector<16x16xf32>, vector<16x8xf32>, vector<16x8xf32> -> vector<16x8xf32>
    %cst_200 = arith.constant dense<0.000000e+00> : vector<8x8xf32>
    %703 = tpu.matmul %699, %702, %cst_200 {dimension_numbers = #tpu.dot_dimension_numbers<[1], [0], [0], [1], [0, 0, 1, 1], [], []>} : vector<8x16xf32>, vector<16x8xf32>, vector<8x8xf32> -> vector<8x8xf32>
    %704 = arith.index_cast %arg1 : i32 to index
    %c50 = arith.constant 50 : index
    %705 = memref.load %arg9[%704, %c50] : memref<4x100xf32, #tpu.memory_space<smem>>
    %706 = arith.index_cast %arg1 : i32 to index
    %c51 = arith.constant 51 : index
    %707 = memref.load %arg9[%706, %c51] : memref<4x100xf32, #tpu.memory_space<smem>>
    %708 = arith.index_cast %arg1 : i32 to index
    %c52 = arith.constant 52 : index
    %709 = memref.load %arg9[%708, %c52] : memref<4x100xf32, #tpu.memory_space<smem>>
    %710 = arith.index_cast %arg1 : i32 to index
    %c53 = arith.constant 53 : index
    %711 = memref.load %arg9[%710, %c53] : memref<4x100xf32, #tpu.memory_space<smem>>
    %712 = arith.index_cast %arg1 : i32 to index
    %c54 = arith.constant 54 : index
    %713 = memref.load %arg9[%712, %c54] : memref<4x100xf32, #tpu.memory_space<smem>>
    %714 = arith.index_cast %arg1 : i32 to index
    %c55 = arith.constant 55 : index
    %715 = memref.load %arg9[%714, %c55] : memref<4x100xf32, #tpu.memory_space<smem>>
    %716 = arith.index_cast %arg1 : i32 to index
    %c56 = arith.constant 56 : index
    %717 = memref.load %arg9[%716, %c56] : memref<4x100xf32, #tpu.memory_space<smem>>
    %718 = arith.index_cast %arg1 : i32 to index
    %c57 = arith.constant 57 : index
    %719 = memref.load %arg9[%718, %c57] : memref<4x100xf32, #tpu.memory_space<smem>>
    %720 = arith.index_cast %arg1 : i32 to index
    %c58 = arith.constant 58 : index
    %721 = memref.load %arg9[%720, %c58] : memref<4x100xf32, #tpu.memory_space<smem>>
    %722 = arith.index_cast %arg1 : i32 to index
    %c59 = arith.constant 59 : index
    %723 = memref.load %arg9[%722, %c59] : memref<4x100xf32, #tpu.memory_space<smem>>
    %724 = arith.index_cast %arg1 : i32 to index
    %c60 = arith.constant 60 : index
    %725 = memref.load %arg9[%724, %c60] : memref<4x100xf32, #tpu.memory_space<smem>>
    %726 = arith.index_cast %arg1 : i32 to index
    %c61 = arith.constant 61 : index
    %727 = memref.load %arg9[%726, %c61] : memref<4x100xf32, #tpu.memory_space<smem>>
    %728 = arith.index_cast %arg1 : i32 to index
    %c62 = arith.constant 62 : index
    %729 = memref.load %arg9[%728, %c62] : memref<4x100xf32, #tpu.memory_space<smem>>
    %730 = arith.index_cast %arg1 : i32 to index
    %c63 = arith.constant 63 : index
    %731 = memref.load %arg9[%730, %c63] : memref<4x100xf32, #tpu.memory_space<smem>>
    %732 = arith.index_cast %arg1 : i32 to index
    %c64 = arith.constant 64 : index
    %733 = memref.load %arg9[%732, %c64] : memref<4x100xf32, #tpu.memory_space<smem>>
    %734 = arith.index_cast %arg1 : i32 to index
    %c65 = arith.constant 65 : index
    %735 = memref.load %arg9[%734, %c65] : memref<4x100xf32, #tpu.memory_space<smem>>
    %736 = arith.index_cast %arg1 : i32 to index
    %c66 = arith.constant 66 : index
    %737 = memref.load %arg9[%736, %c66] : memref<4x100xf32, #tpu.memory_space<smem>>
    %738 = arith.index_cast %arg1 : i32 to index
    %c67 = arith.constant 67 : index
    %739 = memref.load %arg9[%738, %c67] : memref<4x100xf32, #tpu.memory_space<smem>>
    %740 = arith.index_cast %arg1 : i32 to index
    %c68 = arith.constant 68 : index
    %741 = memref.load %arg9[%740, %c68] : memref<4x100xf32, #tpu.memory_space<smem>>
    %742 = arith.index_cast %arg1 : i32 to index
    %c69 = arith.constant 69 : index
    %743 = memref.load %arg9[%742, %c69] : memref<4x100xf32, #tpu.memory_space<smem>>
    %744 = arith.index_cast %arg1 : i32 to index
    %c70 = arith.constant 70 : index
    %745 = memref.load %arg9[%744, %c70] : memref<4x100xf32, #tpu.memory_space<smem>>
    %746 = arith.index_cast %arg1 : i32 to index
    %c71 = arith.constant 71 : index
    %747 = memref.load %arg9[%746, %c71] : memref<4x100xf32, #tpu.memory_space<smem>>
    %748 = arith.index_cast %arg1 : i32 to index
    %c72 = arith.constant 72 : index
    %749 = memref.load %arg9[%748, %c72] : memref<4x100xf32, #tpu.memory_space<smem>>
    %750 = arith.index_cast %arg1 : i32 to index
    %c73 = arith.constant 73 : index
    %751 = memref.load %arg9[%750, %c73] : memref<4x100xf32, #tpu.memory_space<smem>>
    %752 = arith.index_cast %arg1 : i32 to index
    %c74 = arith.constant 74 : index
    %753 = memref.load %arg9[%752, %c74] : memref<4x100xf32, #tpu.memory_space<smem>>
    %754 = tpu.iota {dimensions = array<i32: 1>} : vector<8x8xi32>
    %755 = tpu.iota {dimensions = array<i32: 0>} : vector<8x8xi32>
    %c2_i32_201 = arith.constant 2 : i32
    %756 = tpu.dynamic_rotate %703 by %c2_i32_201 dim 1 : vector<8x8xf32>, i32 -> vector<8x8xf32>
    %c-2_i32_202 = arith.constant -2 : i32
    %757 = vector.broadcast %c-2_i32_202 : i32 to vector<8x8xi32>
    %758 = arith.addi %754, %757 : vector<8x8xi32>
    %c0_i32_203 = arith.constant 0 : i32
    %759 = vector.broadcast %c0_i32_203 : i32 to vector<8x8xi32>
    %760 = arith.cmpi sge, %758, %759 : vector<8x8xi32>
    %c-2_i32_204 = arith.constant -2 : i32
    %761 = vector.broadcast %c-2_i32_204 : i32 to vector<8x8xi32>
    %762 = arith.addi %754, %761 : vector<8x8xi32>
    %c8_i32_205 = arith.constant 8 : i32
    %763 = vector.broadcast %c8_i32_205 : i32 to vector<8x8xi32>
    %764 = arith.cmpi slt, %762, %763 : vector<8x8xi32>
    %765 = arith.andi %760, %764 : vector<8x8xi1>
    %cst_206 = arith.constant 0.000000e+00 : f32
    %766 = vector.broadcast %cst_206 : f32 to vector<8x8xf32>
    %767 = arith.select %765, %756, %766 : vector<8x8xi1>, vector<8x8xf32>
    %c1_i32_207 = arith.constant 1 : i32
    %768 = tpu.dynamic_rotate %703 by %c1_i32_207 dim 1 : vector<8x8xf32>, i32 -> vector<8x8xf32>
    %c-1_i32_208 = arith.constant -1 : i32
    %769 = vector.broadcast %c-1_i32_208 : i32 to vector<8x8xi32>
    %770 = arith.addi %754, %769 : vector<8x8xi32>
    %c0_i32_209 = arith.constant 0 : i32
    %771 = vector.broadcast %c0_i32_209 : i32 to vector<8x8xi32>
    %772 = arith.cmpi sge, %770, %771 : vector<8x8xi32>
    %c-1_i32_210 = arith.constant -1 : i32
    %773 = vector.broadcast %c-1_i32_210 : i32 to vector<8x8xi32>
    %774 = arith.addi %754, %773 : vector<8x8xi32>
    %c8_i32_211 = arith.constant 8 : i32
    %775 = vector.broadcast %c8_i32_211 : i32 to vector<8x8xi32>
    %776 = arith.cmpi slt, %774, %775 : vector<8x8xi32>
    %777 = arith.andi %772, %776 : vector<8x8xi1>
    %cst_212 = arith.constant 0.000000e+00 : f32
    %778 = vector.broadcast %cst_212 : f32 to vector<8x8xf32>
    %779 = arith.select %777, %768, %778 : vector<8x8xi1>, vector<8x8xf32>
    %c7_i32_213 = arith.constant 7 : i32
    %780 = tpu.dynamic_rotate %703 by %c7_i32_213 dim 1 : vector<8x8xf32>, i32 -> vector<8x8xf32>
    %c1_i32_214 = arith.constant 1 : i32
    %781 = vector.broadcast %c1_i32_214 : i32 to vector<8x8xi32>
    %782 = arith.addi %754, %781 : vector<8x8xi32>
    %c0_i32_215 = arith.constant 0 : i32
    %783 = vector.broadcast %c0_i32_215 : i32 to vector<8x8xi32>
    %784 = arith.cmpi sge, %782, %783 : vector<8x8xi32>
    %c1_i32_216 = arith.constant 1 : i32
    %785 = vector.broadcast %c1_i32_216 : i32 to vector<8x8xi32>
    %786 = arith.addi %754, %785 : vector<8x8xi32>
    %c8_i32_217 = arith.constant 8 : i32
    %787 = vector.broadcast %c8_i32_217 : i32 to vector<8x8xi32>
    %788 = arith.cmpi slt, %786, %787 : vector<8x8xi32>
    %789 = arith.andi %784, %788 : vector<8x8xi1>
    %cst_218 = arith.constant 0.000000e+00 : f32
    %790 = vector.broadcast %cst_218 : f32 to vector<8x8xf32>
    %791 = arith.select %789, %780, %790 : vector<8x8xi1>, vector<8x8xf32>
    %c6_i32_219 = arith.constant 6 : i32
    %792 = tpu.dynamic_rotate %703 by %c6_i32_219 dim 1 : vector<8x8xf32>, i32 -> vector<8x8xf32>
    %c2_i32_220 = arith.constant 2 : i32
    %793 = vector.broadcast %c2_i32_220 : i32 to vector<8x8xi32>
    %794 = arith.addi %754, %793 : vector<8x8xi32>
    %c0_i32_221 = arith.constant 0 : i32
    %795 = vector.broadcast %c0_i32_221 : i32 to vector<8x8xi32>
    %796 = arith.cmpi sge, %794, %795 : vector<8x8xi32>
    %c2_i32_222 = arith.constant 2 : i32
    %797 = vector.broadcast %c2_i32_222 : i32 to vector<8x8xi32>
    %798 = arith.addi %754, %797 : vector<8x8xi32>
    %c8_i32_223 = arith.constant 8 : i32
    %799 = vector.broadcast %c8_i32_223 : i32 to vector<8x8xi32>
    %800 = arith.cmpi slt, %798, %799 : vector<8x8xi32>
    %801 = arith.andi %796, %800 : vector<8x8xi1>
    %cst_224 = arith.constant 0.000000e+00 : f32
    %802 = vector.broadcast %cst_224 : f32 to vector<8x8xf32>
    %803 = arith.select %801, %792, %802 : vector<8x8xi1>, vector<8x8xf32>
    %804 = vector.broadcast %705 : f32 to vector<8x8xf32>
    %805 = arith.mulf %767, %804 : vector<8x8xf32>
    %806 = vector.broadcast %707 : f32 to vector<8x8xf32>
    %807 = arith.mulf %779, %806 : vector<8x8xf32>
    %808 = arith.addf %805, %807 : vector<8x8xf32>
    %809 = vector.broadcast %709 : f32 to vector<8x8xf32>
    %810 = arith.mulf %703, %809 : vector<8x8xf32>
    %811 = arith.addf %808, %810 : vector<8x8xf32>
    %812 = vector.broadcast %711 : f32 to vector<8x8xf32>
    %813 = arith.mulf %791, %812 : vector<8x8xf32>
    %814 = arith.addf %811, %813 : vector<8x8xf32>
    %815 = vector.broadcast %713 : f32 to vector<8x8xf32>
    %816 = arith.mulf %803, %815 : vector<8x8xf32>
    %817 = arith.addf %814, %816 : vector<8x8xf32>
    %c2_i32_225 = arith.constant 2 : i32
    %818 = tpu.dynamic_rotate %817 by %c2_i32_225 dim 0 : vector<8x8xf32>, i32 -> vector<8x8xf32>
    %c-2_i32_226 = arith.constant -2 : i32
    %819 = vector.broadcast %c-2_i32_226 : i32 to vector<8x8xi32>
    %820 = arith.addi %755, %819 : vector<8x8xi32>
    %c0_i32_227 = arith.constant 0 : i32
    %821 = vector.broadcast %c0_i32_227 : i32 to vector<8x8xi32>
    %822 = arith.cmpi sge, %820, %821 : vector<8x8xi32>
    %c-2_i32_228 = arith.constant -2 : i32
    %823 = vector.broadcast %c-2_i32_228 : i32 to vector<8x8xi32>
    %824 = arith.addi %755, %823 : vector<8x8xi32>
    %c8_i32_229 = arith.constant 8 : i32
    %825 = vector.broadcast %c8_i32_229 : i32 to vector<8x8xi32>
    %826 = arith.cmpi slt, %824, %825 : vector<8x8xi32>
    %827 = arith.andi %822, %826 : vector<8x8xi1>
    %cst_230 = arith.constant 0.000000e+00 : f32
    %828 = vector.broadcast %cst_230 : f32 to vector<8x8xf32>
    %829 = arith.select %827, %818, %828 : vector<8x8xi1>, vector<8x8xf32>
    %830 = vector.broadcast %715 : f32 to vector<8x8xf32>
    %831 = arith.mulf %767, %830 : vector<8x8xf32>
    %832 = vector.broadcast %717 : f32 to vector<8x8xf32>
    %833 = arith.mulf %779, %832 : vector<8x8xf32>
    %834 = arith.addf %831, %833 : vector<8x8xf32>
    %835 = vector.broadcast %719 : f32 to vector<8x8xf32>
    %836 = arith.mulf %703, %835 : vector<8x8xf32>
    %837 = arith.addf %834, %836 : vector<8x8xf32>
    %838 = vector.broadcast %721 : f32 to vector<8x8xf32>
    %839 = arith.mulf %791, %838 : vector<8x8xf32>
    %840 = arith.addf %837, %839 : vector<8x8xf32>
    %841 = vector.broadcast %723 : f32 to vector<8x8xf32>
    %842 = arith.mulf %803, %841 : vector<8x8xf32>
    %843 = arith.addf %840, %842 : vector<8x8xf32>
    %c1_i32_231 = arith.constant 1 : i32
    %844 = tpu.dynamic_rotate %843 by %c1_i32_231 dim 0 : vector<8x8xf32>, i32 -> vector<8x8xf32>
    %c-1_i32_232 = arith.constant -1 : i32
    %845 = vector.broadcast %c-1_i32_232 : i32 to vector<8x8xi32>
    %846 = arith.addi %755, %845 : vector<8x8xi32>
    %c0_i32_233 = arith.constant 0 : i32
    %847 = vector.broadcast %c0_i32_233 : i32 to vector<8x8xi32>
    %848 = arith.cmpi sge, %846, %847 : vector<8x8xi32>
    %c-1_i32_234 = arith.constant -1 : i32
    %849 = vector.broadcast %c-1_i32_234 : i32 to vector<8x8xi32>
    %850 = arith.addi %755, %849 : vector<8x8xi32>
    %c8_i32_235 = arith.constant 8 : i32
    %851 = vector.broadcast %c8_i32_235 : i32 to vector<8x8xi32>
    %852 = arith.cmpi slt, %850, %851 : vector<8x8xi32>
    %853 = arith.andi %848, %852 : vector<8x8xi1>
    %cst_236 = arith.constant 0.000000e+00 : f32
    %854 = vector.broadcast %cst_236 : f32 to vector<8x8xf32>
    %855 = arith.select %853, %844, %854 : vector<8x8xi1>, vector<8x8xf32>
    %856 = arith.addf %829, %855 : vector<8x8xf32>
    %857 = vector.broadcast %725 : f32 to vector<8x8xf32>
    %858 = arith.mulf %767, %857 : vector<8x8xf32>
    %859 = vector.broadcast %727 : f32 to vector<8x8xf32>
    %860 = arith.mulf %779, %859 : vector<8x8xf32>
    %861 = arith.addf %858, %860 : vector<8x8xf32>
    %862 = vector.broadcast %729 : f32 to vector<8x8xf32>
    %863 = arith.mulf %703, %862 : vector<8x8xf32>
    %864 = arith.addf %861, %863 : vector<8x8xf32>
    %865 = vector.broadcast %731 : f32 to vector<8x8xf32>
    %866 = arith.mulf %791, %865 : vector<8x8xf32>
    %867 = arith.addf %864, %866 : vector<8x8xf32>
    %868 = vector.broadcast %733 : f32 to vector<8x8xf32>
    %869 = arith.mulf %803, %868 : vector<8x8xf32>
    %870 = arith.addf %867, %869 : vector<8x8xf32>
    %871 = arith.addf %856, %870 : vector<8x8xf32>
    %872 = vector.broadcast %735 : f32 to vector<8x8xf32>
    %873 = arith.mulf %767, %872 : vector<8x8xf32>
    %874 = vector.broadcast %737 : f32 to vector<8x8xf32>
    %875 = arith.mulf %779, %874 : vector<8x8xf32>
    %876 = arith.addf %873, %875 : vector<8x8xf32>
    %877 = vector.broadcast %739 : f32 to vector<8x8xf32>
    %878 = arith.mulf %703, %877 : vector<8x8xf32>
    %879 = arith.addf %876, %878 : vector<8x8xf32>
    %880 = vector.broadcast %741 : f32 to vector<8x8xf32>
    %881 = arith.mulf %791, %880 : vector<8x8xf32>
    %882 = arith.addf %879, %881 : vector<8x8xf32>
    %883 = vector.broadcast %743 : f32 to vector<8x8xf32>
    %884 = arith.mulf %803, %883 : vector<8x8xf32>
    %885 = arith.addf %882, %884 : vector<8x8xf32>
    %c7_i32_237 = arith.constant 7 : i32
    %886 = tpu.dynamic_rotate %885 by %c7_i32_237 dim 0 : vector<8x8xf32>, i32 -> vector<8x8xf32>
    %c1_i32_238 = arith.constant 1 : i32
    %887 = vector.broadcast %c1_i32_238 : i32 to vector<8x8xi32>
    %888 = arith.addi %755, %887 : vector<8x8xi32>
    %c0_i32_239 = arith.constant 0 : i32
    %889 = vector.broadcast %c0_i32_239 : i32 to vector<8x8xi32>
    %890 = arith.cmpi sge, %888, %889 : vector<8x8xi32>
    %c1_i32_240 = arith.constant 1 : i32
    %891 = vector.broadcast %c1_i32_240 : i32 to vector<8x8xi32>
    %892 = arith.addi %755, %891 : vector<8x8xi32>
    %c8_i32_241 = arith.constant 8 : i32
    %893 = vector.broadcast %c8_i32_241 : i32 to vector<8x8xi32>
    %894 = arith.cmpi slt, %892, %893 : vector<8x8xi32>
    %895 = arith.andi %890, %894 : vector<8x8xi1>
    %cst_242 = arith.constant 0.000000e+00 : f32
    %896 = vector.broadcast %cst_242 : f32 to vector<8x8xf32>
    %897 = arith.select %895, %886, %896 : vector<8x8xi1>, vector<8x8xf32>
    %898 = arith.addf %871, %897 : vector<8x8xf32>
    %899 = vector.broadcast %745 : f32 to vector<8x8xf32>
    %900 = arith.mulf %767, %899 : vector<8x8xf32>
    %901 = vector.broadcast %747 : f32 to vector<8x8xf32>
    %902 = arith.mulf %779, %901 : vector<8x8xf32>
    %903 = arith.addf %900, %902 : vector<8x8xf32>
    %904 = vector.broadcast %749 : f32 to vector<8x8xf32>
    %905 = arith.mulf %703, %904 : vector<8x8xf32>
    %906 = arith.addf %903, %905 : vector<8x8xf32>
    %907 = vector.broadcast %751 : f32 to vector<8x8xf32>
    %908 = arith.mulf %791, %907 : vector<8x8xf32>
    %909 = arith.addf %906, %908 : vector<8x8xf32>
    %910 = vector.broadcast %753 : f32 to vector<8x8xf32>
    %911 = arith.mulf %803, %910 : vector<8x8xf32>
    %912 = arith.addf %909, %911 : vector<8x8xf32>
    %c6_i32_243 = arith.constant 6 : i32
    %913 = tpu.dynamic_rotate %912 by %c6_i32_243 dim 0 : vector<8x8xf32>, i32 -> vector<8x8xf32>
    %c2_i32_244 = arith.constant 2 : i32
    %914 = vector.broadcast %c2_i32_244 : i32 to vector<8x8xi32>
    %915 = arith.addi %755, %914 : vector<8x8xi32>
    %c0_i32_245 = arith.constant 0 : i32
    %916 = vector.broadcast %c0_i32_245 : i32 to vector<8x8xi32>
    %917 = arith.cmpi sge, %915, %916 : vector<8x8xi32>
    %c2_i32_246 = arith.constant 2 : i32
    %918 = vector.broadcast %c2_i32_246 : i32 to vector<8x8xi32>
    %919 = arith.addi %755, %918 : vector<8x8xi32>
    %c8_i32_247 = arith.constant 8 : i32
    %920 = vector.broadcast %c8_i32_247 : i32 to vector<8x8xi32>
    %921 = arith.cmpi slt, %919, %920 : vector<8x8xi32>
    %922 = arith.andi %917, %921 : vector<8x8xi1>
    %cst_248 = arith.constant 0.000000e+00 : f32
    %923 = vector.broadcast %cst_248 : f32 to vector<8x8xf32>
    %924 = arith.select %922, %913, %923 : vector<8x8xi1>, vector<8x8xf32>
    %925 = arith.addf %898, %924 : vector<8x8xf32>
    %c0_249 = arith.constant 0 : index
    %c0_250 = arith.constant 0 : index
    %c0_251 = arith.constant 0 : index
    %926 = vector.load %arg5[%c0_249, %c0_250, %c0_251] : memref<2x16x8xf32, #tpu.memory_space<vmem>>, vector<1x16x8xf32>
    %927 = vector.shape_cast %926 : vector<1x16x8xf32> to vector<16x8xf32>
    %c1_252 = arith.constant 1 : index
    %c0_253 = arith.constant 0 : index
    %c0_254 = arith.constant 0 : index
    %928 = vector.load %arg6[%c1_252, %c0_253, %c0_254] : memref<2x8x16xf32, #tpu.memory_space<vmem>>, vector<1x8x16xf32>
    %929 = vector.shape_cast %928 : vector<1x8x16xf32> to vector<8x16xf32>
    %cst_255 = arith.constant dense<0.000000e+00> : vector<8x16xf32>
    %930 = tpu.matmul %925, %929, %cst_255 {dimension_numbers = #tpu.dot_dimension_numbers<[1], [0], [0], [1], [0, 0, 1, 1], [], []>} : vector<8x8xf32>, vector<8x16xf32>, vector<8x16xf32> -> vector<8x16xf32>
    %cst_256 = arith.constant dense<0.000000e+00> : vector<16x16xf32>
    %931 = tpu.matmul %927, %930, %cst_256 {dimension_numbers = #tpu.dot_dimension_numbers<[1], [0], [0], [1], [0, 0, 1, 1], [], []>} : vector<16x8xf32>, vector<8x16xf32>, vector<16x16xf32> -> vector<16x16xf32>
    %932 = arith.addf %697, %931 : vector<16x16xf32>
    %c1_257 = arith.constant 1 : index
    %c0_258 = arith.constant 0 : index
    %c0_259 = arith.constant 0 : index
    %933 = vector.load %arg3[%c1_257, %c0_258, %c0_259] : memref<2x8x16xf32, #tpu.memory_space<vmem>>, vector<1x8x16xf32>
    %934 = vector.shape_cast %933 : vector<1x8x16xf32> to vector<8x16xf32>
    %c1_260 = arith.constant 1 : index
    %c0_261 = arith.constant 0 : index
    %c0_262 = arith.constant 0 : index
    %935 = vector.load %arg4[%c1_260, %c0_261, %c0_262] : memref<2x16x8xf32, #tpu.memory_space<vmem>>, vector<1x16x8xf32>
    %936 = vector.shape_cast %935 : vector<1x16x8xf32> to vector<16x8xf32>
    %cst_263 = arith.constant dense<0.000000e+00> : vector<16x8xf32>
    %937 = tpu.matmul %1, %936, %cst_263 {dimension_numbers = #tpu.dot_dimension_numbers<[1], [0], [0], [1], [0, 0, 1, 1], [], []>} : vector<16x16xf32>, vector<16x8xf32>, vector<16x8xf32> -> vector<16x8xf32>
    %cst_264 = arith.constant dense<0.000000e+00> : vector<8x8xf32>
    %938 = tpu.matmul %934, %937, %cst_264 {dimension_numbers = #tpu.dot_dimension_numbers<[1], [0], [0], [1], [0, 0, 1, 1], [], []>} : vector<8x16xf32>, vector<16x8xf32>, vector<8x8xf32> -> vector<8x8xf32>
    %939 = arith.index_cast %arg1 : i32 to index
    %c75 = arith.constant 75 : index
    %940 = memref.load %arg9[%939, %c75] : memref<4x100xf32, #tpu.memory_space<smem>>
    %941 = arith.index_cast %arg1 : i32 to index
    %c76 = arith.constant 76 : index
    %942 = memref.load %arg9[%941, %c76] : memref<4x100xf32, #tpu.memory_space<smem>>
    %943 = arith.index_cast %arg1 : i32 to index
    %c77 = arith.constant 77 : index
    %944 = memref.load %arg9[%943, %c77] : memref<4x100xf32, #tpu.memory_space<smem>>
    %945 = arith.index_cast %arg1 : i32 to index
    %c78 = arith.constant 78 : index
    %946 = memref.load %arg9[%945, %c78] : memref<4x100xf32, #tpu.memory_space<smem>>
    %947 = arith.index_cast %arg1 : i32 to index
    %c79 = arith.constant 79 : index
    %948 = memref.load %arg9[%947, %c79] : memref<4x100xf32, #tpu.memory_space<smem>>
    %949 = arith.index_cast %arg1 : i32 to index
    %c80 = arith.constant 80 : index
    %950 = memref.load %arg9[%949, %c80] : memref<4x100xf32, #tpu.memory_space<smem>>
    %951 = arith.index_cast %arg1 : i32 to index
    %c81 = arith.constant 81 : index
    %952 = memref.load %arg9[%951, %c81] : memref<4x100xf32, #tpu.memory_space<smem>>
    %953 = arith.index_cast %arg1 : i32 to index
    %c82 = arith.constant 82 : index
    %954 = memref.load %arg9[%953, %c82] : memref<4x100xf32, #tpu.memory_space<smem>>
    %955 = arith.index_cast %arg1 : i32 to index
    %c83 = arith.constant 83 : index
    %956 = memref.load %arg9[%955, %c83] : memref<4x100xf32, #tpu.memory_space<smem>>
    %957 = arith.index_cast %arg1 : i32 to index
    %c84 = arith.constant 84 : index
    %958 = memref.load %arg9[%957, %c84] : memref<4x100xf32, #tpu.memory_space<smem>>
    %959 = arith.index_cast %arg1 : i32 to index
    %c85 = arith.constant 85 : index
    %960 = memref.load %arg9[%959, %c85] : memref<4x100xf32, #tpu.memory_space<smem>>
    %961 = arith.index_cast %arg1 : i32 to index
    %c86 = arith.constant 86 : index
    %962 = memref.load %arg9[%961, %c86] : memref<4x100xf32, #tpu.memory_space<smem>>
    %963 = arith.index_cast %arg1 : i32 to index
    %c87 = arith.constant 87 : index
    %964 = memref.load %arg9[%963, %c87] : memref<4x100xf32, #tpu.memory_space<smem>>
    %965 = arith.index_cast %arg1 : i32 to index
    %c88 = arith.constant 88 : index
    %966 = memref.load %arg9[%965, %c88] : memref<4x100xf32, #tpu.memory_space<smem>>
    %967 = arith.index_cast %arg1 : i32 to index
    %c89 = arith.constant 89 : index
    %968 = memref.load %arg9[%967, %c89] : memref<4x100xf32, #tpu.memory_space<smem>>
    %969 = arith.index_cast %arg1 : i32 to index
    %c90 = arith.constant 90 : index
    %970 = memref.load %arg9[%969, %c90] : memref<4x100xf32, #tpu.memory_space<smem>>
    %971 = arith.index_cast %arg1 : i32 to index
    %c91 = arith.constant 91 : index
    %972 = memref.load %arg9[%971, %c91] : memref<4x100xf32, #tpu.memory_space<smem>>
    %973 = arith.index_cast %arg1 : i32 to index
    %c92 = arith.constant 92 : index
    %974 = memref.load %arg9[%973, %c92] : memref<4x100xf32, #tpu.memory_space<smem>>
    %975 = arith.index_cast %arg1 : i32 to index
    %c93 = arith.constant 93 : index
    %976 = memref.load %arg9[%975, %c93] : memref<4x100xf32, #tpu.memory_space<smem>>
    %977 = arith.index_cast %arg1 : i32 to index
    %c94 = arith.constant 94 : index
    %978 = memref.load %arg9[%977, %c94] : memref<4x100xf32, #tpu.memory_space<smem>>
    %979 = arith.index_cast %arg1 : i32 to index
    %c95 = arith.constant 95 : index
    %980 = memref.load %arg9[%979, %c95] : memref<4x100xf32, #tpu.memory_space<smem>>
    %981 = arith.index_cast %arg1 : i32 to index
    %c96 = arith.constant 96 : index
    %982 = memref.load %arg9[%981, %c96] : memref<4x100xf32, #tpu.memory_space<smem>>
    %983 = arith.index_cast %arg1 : i32 to index
    %c97 = arith.constant 97 : index
    %984 = memref.load %arg9[%983, %c97] : memref<4x100xf32, #tpu.memory_space<smem>>
    %985 = arith.index_cast %arg1 : i32 to index
    %c98 = arith.constant 98 : index
    %986 = memref.load %arg9[%985, %c98] : memref<4x100xf32, #tpu.memory_space<smem>>
    %987 = arith.index_cast %arg1 : i32 to index
    %c99 = arith.constant 99 : index
    %988 = memref.load %arg9[%987, %c99] : memref<4x100xf32, #tpu.memory_space<smem>>
    %989 = tpu.iota {dimensions = array<i32: 1>} : vector<8x8xi32>
    %990 = tpu.iota {dimensions = array<i32: 0>} : vector<8x8xi32>
    %c2_i32_265 = arith.constant 2 : i32
    %991 = tpu.dynamic_rotate %938 by %c2_i32_265 dim 1 : vector<8x8xf32>, i32 -> vector<8x8xf32>
    %c-2_i32_266 = arith.constant -2 : i32
    %992 = vector.broadcast %c-2_i32_266 : i32 to vector<8x8xi32>
    %993 = arith.addi %989, %992 : vector<8x8xi32>
    %c0_i32_267 = arith.constant 0 : i32
    %994 = vector.broadcast %c0_i32_267 : i32 to vector<8x8xi32>
    %995 = arith.cmpi sge, %993, %994 : vector<8x8xi32>
    %c-2_i32_268 = arith.constant -2 : i32
    %996 = vector.broadcast %c-2_i32_268 : i32 to vector<8x8xi32>
    %997 = arith.addi %989, %996 : vector<8x8xi32>
    %c8_i32_269 = arith.constant 8 : i32
    %998 = vector.broadcast %c8_i32_269 : i32 to vector<8x8xi32>
    %999 = arith.cmpi slt, %997, %998 : vector<8x8xi32>
    %1000 = arith.andi %995, %999 : vector<8x8xi1>
    %cst_270 = arith.constant 0.000000e+00 : f32
    %1001 = vector.broadcast %cst_270 : f32 to vector<8x8xf32>
    %1002 = arith.select %1000, %991, %1001 : vector<8x8xi1>, vector<8x8xf32>
    %c1_i32_271 = arith.constant 1 : i32
    %1003 = tpu.dynamic_rotate %938 by %c1_i32_271 dim 1 : vector<8x8xf32>, i32 -> vector<8x8xf32>
    %c-1_i32_272 = arith.constant -1 : i32
    %1004 = vector.broadcast %c-1_i32_272 : i32 to vector<8x8xi32>
    %1005 = arith.addi %989, %1004 : vector<8x8xi32>
    %c0_i32_273 = arith.constant 0 : i32
    %1006 = vector.broadcast %c0_i32_273 : i32 to vector<8x8xi32>
    %1007 = arith.cmpi sge, %1005, %1006 : vector<8x8xi32>
    %c-1_i32_274 = arith.constant -1 : i32
    %1008 = vector.broadcast %c-1_i32_274 : i32 to vector<8x8xi32>
    %1009 = arith.addi %989, %1008 : vector<8x8xi32>
    %c8_i32_275 = arith.constant 8 : i32
    %1010 = vector.broadcast %c8_i32_275 : i32 to vector<8x8xi32>
    %1011 = arith.cmpi slt, %1009, %1010 : vector<8x8xi32>
    %1012 = arith.andi %1007, %1011 : vector<8x8xi1>
    %cst_276 = arith.constant 0.000000e+00 : f32
    %1013 = vector.broadcast %cst_276 : f32 to vector<8x8xf32>
    %1014 = arith.select %1012, %1003, %1013 : vector<8x8xi1>, vector<8x8xf32>
    %c7_i32_277 = arith.constant 7 : i32
    %1015 = tpu.dynamic_rotate %938 by %c7_i32_277 dim 1 : vector<8x8xf32>, i32 -> vector<8x8xf32>
    %c1_i32_278 = arith.constant 1 : i32
    %1016 = vector.broadcast %c1_i32_278 : i32 to vector<8x8xi32>
    %1017 = arith.addi %989, %1016 : vector<8x8xi32>
    %c0_i32_279 = arith.constant 0 : i32
    %1018 = vector.broadcast %c0_i32_279 : i32 to vector<8x8xi32>
    %1019 = arith.cmpi sge, %1017, %1018 : vector<8x8xi32>
    %c1_i32_280 = arith.constant 1 : i32
    %1020 = vector.broadcast %c1_i32_280 : i32 to vector<8x8xi32>
    %1021 = arith.addi %989, %1020 : vector<8x8xi32>
    %c8_i32_281 = arith.constant 8 : i32
    %1022 = vector.broadcast %c8_i32_281 : i32 to vector<8x8xi32>
    %1023 = arith.cmpi slt, %1021, %1022 : vector<8x8xi32>
    %1024 = arith.andi %1019, %1023 : vector<8x8xi1>
    %cst_282 = arith.constant 0.000000e+00 : f32
    %1025 = vector.broadcast %cst_282 : f32 to vector<8x8xf32>
    %1026 = arith.select %1024, %1015, %1025 : vector<8x8xi1>, vector<8x8xf32>
    %c6_i32_283 = arith.constant 6 : i32
    %1027 = tpu.dynamic_rotate %938 by %c6_i32_283 dim 1 : vector<8x8xf32>, i32 -> vector<8x8xf32>
    %c2_i32_284 = arith.constant 2 : i32
    %1028 = vector.broadcast %c2_i32_284 : i32 to vector<8x8xi32>
    %1029 = arith.addi %989, %1028 : vector<8x8xi32>
    %c0_i32_285 = arith.constant 0 : i32
    %1030 = vector.broadcast %c0_i32_285 : i32 to vector<8x8xi32>
    %1031 = arith.cmpi sge, %1029, %1030 : vector<8x8xi32>
    %c2_i32_286 = arith.constant 2 : i32
    %1032 = vector.broadcast %c2_i32_286 : i32 to vector<8x8xi32>
    %1033 = arith.addi %989, %1032 : vector<8x8xi32>
    %c8_i32_287 = arith.constant 8 : i32
    %1034 = vector.broadcast %c8_i32_287 : i32 to vector<8x8xi32>
    %1035 = arith.cmpi slt, %1033, %1034 : vector<8x8xi32>
    %1036 = arith.andi %1031, %1035 : vector<8x8xi1>
    %cst_288 = arith.constant 0.000000e+00 : f32
    %1037 = vector.broadcast %cst_288 : f32 to vector<8x8xf32>
    %1038 = arith.select %1036, %1027, %1037 : vector<8x8xi1>, vector<8x8xf32>
    %1039 = vector.broadcast %940 : f32 to vector<8x8xf32>
    %1040 = arith.mulf %1002, %1039 : vector<8x8xf32>
    %1041 = vector.broadcast %942 : f32 to vector<8x8xf32>
    %1042 = arith.mulf %1014, %1041 : vector<8x8xf32>
    %1043 = arith.addf %1040, %1042 : vector<8x8xf32>
    %1044 = vector.broadcast %944 : f32 to vector<8x8xf32>
    %1045 = arith.mulf %938, %1044 : vector<8x8xf32>
    %1046 = arith.addf %1043, %1045 : vector<8x8xf32>
    %1047 = vector.broadcast %946 : f32 to vector<8x8xf32>
    %1048 = arith.mulf %1026, %1047 : vector<8x8xf32>
    %1049 = arith.addf %1046, %1048 : vector<8x8xf32>
    %1050 = vector.broadcast %948 : f32 to vector<8x8xf32>
    %1051 = arith.mulf %1038, %1050 : vector<8x8xf32>
    %1052 = arith.addf %1049, %1051 : vector<8x8xf32>
    %c2_i32_289 = arith.constant 2 : i32
    %1053 = tpu.dynamic_rotate %1052 by %c2_i32_289 dim 0 : vector<8x8xf32>, i32 -> vector<8x8xf32>
    %c-2_i32_290 = arith.constant -2 : i32
    %1054 = vector.broadcast %c-2_i32_290 : i32 to vector<8x8xi32>
    %1055 = arith.addi %990, %1054 : vector<8x8xi32>
    %c0_i32_291 = arith.constant 0 : i32
    %1056 = vector.broadcast %c0_i32_291 : i32 to vector<8x8xi32>
    %1057 = arith.cmpi sge, %1055, %1056 : vector<8x8xi32>
    %c-2_i32_292 = arith.constant -2 : i32
    %1058 = vector.broadcast %c-2_i32_292 : i32 to vector<8x8xi32>
    %1059 = arith.addi %990, %1058 : vector<8x8xi32>
    %c8_i32_293 = arith.constant 8 : i32
    %1060 = vector.broadcast %c8_i32_293 : i32 to vector<8x8xi32>
    %1061 = arith.cmpi slt, %1059, %1060 : vector<8x8xi32>
    %1062 = arith.andi %1057, %1061 : vector<8x8xi1>
    %cst_294 = arith.constant 0.000000e+00 : f32
    %1063 = vector.broadcast %cst_294 : f32 to vector<8x8xf32>
    %1064 = arith.select %1062, %1053, %1063 : vector<8x8xi1>, vector<8x8xf32>
    %1065 = vector.broadcast %950 : f32 to vector<8x8xf32>
    %1066 = arith.mulf %1002, %1065 : vector<8x8xf32>
    %1067 = vector.broadcast %952 : f32 to vector<8x8xf32>
    %1068 = arith.mulf %1014, %1067 : vector<8x8xf32>
    %1069 = arith.addf %1066, %1068 : vector<8x8xf32>
    %1070 = vector.broadcast %954 : f32 to vector<8x8xf32>
    %1071 = arith.mulf %938, %1070 : vector<8x8xf32>
    %1072 = arith.addf %1069, %1071 : vector<8x8xf32>
    %1073 = vector.broadcast %956 : f32 to vector<8x8xf32>
    %1074 = arith.mulf %1026, %1073 : vector<8x8xf32>
    %1075 = arith.addf %1072, %1074 : vector<8x8xf32>
    %1076 = vector.broadcast %958 : f32 to vector<8x8xf32>
    %1077 = arith.mulf %1038, %1076 : vector<8x8xf32>
    %1078 = arith.addf %1075, %1077 : vector<8x8xf32>
    %c1_i32_295 = arith.constant 1 : i32
    %1079 = tpu.dynamic_rotate %1078 by %c1_i32_295 dim 0 : vector<8x8xf32>, i32 -> vector<8x8xf32>
    %c-1_i32_296 = arith.constant -1 : i32
    %1080 = vector.broadcast %c-1_i32_296 : i32 to vector<8x8xi32>
    %1081 = arith.addi %990, %1080 : vector<8x8xi32>
    %c0_i32_297 = arith.constant 0 : i32
    %1082 = vector.broadcast %c0_i32_297 : i32 to vector<8x8xi32>
    %1083 = arith.cmpi sge, %1081, %1082 : vector<8x8xi32>
    %c-1_i32_298 = arith.constant -1 : i32
    %1084 = vector.broadcast %c-1_i32_298 : i32 to vector<8x8xi32>
    %1085 = arith.addi %990, %1084 : vector<8x8xi32>
    %c8_i32_299 = arith.constant 8 : i32
    %1086 = vector.broadcast %c8_i32_299 : i32 to vector<8x8xi32>
    %1087 = arith.cmpi slt, %1085, %1086 : vector<8x8xi32>
    %1088 = arith.andi %1083, %1087 : vector<8x8xi1>
    %cst_300 = arith.constant 0.000000e+00 : f32
    %1089 = vector.broadcast %cst_300 : f32 to vector<8x8xf32>
    %1090 = arith.select %1088, %1079, %1089 : vector<8x8xi1>, vector<8x8xf32>
    %1091 = arith.addf %1064, %1090 : vector<8x8xf32>
    %1092 = vector.broadcast %960 : f32 to vector<8x8xf32>
    %1093 = arith.mulf %1002, %1092 : vector<8x8xf32>
    %1094 = vector.broadcast %962 : f32 to vector<8x8xf32>
    %1095 = arith.mulf %1014, %1094 : vector<8x8xf32>
    %1096 = arith.addf %1093, %1095 : vector<8x8xf32>
    %1097 = vector.broadcast %964 : f32 to vector<8x8xf32>
    %1098 = arith.mulf %938, %1097 : vector<8x8xf32>
    %1099 = arith.addf %1096, %1098 : vector<8x8xf32>
    %1100 = vector.broadcast %966 : f32 to vector<8x8xf32>
    %1101 = arith.mulf %1026, %1100 : vector<8x8xf32>
    %1102 = arith.addf %1099, %1101 : vector<8x8xf32>
    %1103 = vector.broadcast %968 : f32 to vector<8x8xf32>
    %1104 = arith.mulf %1038, %1103 : vector<8x8xf32>
    %1105 = arith.addf %1102, %1104 : vector<8x8xf32>
    %1106 = arith.addf %1091, %1105 : vector<8x8xf32>
    %1107 = vector.broadcast %970 : f32 to vector<8x8xf32>
    %1108 = arith.mulf %1002, %1107 : vector<8x8xf32>
    %1109 = vector.broadcast %972 : f32 to vector<8x8xf32>
    %1110 = arith.mulf %1014, %1109 : vector<8x8xf32>
    %1111 = arith.addf %1108, %1110 : vector<8x8xf32>
    %1112 = vector.broadcast %974 : f32 to vector<8x8xf32>
    %1113 = arith.mulf %938, %1112 : vector<8x8xf32>
    %1114 = arith.addf %1111, %1113 : vector<8x8xf32>
    %1115 = vector.broadcast %976 : f32 to vector<8x8xf32>
    %1116 = arith.mulf %1026, %1115 : vector<8x8xf32>
    %1117 = arith.addf %1114, %1116 : vector<8x8xf32>
    %1118 = vector.broadcast %978 : f32 to vector<8x8xf32>
    %1119 = arith.mulf %1038, %1118 : vector<8x8xf32>
    %1120 = arith.addf %1117, %1119 : vector<8x8xf32>
    %c7_i32_301 = arith.constant 7 : i32
    %1121 = tpu.dynamic_rotate %1120 by %c7_i32_301 dim 0 : vector<8x8xf32>, i32 -> vector<8x8xf32>
    %c1_i32_302 = arith.constant 1 : i32
    %1122 = vector.broadcast %c1_i32_302 : i32 to vector<8x8xi32>
    %1123 = arith.addi %990, %1122 : vector<8x8xi32>
    %c0_i32_303 = arith.constant 0 : i32
    %1124 = vector.broadcast %c0_i32_303 : i32 to vector<8x8xi32>
    %1125 = arith.cmpi sge, %1123, %1124 : vector<8x8xi32>
    %c1_i32_304 = arith.constant 1 : i32
    %1126 = vector.broadcast %c1_i32_304 : i32 to vector<8x8xi32>
    %1127 = arith.addi %990, %1126 : vector<8x8xi32>
    %c8_i32_305 = arith.constant 8 : i32
    %1128 = vector.broadcast %c8_i32_305 : i32 to vector<8x8xi32>
    %1129 = arith.cmpi slt, %1127, %1128 : vector<8x8xi32>
    %1130 = arith.andi %1125, %1129 : vector<8x8xi1>
    %cst_306 = arith.constant 0.000000e+00 : f32
    %1131 = vector.broadcast %cst_306 : f32 to vector<8x8xf32>
    %1132 = arith.select %1130, %1121, %1131 : vector<8x8xi1>, vector<8x8xf32>
    %1133 = arith.addf %1106, %1132 : vector<8x8xf32>
    %1134 = vector.broadcast %980 : f32 to vector<8x8xf32>
    %1135 = arith.mulf %1002, %1134 : vector<8x8xf32>
    %1136 = vector.broadcast %982 : f32 to vector<8x8xf32>
    %1137 = arith.mulf %1014, %1136 : vector<8x8xf32>
    %1138 = arith.addf %1135, %1137 : vector<8x8xf32>
    %1139 = vector.broadcast %984 : f32 to vector<8x8xf32>
    %1140 = arith.mulf %938, %1139 : vector<8x8xf32>
    %1141 = arith.addf %1138, %1140 : vector<8x8xf32>
    %1142 = vector.broadcast %986 : f32 to vector<8x8xf32>
    %1143 = arith.mulf %1026, %1142 : vector<8x8xf32>
    %1144 = arith.addf %1141, %1143 : vector<8x8xf32>
    %1145 = vector.broadcast %988 : f32 to vector<8x8xf32>
    %1146 = arith.mulf %1038, %1145 : vector<8x8xf32>
    %1147 = arith.addf %1144, %1146 : vector<8x8xf32>
    %c6_i32_307 = arith.constant 6 : i32
    %1148 = tpu.dynamic_rotate %1147 by %c6_i32_307 dim 0 : vector<8x8xf32>, i32 -> vector<8x8xf32>
    %c2_i32_308 = arith.constant 2 : i32
    %1149 = vector.broadcast %c2_i32_308 : i32 to vector<8x8xi32>
    %1150 = arith.addi %990, %1149 : vector<8x8xi32>
    %c0_i32_309 = arith.constant 0 : i32
    %1151 = vector.broadcast %c0_i32_309 : i32 to vector<8x8xi32>
    %1152 = arith.cmpi sge, %1150, %1151 : vector<8x8xi32>
    %c2_i32_310 = arith.constant 2 : i32
    %1153 = vector.broadcast %c2_i32_310 : i32 to vector<8x8xi32>
    %1154 = arith.addi %990, %1153 : vector<8x8xi32>
    %c8_i32_311 = arith.constant 8 : i32
    %1155 = vector.broadcast %c8_i32_311 : i32 to vector<8x8xi32>
    %1156 = arith.cmpi slt, %1154, %1155 : vector<8x8xi32>
    %1157 = arith.andi %1152, %1156 : vector<8x8xi1>
    %cst_312 = arith.constant 0.000000e+00 : f32
    %1158 = vector.broadcast %cst_312 : f32 to vector<8x8xf32>
    %1159 = arith.select %1157, %1148, %1158 : vector<8x8xi1>, vector<8x8xf32>
    %1160 = arith.addf %1133, %1159 : vector<8x8xf32>
    %c1_313 = arith.constant 1 : index
    %c0_314 = arith.constant 0 : index
    %c0_315 = arith.constant 0 : index
    %1161 = vector.load %arg5[%c1_313, %c0_314, %c0_315] : memref<2x16x8xf32, #tpu.memory_space<vmem>>, vector<1x16x8xf32>
    %1162 = vector.shape_cast %1161 : vector<1x16x8xf32> to vector<16x8xf32>
    %c1_316 = arith.constant 1 : index
    %c0_317 = arith.constant 0 : index
    %c0_318 = arith.constant 0 : index
    %1163 = vector.load %arg6[%c1_316, %c0_317, %c0_318] : memref<2x8x16xf32, #tpu.memory_space<vmem>>, vector<1x8x16xf32>
    %1164 = vector.shape_cast %1163 : vector<1x8x16xf32> to vector<8x16xf32>
    %cst_319 = arith.constant dense<0.000000e+00> : vector<8x16xf32>
    %1165 = tpu.matmul %1160, %1164, %cst_319 {dimension_numbers = #tpu.dot_dimension_numbers<[1], [0], [0], [1], [0, 0, 1, 1], [], []>} : vector<8x8xf32>, vector<8x16xf32>, vector<8x16xf32> -> vector<8x16xf32>
    %cst_320 = arith.constant dense<0.000000e+00> : vector<16x16xf32>
    %1166 = tpu.matmul %1162, %1165, %cst_320 {dimension_numbers = #tpu.dot_dimension_numbers<[1], [0], [0], [1], [0, 0, 1, 1], [], []>} : vector<16x8xf32>, vector<8x16xf32>, vector<16x16xf32> -> vector<16x16xf32>
    %1167 = arith.addf %932, %1166 : vector<16x16xf32>
    %c0_321 = arith.constant 0 : index
    %c0_322 = arith.constant 0 : index
    %c0_323 = arith.constant 0 : index
    %c0_324 = arith.constant 0 : index
    %1168 = vector.load %arg10[%c0_321, %c0_322, %c0_323, %c0_324] : memref<1x1x16x16xf32, #tpu.memory_space<vmem>>, vector<1x1x16x16xf32>
    %1169 = vector.shape_cast %1168 : vector<1x1x16x16xf32> to vector<16x16xf32>
    %1170 = vector.shape_cast %1167 : vector<16x16xf32> to vector<1x1x16x16xf32>
    tpu.vector_store %arg10[%c0_321, %c0_322, %c0_323, %c0_324], %1170 {strides = array<i32>} : memref<1x1x16x16xf32, #tpu.memory_space<vmem>>, vector<1x1x16x16xf32>,
    return
  }
  func.func @transform_0(%arg0: i32, %arg1: i32) -> (i32, i32, i32, i32) {
    %c0_i32 = arith.constant 0 : i32
    %c0_i32_0 = arith.constant 0 : i32
    %c0_i32_1 = arith.constant 0 : i32
    return %arg0, %arg1, %c0_i32, %c0_i32_0 : i32, i32, i32, i32
  }
  func.func @transform_1(%arg0: i32, %arg1: i32) -> (i32, i32, i32) {
    %c0_i32 = arith.constant 0 : i32
    %c0_i32_0 = arith.constant 0 : i32
    %c0_i32_1 = arith.constant 0 : i32
    %c0_i32_2 = arith.constant 0 : i32
    return %c0_i32, %c0_i32_0, %c0_i32_1 : i32, i32, i32
  }
  func.func @transform_2(%arg0: i32, %arg1: i32) -> (i32, i32, i32) {
    %c0_i32 = arith.constant 0 : i32
    %c0_i32_0 = arith.constant 0 : i32
    %c0_i32_1 = arith.constant 0 : i32
    %c0_i32_2 = arith.constant 0 : i32
    return %c0_i32, %c0_i32_0, %c0_i32_1 : i32, i32, i32
  }
  func.func @transform_3(%arg0: i32, %arg1: i32) -> (i32, i32, i32) {
    %c0_i32 = arith.constant 0 : i32
    %c0_i32_0 = arith.constant 0 : i32
    %c0_i32_1 = arith.constant 0 : i32
    %c0_i32_2 = arith.constant 0 : i32
    return %c0_i32, %c0_i32_0, %c0_i32_1 : i32, i32, i32
  }
  func.func @transform_4(%arg0: i32, %arg1: i32) -> (i32, i32, i32) {
    %c0_i32 = arith.constant 0 : i32
    %c0_i32_0 = arith.constant 0 : i32
    %c0_i32_1 = arith.constant 0 : i32
    %c0_i32_2 = arith.constant 0 : i32
    return %c0_i32, %c0_i32_0, %c0_i32_1 : i32, i32, i32
  }
  func.func @transform_5(%arg0: i32, %arg1: i32) -> (i32, i32) {
    %c0_i32 = arith.constant 0 : i32
    %c0_i32_0 = arith.constant 0 : i32
    %c0_i32_1 = arith.constant 0 : i32
    return %c0_i32, %c0_i32_0 : i32, i32
  }
  func.func @transform_6(%arg0: i32, %arg1: i32) -> i32 {
    %c0_i32 = arith.constant 0 : i32
    %c0_i32_0 = arith.constant 0 : i32
    return %c0_i32 : i32
  }
  func.func @transform_7(%arg0: i32, %arg1: i32) -> (i32, i32) {
    %c0_i32 = arith.constant 0 : i32
    %c0_i32_0 = arith.constant 0 : i32
    %c0_i32_1 = arith.constant 0 : i32
    return %c0_i32, %c0_i32_0 : i32, i32
  }
  func.func @transform_8(%arg0: i32, %arg1: i32) -> (i32, i32, i32, i32) {
    %c0_i32 = arith.constant 0 : i32
    %c0_i32_0 = arith.constant 0 : i32
    %c0_i32_1 = arith.constant 0 : i32
    return %arg0, %arg1, %c0_i32, %c0_i32_0 : i32, i32, i32, i32
  }
}

</mosaic_0001>

<llo_original>
// kernel: _lambda_.1
$region0: #{_lambda_.1}
  #allocation0 [shape = 'u32[]', space=smem, size = 0x4, offset = 0x4, fixed_abs, tag = 'smem constant byte address 0x4 - core index']
  #allocation1 [shape = 'u32[144,128]{1,0:T(1,128)}', space=vmem, size = 0x12000, scoped, tag = 'internal scratch']
  %s0 = inlined_call_operand.hbm [shape: f32[2,4,16,16], index: 0, kind: input, shape index: {}]
  %s1 = inlined_call_operand.hbm [shape: f32[2,8,16], index: 1, kind: input, shape index: {}, may-alias: {1,4}]
  %s2 = inlined_call_operand.hbm [shape: f32[2,16,8], index: 2, kind: input, shape index: {}, may-alias: {2,3}]
  %s3 = inlined_call_operand.hbm [shape: f32[2,16,8], index: 3, kind: input, shape index: {}, may-alias: {2,3}]
  %s4 = inlined_call_operand.hbm [shape: f32[2,8,16], index: 4, kind: input, shape index: {}, may-alias: {1,4}]
  %s5 = inlined_call_operand.vmem [shape: f32[4,25], index: 5, kind: input, shape index: {}]
  %s6 = inlined_call_operand.vmem [shape: f32[4], index: 6, kind: input, shape index: {}]
  %s7 = inlined_call_operand.vmem [shape: f32[4,100], index: 7, kind: input, shape index: {}]
  %s8 = inlined_call_operand.hbm [shape: f32[2,4,16,16], index: 8, kind: output, shape index: {}]
  %s9 = sld [smem:[#allocation0]]
  $region97: #{_lambda_.1} parent=0
    _
  %s11 = ssub.s32 1, %s9
  %s12 = scalar_select 0, %s11, %s9
  $region1: #{_lambda_.1} parent=0
    #allocation2 [shape = 'u8[16384]{0}', space=vmem, size = 0x4000, scoped, tag = 'input window, operand 0']
    #allocation3 [shape = 's32[2]{0}', space=sflag, size = 0x8, scoped, tag = 'scoped memory for _lambda_.1']
    #allocation4 [shape = 's32[2]{0}', space=sflag, size = 0x8, scoped, tag = 'scoped memory for _lambda_.1']
    #allocation5 [shape = 's32[2]{0}', space=sflag, size = 0x8, scoped, tag = 'scoped memory for _lambda_.1']
    #allocation6 [shape = 'u8[8192]{0}', space=vmem, size = 0x2000, scoped, tag = 'input window, operand 1, single buffered']
    #allocation7 [shape = 's32[1]{0}', space=sflag, size = 0x4, scoped, tag = 'scoped memory for _lambda_.1']
    #allocation8 [shape = 'u8[16384]{0}', space=vmem, size = 0x4000, scoped, tag = 'input window, operand 2, single buffered']
    #allocation9 [shape = 'u8[16384]{0}', space=vmem, size = 0x4000, scoped, tag = 'input window, operand 3, single buffered']
    #allocation10 [shape = 's32[1]{0}', space=sflag, size = 0x4, scoped, tag = 'scoped memory for _lambda_.1']
    #allocation11 [shape = 'u8[8192]{0}', space=vmem, size = 0x2000, scoped, tag = 'input window, operand 4, single buffered']
    #allocation12 [shape = 'u8[2048]{0}', space=smem, size = 0x800, scoped, tag = 'input window, operand 5, single buffered']
    #allocation13 [shape = 'u8[512]{0}', space=smem, size = 0x200, scoped, tag = 'input window, operand 6, single buffered']
    #allocation14 [shape = 's32[1]{0}', space=sflag, size = 0x4, scoped, tag = 'scoped memory for _lambda_.1']
    #allocation15 [shape = 'u8[2048]{0}', space=smem, size = 0x800, scoped, tag = 'input window, operand 7, single buffered']
    #allocation16 [shape = 'u8[16384]{0}', space=vmem, size = 0x4000, scoped, tag = 'output window, operand 0']
    %13 = vsyncpa [#allocation3], 0
    %s14 = scalar_lea.sflag [#allocation3], 1
    %15 = vsyncpa %s14, 0
    %16 = vsyncpa [#allocation7], 0
    %17 = vsyncpa [#allocation10], 0
    %18 = vsyncpa [#allocation5], 0
    %19 = vsyncpa [#allocation14], 0
    %20 = vsyncpa [#allocation4], 0
    %s21 = scalar_lea.sflag [#allocation4], 1
    %22 = vsyncpa %s21, 0
    loop: start=0, step=1, limit=10
    $region2: #{_lambda_.1} parent=1 // loop_pre_header
      _
    $region3: #{_lambda_.1} parent=1 // loop_header
      %s24 = sphi 0, %s28
      %p25 = scmp.ge.s32.totalorder %s24, 10
      %s31 = sphi 0, %s43
      %s32 = sphi 0, %s39
      %s33 = sphi 0, %s31
      %s34 = sphi 0, %s32
      %s35 = sphi 0, %s33
      %s36 = sphi 0, %s34
      %s48 = sphi 0, %s50
      %s51 = sphi 0, %s48
      %s52 = sphi 0, %s51
      %s68 = sphi 0, %s52
      %s72 = sphi 0, %s72
      %s74 = sphi 0, %s72
      %s75 = sphi 0, %s74
      %s89 = sphi 0, %s75
      %s93 = sphi 0, %s93
      %s95 = sphi 0, %s93
      %s96 = sphi 0, %s95
      %s110 = sphi 0, %s96
      %s114 = sphi 0, %s114
      %s116 = sphi 0, %s114
      %s117 = sphi 0, %s116
      %s131 = sphi 0, %s117
      %s135 = sphi 0, %s135
      %s137 = sphi 0, %s135
      %s138 = sphi 0, %s137
      %s152 = sphi 0, %s138
      %s156 = sphi 0, %s156
      %s158 = sphi 0, %s156
      %s159 = sphi 0, %s158
      %s173 = sphi 0, %s159
      %s177 = sphi 0, %s177
      %s179 = sphi 0, %s177
      %s180 = sphi 0, %s179
      %s194 = sphi 0, %s180
      %s198 = sphi 0, %s198
      %s200 = sphi 0, %s198
      %s201 = sphi 0, %s200
      %s215 = sphi 0, %s201
      %s223 = sphi 0, %s225
      %s226 = sphi 0, %s223
      %s227 = sphi 0, %s226
      %s243 = sphi 0, %s227
    $region4: #{_lambda_.1} parent=1 // loop_header_branch
      %27 = sbr.rel (%p25) target = $region8
    $region5: #{_lambda_.1} parent=1 // loop_body
      %s29 = ssub.s32 %s24, 1
      %s30 = ssub.s32 %s24, 2
      %s37 = sadd.s32 1, %s32
      %p38 = scmp.ge.s32.totalorder %s37, 4
      %s39 = scalar_select %p38, 0, %s37
      %s40 = sadd.s32 1, %s31
      %s41 = scalar_select %p38, %s40, %s31
      %p42 = scmp.ge.s32.totalorder %s41, 2
      %s43 = scalar_select %p42, 0, %s41
      %s44 = ssub.s32 %s31, %s43
      %s45 = ssub.s32 %s32, %s39
      %s46 = sor.u32 %s44, %s45
      %p47 = scmp.eq.s32.totalorder %s46, 0
      %s49 = sadd.s32 %s48, 1
      %s50 = scalar_select %p47, %s48, %s49
      %p53 = pneg %p47
      %p54 = scmp.eq.s32.totalorder %s24, 7
      %p55 = por %p53, %p54
      %p56 = scmp.ne.s32.totalorder %s48, %s51
      %p57 = scmp.eq.s32.totalorder %s24, 0
      %p58 = por %p56, %p57
      %p59 = scmp.ne.s32.totalorder %s48, %s51
      %p60 = scmp.eq.s32.totalorder %s29, 7
      %p61 = por %p59, %p60
      %p62 = scmp.ne.s32.totalorder %s51, %s52
      %p63 = scmp.eq.s32.totalorder %s29, 0
      %p64 = por %p62, %p63
      %p65 = scmp.ne.s32.totalorder %s51, %s52
      %p66 = scmp.eq.s32.totalorder %s30, 7
      %p67 = por %p65, %p66
      %p69 = scmp.ne.s32.totalorder %s52, %s68
      %p70 = scmp.eq.s32.totalorder %s30, 0
      %p71 = por %p69, %p70
      %s73 = sadd.s32 %s72, 1
      %p76 = scmp.eq.s32.totalorder %s24, 7
      %p77 = scmp.ne.s32.totalorder %s72, %s74
      %p78 = scmp.eq.s32.totalorder %s24, 0
      %p79 = por %p77, %p78
      %p80 = scmp.ne.s32.totalorder %s72, %s74
      %p81 = scmp.eq.s32.totalorder %s29, 7
      %p82 = por %p80, %p81
      %p83 = scmp.ne.s32.totalorder %s74, %s75
      %p84 = scmp.eq.s32.totalorder %s29, 0
      %p85 = por %p83, %p84
      %p86 = scmp.ne.s32.totalorder %s74, %s75
      %p87 = scmp.eq.s32.totalorder %s30, 7
      %p88 = por %p86, %p87
      %p90 = scmp.ne.s32.totalorder %s75, %s89
      %p91 = scmp.eq.s32.totalorder %s30, 0
      %p92 = por %p90, %p91
      %s94 = sadd.s32 %s93, 1
      %p97 = scmp.eq.s32.totalorder %s24, 7
      %p98 = scmp.ne.s32.totalorder %s93, %s95
      %p99 = scmp.eq.s32.totalorder %s24, 0
      %p100 = por %p98, %p99
      %p101 = scmp.ne.s32.totalorder %s93, %s95
      %p102 = scmp.eq.s32.totalorder %s29, 7
      %p103 = por %p101, %p102
      %p104 = scmp.ne.s32.totalorder %s95, %s96
      %p105 = scmp.eq.s32.totalorder %s29, 0
      %p106 = por %p104, %p105
      %p107 = scmp.ne.s32.totalorder %s95, %s96
      %p108 = scmp.eq.s32.totalorder %s30, 7
      %p109 = por %p107, %p108
      %p111 = scmp.ne.s32.totalorder %s96, %s110
      %p112 = scmp.eq.s32.totalorder %s30, 0
      %p113 = por %p111, %p112
      %s115 = sadd.s32 %s114, 1
      %p118 = scmp.eq.s32.totalorder %s24, 7
      %p119 = scmp.ne.s32.totalorder %s114, %s116
      %p120 = scmp.eq.s32.totalorder %s24, 0
      %p121 = por %p119, %p120
      %p122 = scmp.ne.s32.totalorder %s114, %s116
      %p123 = scmp.eq.s32.totalorder %s29, 7
      %p124 = por %p122, %p123
      %p125 = scmp.ne.s32.totalorder %s116, %s117
      %p126 = scmp.eq.s32.totalorder %s29, 0
      %p127 = por %p125, %p126
      %p128 = scmp.ne.s32.totalorder %s116, %s117
      %p129 = scmp.eq.s32.totalorder %s30, 7
      %p130 = por %p128, %p129
      %p132 = scmp.ne.s32.totalorder %s117, %s131
      %p133 = scmp.eq.s32.totalorder %s30, 0
      %p134 = por %p132, %p133
      %s136 = sadd.s32 %s135, 1
      %p139 = scmp.eq.s32.totalorder %s24, 7
      %p140 = scmp.ne.s32.totalorder %s135, %s137
      %p141 = scmp.eq.s32.totalorder %s24, 0
      %p142 = por %p140, %p141
      %p143 = scmp.ne.s32.totalorder %s135, %s137
      %p144 = scmp.eq.s32.totalorder %s29, 7
      %p145 = por %p143, %p144
      %p146 = scmp.ne.s32.totalorder %s137, %s138
      %p147 = scmp.eq.s32.totalorder %s29, 0
      %p148 = por %p146, %p147
      %p149 = scmp.ne.s32.totalorder %s137, %s138
      %p150 = scmp.eq.s32.totalorder %s30, 7
      %p151 = por %p149, %p150
      %p153 = scmp.ne.s32.totalorder %s138, %s152
      %p154 = scmp.eq.s32.totalorder %s30, 0
      %p155 = por %p153, %p154
      %s157 = sadd.s32 %s156, 1
      %p160 = scmp.eq.s32.totalorder %s24, 7
      %p161 = scmp.ne.s32.totalorder %s156, %s158
      %p162 = scmp.eq.s32.totalorder %s24, 0
      %p163 = por %p161, %p162
      %p164 = scmp.ne.s32.totalorder %s156, %s158
      %p165 = scmp.eq.s32.totalorder %s29, 7
      %p166 = por %p164, %p165
      %p167 = scmp.ne.s32.totalorder %s158, %s159
      %p168 = scmp.eq.s32.totalorder %s29, 0
      %p169 = por %p167, %p168
      %p170 = scmp.ne.s32.totalorder %s158, %s159
      %p171 = scmp.eq.s32.totalorder %s30, 7
      %p172 = por %p170, %p171
      %p174 = scmp.ne.s32.totalorder %s159, %s173
      %p175 = scmp.eq.s32.totalorder %s30, 0
      %p176 = por %p174, %p175
      %s178 = sadd.s32 %s177, 1
      %p181 = scmp.eq.s32.totalorder %s24, 7
      %p182 = scmp.ne.s32.totalorder %s177, %s179
      %p183 = scmp.eq.s32.totalorder %s24, 0
      %p184 = por %p182, %p183
      %p185 = scmp.ne.s32.totalorder %s177, %s179
      %p186 = scmp.eq.s32.totalorder %s29, 7
      %p187 = por %p185, %p186
      %p188 = scmp.ne.s32.totalorder %s179, %s180
      %p189 = scmp.eq.s32.totalorder %s29, 0
      %p190 = por %p188, %p189
      %p191 = scmp.ne.s32.totalorder %s179, %s180
      %p192 = scmp.eq.s32.totalorder %s30, 7
      %p193 = por %p191, %p192
      %p195 = scmp.ne.s32.totalorder %s180, %s194
      %p196 = scmp.eq.s32.totalorder %s30, 0
      %p197 = por %p195, %p196
      %s199 = sadd.s32 %s198, 1
      %p202 = scmp.eq.s32.totalorder %s24, 7
      %p203 = scmp.ne.s32.totalorder %s198, %s200
      %p204 = scmp.eq.s32.totalorder %s24, 0
      %p205 = por %p203, %p204
      %p206 = scmp.ne.s32.totalorder %s198, %s200
      %p207 = scmp.eq.s32.totalorder %s29, 7
      %p208 = por %p206, %p207
      %p209 = scmp.ne.s32.totalorder %s200, %s201
      %p210 = scmp.eq.s32.totalorder %s29, 0
      %p211 = por %p209, %p210
      %p212 = scmp.ne.s32.totalorder %s200, %s201
      %p213 = scmp.eq.s32.totalorder %s30, 7
      %p214 = por %p212, %p213
      %p216 = scmp.ne.s32.totalorder %s201, %s215
      %p217 = scmp.eq.s32.totalorder %s30, 0
      %p218 = por %p216, %p217
      %s219 = ssub.s32 %s31, %s43
      %s220 = ssub.s32 %s32, %s39
      %s221 = sor.u32 %s219, %s220
      %p222 = scmp.eq.s32.totalorder %s221, 0
      %s224 = sadd.s32 %s223, 1
      %s225 = scalar_select %p222, %s223, %s224
      %p228 = pneg %p222
      %p229 = scmp.eq.s32.totalorder %s24, 7
      %p230 = por %p228, %p229
      %p231 = scmp.ne.s32.totalorder %s223, %s226
      %p232 = scmp.eq.s32.totalorder %s24, 0
      %p233 = por %p231, %p232
      %p234 = scmp.ne.s32.totalorder %s223, %s226
      %p235 = scmp.eq.s32.totalorder %s29, 7
      %p236 = por %p234, %p235
      %p237 = scmp.ne.s32.totalorder %s226, %s227
      %p238 = scmp.eq.s32.totalorder %s29, 0
      %p239 = por %p237, %p238
      %p240 = scmp.ne.s32.totalorder %s226, %s227
      %p241 = scmp.eq.s32.totalorder %s30, 7
      %p242 = por %p240, %p241
      %p244 = scmp.ne.s32.totalorder %s227, %s243
      %p245 = scmp.eq.s32.totalorder %s30, 0
      %p246 = por %p244, %p245
      %p247 = scmp.le.s32.totalorder 1, %s24
      %p248 = scmp.lt.s32.totalorder %s24, 9
      %p249 = pnand %p247, %p248
      %p250 = pneg %p249
      // Predicated region
      $region9: #{_lambda_.1} parent=5 // pred_check
        _
      $region10: #{_lambda_.1} parent=5 // pred_check_branch
        %252 = sbr.rel (%p249) target = $region12
      $region11: #{_lambda_.1} parent=5 // pred_region
        %s253 = ssub.s32 %s24, 1
        // Predicated region
        $region13: #{_lambda_.1} parent=11 // pred_check
          %p254 = pneg %p85
        $region14: #{_lambda_.1} parent=11 // pred_check_branch
          %256 = sbr.rel (%p254) target = $region16
        $region15: #{_lambda_.1} parent=11 // pred_region
          %s258 = ssub.s32 256, 256
          %259 = vsyncadd [#allocation7], %s258
          %s260 = sshll.u32 [#allocation6], 4
          %s261 = int_to_ptr.vmem [resolvable:$true] %s260
          %266 = dma.hbm_to_vmem [thread:$0]  %s1, 256, %s261, [#allocation7], 128, 128, 8
        $region16: #{_lambda_.1} parent=11 // pred_fallthru
          _
        // Predicated region
        $region17: #{_lambda_.1} parent=11 // pred_check
          %p267 = pneg %p106
        $region18: #{_lambda_.1} parent=11 // pred_check_branch
          %269 = sbr.rel (%p267) target = $region20
        $region19: #{_lambda_.1} parent=11 // pred_region
          %s271 = ssub.s32 512, 512
          %272 = vsyncadd [#allocation7], %s271
          %s273 = sshll.u32 [#allocation8], 4
          %s274 = int_to_ptr.vmem [resolvable:$true] %s273
          %279 = dma.hbm_to_vmem [thread:$0]  %s2, 512, %s274, [#allocation7], 128, 128, 8
        $region20: #{_lambda_.1} parent=11 // pred_fallthru
          _
        // Predicated region
        $region21: #{_lambda_.1} parent=11 // pred_check
          %p280 = pneg %p127
        $region22: #{_lambda_.1} parent=11 // pred_check_branch
          %282 = sbr.rel (%p280) target = $region24
        $region23: #{_lambda_.1} parent=11 // pred_region
          %s284 = ssub.s32 512, 512
          %285 = vsyncadd [#allocation10], %s284
          %s286 = sshll.u32 [#allocation9], 4
          %s287 = int_to_ptr.vmem [resolvable:$true] %s286
          %292 = dma.hbm_to_vmem [thread:$0]  %s3, 512, %s287, [#allocation10], 128, 128, 8
        $region24: #{_lambda_.1} parent=11 // pred_fallthru
          _
        // Predicated region
        $region25: #{_lambda_.1} parent=11 // pred_check
          %p293 = pneg %p148
        $region26: #{_lambda_.1} parent=11 // pred_check_branch
          %295 = sbr.rel (%p293) target = $region28
        $region27: #{_lambda_.1} parent=11 // pred_region
          %s297 = ssub.s32 256, 256
          %298 = vsyncadd [#allocation10], %s297
          %s299 = sshll.u32 [#allocation11], 4
          %s300 = int_to_ptr.vmem [resolvable:$true] %s299
          %305 = dma.hbm_to_vmem [thread:$0]  %s4, 256, %s300, [#allocation10], 128, 128, 8
        $region28: #{_lambda_.1} parent=11 // pred_fallthru
          _
        // Predicated region
        $region29: #{_lambda_.1} parent=11 // pred_check
          %p306 = pneg %p169
        $region30: #{_lambda_.1} parent=11 // pred_check_branch
          %308 = sbr.rel (%p306) target = $region32
        $region31: #{_lambda_.1} parent=11 // pred_region
          %s310 = ssub.s32 64, 64
          %311 = vsyncadd [#allocation5], %s310
          %s313 = sshll.u32 %s5, 4
          %s314 = int_to_ptr.vmem [resolvable:$true] %s313
          %316 = dma.vmem_to_smem %s314, 64, [#allocation12], [#allocation5]
        $region32: #{_lambda_.1} parent=11 // pred_fallthru
          _
        // Predicated region
        $region33: #{_lambda_.1} parent=11 // pred_check
          %p317 = pneg %p190
        $region34: #{_lambda_.1} parent=11 // pred_check_branch
          %319 = sbr.rel (%p317) target = $region36
        $region35: #{_lambda_.1} parent=11 // pred_region
          %s321 = ssub.s32 16, 16
          %322 = vsyncadd [#allocation14], %s321
          %s324 = sshll.u32 %s6, 4
          %s325 = int_to_ptr.vmem [resolvable:$true] %s324
          %327 = dma.vmem_to_smem %s325, 16, [#allocation13], [#allocation14]
        $region36: #{_lambda_.1} parent=11 // pred_fallthru
          _
        // Predicated region
        $region37: #{_lambda_.1} parent=11 // pred_check
          %p328 = pneg %p211
        $region38: #{_lambda_.1} parent=11 // pred_check_branch
          %330 = sbr.rel (%p328) target = $region40
        $region39: #{_lambda_.1} parent=11 // pred_region
          %s332 = ssub.s32 64, 64
          %333 = vsyncadd [#allocation14], %s332
          %s335 = sshll.u32 %s7, 4
          %s336 = int_to_ptr.vmem [resolvable:$true] %s335
          %338 = dma.vmem_to_smem %s336, 64, [#allocation15], [#allocation14]
        $region40: #{_lambda_.1} parent=11 // pred_fallthru
          _
      $region12: #{_lambda_.1} parent=5 // pred_fallthru
        _
      %p339 = scmp.lt.s32.totalorder %s24, 8
      // Predicated region
      $region41: #{_lambda_.1} parent=5 // pred_check
        %p340 = pneg %p339
      $region42: #{_lambda_.1} parent=5 // pred_check_branch
        %342 = sbr.rel (%p340) target = $region44
      $region43: #{_lambda_.1} parent=5 // pred_region
        // Predicated region
        $region45: #{_lambda_.1} parent=43 // pred_check
          %p343 = pneg %p58
        $region46: #{_lambda_.1} parent=43 // pred_check_branch
          %345 = sbr.rel (%p343) target = $region48
        $region47: #{_lambda_.1} parent=43 // pred_region
          %s346 = sand.u32 %s48, 1
          %s347 = scalar_lea.sflag [#allocation3], %s346
          %s348 = sand.u32 %s48, 1
          %s349 = smul.addr %s348, 16
          %s350 = scalar_lea.vmem [#allocation2], %s349
          %s352 = ssub.s32 256, 256
          %353 = vsyncadd %s347, %s352
          %s354 = smul.addr %s32, 2
          %s355 = smul.addr %s31, 8
          %s356 = sadd.s32 %s354, %s355
          %s357 = smul.addr %s356, 128
          %s358 = scalar_lea.hbm %s0, %s357
          %s359 = sshll.u32 %s350, 4
          %s360 = int_to_ptr.vmem [resolvable:$true] %s359
          %365 = dma.hbm_to_vmem [thread:$0]  %s358, 256, %s360, %s347, 128, 128, 8
        $region48: #{_lambda_.1} parent=43 // pred_fallthru
          _
      $region44: #{_lambda_.1} parent=5 // pred_fallthru
        _
      %p366 = scmp.le.s32.totalorder 1, %s24
      %p367 = scmp.lt.s32.totalorder %s24, 9
      %p368 = pnand %p366, %p367
      %p369 = pneg %p368
      // Predicated region
      $region49: #{_lambda_.1} parent=5 // pred_check
        _
      $region50: #{_lambda_.1} parent=5 // pred_check_branch
        %371 = sbr.rel (%p368) target = $region52
      $region51: #{_lambda_.1} parent=5 // pred_region
        %s372 = ssub.s32 %s24, 1
        %s373 = sand.u32 %s51, 1
        %s374 = scalar_lea.sflag [#allocation3], %s373
        %s375 = sand.u32 %s51, 1
        %s376 = smul.addr %s375, 16
        %s377 = scalar_lea.vmem [#allocation2], %s376
        // Predicated region
        $region53: #{_lambda_.1} parent=51 // pred_check
          %p378 = pneg %p64
        $region54: #{_lambda_.1} parent=51 // pred_check_branch
          %380 = sbr.rel (%p378) target = $region56
        $region55: #{_lambda_.1} parent=51 // pred_region
          %381 = dma.done %s374, 256
        $region56: #{_lambda_.1} parent=51 // pred_fallthru
          _
        // Predicated region
        $region57: #{_lambda_.1} parent=51 // pred_check
          %p382 = pneg %p85
        $region58: #{_lambda_.1} parent=51 // pred_check_branch
          %384 = sbr.rel (%p382) target = $region60
        $region59: #{_lambda_.1} parent=51 // pred_region
          %385 = dma.done [#allocation7], 256
        $region60: #{_lambda_.1} parent=51 // pred_fallthru
          _
        // Predicated region
        $region61: #{_lambda_.1} parent=51 // pred_check
          %p386 = pneg %p106
        $region62: #{_lambda_.1} parent=51 // pred_check_branch
          %388 = sbr.rel (%p386) target = $region64
        $region63: #{_lambda_.1} parent=51 // pred_region
          %389 = dma.done [#allocation7], 512
        $region64: #{_lambda_.1} parent=51 // pred_fallthru
          _
        // Predicated region
        $region65: #{_lambda_.1} parent=51 // pred_check
          %p390 = pneg %p127
        $region66: #{_lambda_.1} parent=51 // pred_check_branch
          %392 = sbr.rel (%p390) target = $region68
        $region67: #{_lambda_.1} parent=51 // pred_region
          %393 = dma.done [#allocation10], 512
        $region68: #{_lambda_.1} parent=51 // pred_fallthru
          _
        // Predicated region
        $region69: #{_lambda_.1} parent=51 // pred_check
          %p394 = pneg %p148
        $region70: #{_lambda_.1} parent=51 // pred_check_branch
          %396 = sbr.rel (%p394) target = $region72
        $region71: #{_lambda_.1} parent=51 // pred_region
          %397 = dma.done [#allocation10], 256
        $region72: #{_lambda_.1} parent=51 // pred_fallthru
          _
        // Predicated region
        $region73: #{_lambda_.1} parent=51 // pred_check
          %p398 = pneg %p169
        $region74: #{_lambda_.1} parent=51 // pred_check_branch
          %400 = sbr.rel (%p398) target = $region76
        $region75: #{_lambda_.1} parent=51 // pred_region
          %401 = dma.done [#allocation5], 64
        $region76: #{_lambda_.1} parent=51 // pred_fallthru
          _
        // Predicated region
        $region77: #{_lambda_.1} parent=51 // pred_check
          %p402 = pneg %p190
        $region78: #{_lambda_.1} parent=51 // pred_check_branch
          %404 = sbr.rel (%p402) target = $region80
        $region79: #{_lambda_.1} parent=51 // pred_region
          %405 = dma.done [#allocation14], 16
        $region80: #{_lambda_.1} parent=51 // pred_fallthru
          _
        // Predicated region
        $region81: #{_lambda_.1} parent=51 // pred_check
          %p406 = pneg %p211
        $region82: #{_lambda_.1} parent=51 // pred_check_branch
          %408 = sbr.rel (%p406) target = $region84
        $region83: #{_lambda_.1} parent=51 // pred_region
          %409 = dma.done [#allocation14], 64
        $region84: #{_lambda_.1} parent=51 // pred_fallthru
          _
        %410 = sfence
        %s411 = sand.u32 %s51, 1
        %s412 = scalar_lea.sflag [#allocation3], %s411
        %s413 = sand.u32 %s51, 1
        %s414 = smul.addr %s413, 16
        %s415 = scalar_lea.vmem [#allocation2], %s414
        %p416 = pneg %p64
        %p417 = pneg %p61
        %p418 = pneg %p85
        %p419 = pneg %p82
        %p420 = pneg %p106
        %p421 = pneg %p103
        %p422 = pneg %p127
        %p423 = pneg %p124
        %p424 = pneg %p148
        %p425 = pneg %p145
        %p426 = pneg %p169
        %p427 = pneg %p166
        %p428 = pneg %p190
        %p429 = pneg %p187
        %p430 = pneg %p211
        %p431 = pneg %p208
        %p432 = pneg %p239
        %p433 = pneg %p236
        %s434 = sand.u32 %s226, 1
        %s435 = scalar_lea.sflag [#allocation4], %s434
        %s436 = sand.u32 %s226, 1
        %s437 = smul.addr %s436, 16
        %s438 = scalar_lea.vmem [#allocation16], %s437
        %v439 = vld [vmem:[%s377] sm:$0xff]
        %v440 = vld [vmem:[%s377 + $0x8] sm:$0xff]
        %s441 = smul.u32 %s34, 128
        %s442 = sld [smem:[#allocation12 + %s441]]
        %s443 = sadd.s32 %s441, 1
        %s444 = sld [smem:[#allocation12 + %s443]]
        %s445 = sadd.s32 %s441, 2
        %s446 = sld [smem:[#allocation12 + %s445]]
        %s447 = sadd.s32 %s441, 3
        %s448 = sld [smem:[#allocation12 + %s447]]
        %s449 = sadd.s32 %s441, 4
        %s450 = sld [smem:[#allocation12 + %s449]]
        %s451 = sadd.s32 %s441, 5
        %s452 = sld [smem:[#allocation12 + %s451]]
        %s453 = sadd.s32 %s441, 6
        %s454 = sld [smem:[#allocation12 + %s453]]
        %s455 = sadd.s32 %s441, 7
        %s456 = sld [smem:[#allocation12 + %s455]]
        %s457 = sadd.s32 %s441, 8
        %s458 = sld [smem:[#allocation12 + %s457]]
        %s459 = sadd.s32 %s441, 9
        %s460 = sld [smem:[#allocation12 + %s459]]
        %s461 = sadd.s32 %s441, 10
        %s462 = sld [smem:[#allocation12 + %s461]]
        %s463 = sadd.s32 %s441, 11
        %s464 = sld [smem:[#allocation12 + %s463]]
        %s465 = sadd.s32 %s441, 12
        %s466 = sld [smem:[#allocation12 + %s465]]
        %s467 = sadd.s32 %s441, 13
        %s468 = sld [smem:[#allocation12 + %s467]]
        %s469 = sadd.s32 %s441, 14
        %s470 = sld [smem:[#allocation12 + %s469]]
        %s471 = sadd.s32 %s441, 15
        %s472 = sld [smem:[#allocation12 + %s471]]
        %s473 = sadd.s32 %s441, 16
        %s474 = sld [smem:[#allocation12 + %s473]]
        %s475 = sadd.s32 %s441, 17
        %s476 = sld [smem:[#allocation12 + %s475]]
        %s477 = sadd.s32 %s441, 18
        %s478 = sld [smem:[#allocation12 + %s477]]
        %s479 = sadd.s32 %s441, 19
        %s480 = sld [smem:[#allocation12 + %s479]]
        %s481 = sadd.s32 %s441, 20
        %s482 = sld [smem:[#allocation12 + %s481]]
        %s483 = sadd.s32 %s441, 21
        %s484 = sld [smem:[#allocation12 + %s483]]
        %s485 = sadd.s32 %s441, 22
        %s486 = sld [smem:[#allocation12 + %s485]]
        %s487 = sadd.s32 %s441, 23
        %s488 = sld [smem:[#allocation12 + %s487]]
        %s489 = sadd.s32 %s441, 24
        %s490 = sld [smem:[#allocation12 + %s489]]
        %v491 = vlaneseq
        %v492 = vand.u32 %v491, 127
        %v493 = vlaneseq
        %v494 = vshrl.u32 %v493, 7
        %v495 = vadd.s32 %v494, 8
        %vm496 = vcmask 1047680
        %497 = vrot.lane.b32.xlu0 %v439, 16
        %v498 = vpop.permute.xlu0 %497
        %v499 = vsel %vm496, %v498, %v439
        %500 = vrot.lane.b32.xlu0 %v440, 16
        %v501 = vpop.permute.xlu0 %500
        %v502 = vsel %vm496, %v501, %v440
        %503 = vrot.lane.b32.xlu0 %v499, 16
        %v504 = vpop.permute.xlu0 %503
        %505 = vrot.lane.b32.xlu0 %v502, 16
        %v506 = vpop.permute.xlu0 %505
        %v507 = vsel %vm496, %v504, %v439
        %v508 = vsel %vm496, %v506, %v440
        %v509 = vadd.s32 %v492, 4294967294
        %vm510 = vcmp.ge.s32.totalorder %v509, 0
        %vm511 = vcmp.lt.s32.totalorder %v509, 16
        %vm512 = vmand %vm510, %vm511
        %515 = vrot.lane.b32.xlu0 %v507, 114
        %v516 = vpop.permute.xlu0 %515
        %517 = vrot.lane.b32.xlu0 %v508, 114
        %v518 = vpop.permute.xlu0 %517
        %v521 = vsel %vm512, %v516, 0.0
        %v522 = vsel %vm512, %v518, 0.0
        %v523 = vadd.s32 %v492, 4294967295
        %vm524 = vcmp.ge.s32.totalorder %v523, 0
        %vm525 = vcmp.lt.s32.totalorder %v523, 16
        %vm526 = vmand %vm524, %vm525
        %527 = vrot.lane.b32.xlu0 %v507, 113
        %v528 = vpop.permute.xlu0 %527
        %529 = vrot.lane.b32.xlu0 %v508, 113
        %v530 = vpop.permute.xlu0 %529
        %v533 = vsel %vm526, %v528, 0.0
        %v534 = vsel %vm526, %v530, 0.0
        %v535 = vadd.s32 %v492, 1
        %vm536 = vcmp.ge.s32.totalorder %v535, 0
        %vm537 = vcmp.lt.s32.totalorder %v535, 16
        %vm538 = vmand %vm536, %vm537
        %539 = vrot.lane.b32.xlu0 %v507, 127
        %v540 = vpop.permute.xlu0 %539
        %541 = vrot.lane.b32.xlu0 %v508, 127
        %v542 = vpop.permute.xlu0 %541
        %v545 = vsel %vm538, %v540, 0.0
        %v546 = vsel %vm538, %v542, 0.0
        %v547 = vadd.s32 %v492, 2
        %vm548 = vcmp.ge.s32.totalorder %v547, 0
        %vm549 = vcmp.lt.s32.totalorder %v547, 16
        %vm550 = vmand %vm548, %vm549
        %551 = vrot.lane.b32.xlu0 %v507, 126
        %v552 = vpop.permute.xlu0 %551
        %553 = vrot.lane.b32.xlu0 %v508, 126
        %v554 = vpop.permute.xlu0 %553
        %v557 = vsel %vm550, %v552, 0.0
        %v558 = vsel %vm550, %v554, 0.0
        %v559 = vstv %s442
        %v560 = vmul.f32 %v521, %v559
        %v561 = vmul.f32 %v522, %v559
        %v562 = vstv %s444
        %v563 = vmul.f32 %v533, %v562
        %v564 = vmul.f32 %v534, %v562
        %v565 = vadd.f32 %v560, %v563
        %v566 = vadd.f32 %v561, %v564
        %v567 = vstv %s446
        %v568 = vmul.f32 %v439, %v567
        %v569 = vmul.f32 %v440, %v567
        %v570 = vadd.f32 %v565, %v568
        %v571 = vadd.f32 %v566, %v569
        %v572 = vstv %s448
        %v573 = vmul.f32 %v545, %v572
        %v574 = vmul.f32 %v546, %v572
        %v575 = vadd.f32 %v570, %v573
        %v576 = vadd.f32 %v571, %v574
        %v577 = vstv %s450
        %v578 = vmul.f32 %v557, %v577
        %v579 = vmul.f32 %v558, %v577
        %v580 = vadd.f32 %v575, %v578
        %v581 = vadd.f32 %v576, %v579
        %v582 = vrot.slane %v580, 6
        %v583 = vrot.slane %v581, 6
        %vm584 = vcmp.lt.s32.totalorder %v494, 2
        %v585 = vsel %vm584, %v582, %v583
        %v586 = vsel %vm584, %v583, %v582
        %v587 = vadd.s32 %v494, 4294967294
        %v588 = vadd.s32 %v495, 4294967294
        %vm589 = vcmp.ge.s32.totalorder %v587, 0
        %vm590 = vcmp.ge.s32.totalorder %v588, 0
        %vm591 = vcmp.lt.s32.totalorder %v587, 16
        %vm592 = vcmp.lt.s32.totalorder %v588, 16
        %vm593 = vmand %vm589, %vm591
        %vm594 = vmand %vm590, %vm592
        %v595 = vsel %vm593, %v586, 0.0
        %v596 = vsel %vm594, %v585, 0.0
        %v597 = vstv %s452
        %v598 = vmul.f32 %v521, %v597
        %v599 = vmul.f32 %v522, %v597
        %v600 = vstv %s454
        %v601 = vmul.f32 %v533, %v600
        %v602 = vmul.f32 %v534, %v600
        %v603 = vadd.f32 %v598, %v601
        %v604 = vadd.f32 %v599, %v602
        %v605 = vstv %s456
        %v606 = vmul.f32 %v439, %v605
        %v607 = vmul.f32 %v440, %v605
        %v608 = vadd.f32 %v603, %v606
        %v609 = vadd.f32 %v604, %v607
        %v610 = vstv %s458
        %v611 = vmul.f32 %v545, %v610
        %v612 = vmul.f32 %v546, %v610
        %v613 = vadd.f32 %v608, %v611
        %v614 = vadd.f32 %v609, %v612
        %v615 = vstv %s460
        %v616 = vmul.f32 %v557, %v615
        %v617 = vmul.f32 %v558, %v615
        %v618 = vadd.f32 %v613, %v616
        %v619 = vadd.f32 %v614, %v617
        %v620 = vrot.slane %v618, 7
        %v621 = vrot.slane %v619, 7
        %vm622 = vcmp.lt.s32.totalorder %v494, 1
        %v623 = vsel %vm622, %v620, %v621
        %v624 = vsel %vm622, %v621, %v620
        %v625 = vadd.s32 %v494, 4294967295
        %v626 = vadd.s32 %v495, 4294967295
        %vm627 = vcmp.ge.s32.totalorder %v625, 0
        %vm628 = vcmp.ge.s32.totalorder %v626, 0
        %vm629 = vcmp.lt.s32.totalorder %v625, 16
        %vm630 = vcmp.lt.s32.totalorder %v626, 16
        %vm631 = vmand %vm627, %vm629
        %vm632 = vmand %vm628, %vm630
        %v633 = vsel %vm631, %v624, 0.0
        %v634 = vsel %vm632, %v623, 0.0
        %v635 = vadd.f32 %v595, %v633
        %v636 = vadd.f32 %v596, %v634
        %v637 = vstv %s462
        %v638 = vmul.f32 %v521, %v637
        %v639 = vmul.f32 %v522, %v637
        %v640 = vstv %s464
        %v641 = vmul.f32 %v533, %v640
        %v642 = vmul.f32 %v534, %v640
        %v643 = vadd.f32 %v638, %v641
        %v644 = vadd.f32 %v639, %v642
        %v645 = vstv %s466
        %v646 = vmul.f32 %v439, %v645
        %v647 = vmul.f32 %v440, %v645
        %v648 = vadd.f32 %v643, %v646
        %v649 = vadd.f32 %v644, %v647
        %v650 = vstv %s468
        %v651 = vmul.f32 %v545, %v650
        %v652 = vmul.f32 %v546, %v650
        %v653 = vadd.f32 %v648, %v651
        %v654 = vadd.f32 %v649, %v652
        %v655 = vstv %s470
        %v656 = vmul.f32 %v557, %v655
        %v657 = vmul.f32 %v558, %v655
        %v658 = vadd.f32 %v653, %v656
        %v659 = vadd.f32 %v654, %v657
        %v660 = vadd.f32 %v635, %v658
        %v661 = vadd.f32 %v636, %v659
        %v662 = vstv %s472
        %v663 = vmul.f32 %v521, %v662
        %v664 = vmul.f32 %v522, %v662
        %v665 = vstv %s474
        %v666 = vmul.f32 %v533, %v665
        %v667 = vmul.f32 %v534, %v665
        %v668 = vadd.f32 %v663, %v666
        %v669 = vadd.f32 %v664, %v667
        %v670 = vstv %s476
        %v671 = vmul.f32 %v439, %v670
        %v672 = vmul.f32 %v440, %v670
        %v673 = vadd.f32 %v668, %v671
        %v674 = vadd.f32 %v669, %v672
        %v675 = vstv %s478
        %v676 = vmul.f32 %v545, %v675
        %v677 = vmul.f32 %v546, %v675
        %v678 = vadd.f32 %v673, %v676
        %v679 = vadd.f32 %v674, %v677
        %v680 = vstv %s480
        %v681 = vmul.f32 %v557, %v680
        %v682 = vmul.f32 %v558, %v680
        %v683 = vadd.f32 %v678, %v681
        %v684 = vadd.f32 %v679, %v682
        %v685 = vrot.slane %v683, 1
        %v686 = vrot.slane %v684, 1
        %vm687 = vcmp.lt.s32.totalorder %v494, 7
        %v688 = vsel %vm687, %v685, %v686
        %v689 = vsel %vm687, %v686, %v685
        %v690 = vadd.s32 %v494, 1
        %v691 = vadd.s32 %v495, 1
        %vm692 = vcmp.ge.s32.totalorder %v690, 0
        %vm693 = vcmp.ge.s32.totalorder %v691, 0
        %vm694 = vcmp.lt.s32.totalorder %v690, 16
        %vm695 = vcmp.lt.s32.totalorder %v691, 16
        %vm696 = vmand %vm692, %vm694
        %vm697 = vmand %vm693, %vm695
        %v698 = vsel %vm696, %v688, 0.0
        %v699 = vsel %vm697, %v689, 0.0
        %v700 = vadd.f32 %v660, %v698
        %v701 = vadd.f32 %v661, %v699
        %v702 = vstv %s482
        %v703 = vmul.f32 %v521, %v702
        %v704 = vmul.f32 %v522, %v702
        %v705 = vstv %s484
        %v706 = vmul.f32 %v533, %v705
        %v707 = vmul.f32 %v534, %v705
        %v708 = vadd.f32 %v703, %v706
        %v709 = vadd.f32 %v704, %v707
        %v710 = vstv %s486
        %v711 = vmul.f32 %v439, %v710
        %v712 = vmul.f32 %v440, %v710
        %v713 = vadd.f32 %v708, %v711
        %v714 = vadd.f32 %v709, %v712
        %v715 = vstv %s488
        %v716 = vmul.f32 %v545, %v715
        %v717 = vmul.f32 %v546, %v715
        %v718 = vadd.f32 %v713, %v716
        %v719 = vadd.f32 %v714, %v717
        %v720 = vstv %s490
        %v721 = vmul.f32 %v557, %v720
        %v722 = vmul.f32 %v558, %v720
        %v723 = vadd.f32 %v718, %v721
        %v724 = vadd.f32 %v719, %v722
        %v725 = vrot.slane %v723, 2
        %v726 = vrot.slane %v724, 2
        %vm727 = vcmp.lt.s32.totalorder %v494, 6
        %v728 = vsel %vm727, %v725, %v726
        %v729 = vsel %vm727, %v726, %v725
        %v730 = vadd.s32 %v494, 2
        %v731 = vadd.s32 %v495, 2
        %vm732 = vcmp.ge.s32.totalorder %v730, 0
        %vm733 = vcmp.ge.s32.totalorder %v731, 0
        %vm734 = vcmp.lt.s32.totalorder %v730, 16
        %vm735 = vcmp.lt.s32.totalorder %v731, 16
        %vm736 = vmand %vm732, %vm734
        %vm737 = vmand %vm733, %vm735
        %v738 = vsel %vm736, %v728, 0.0
        %v739 = vsel %vm737, %v729, 0.0
        %v740 = vadd.f32 %v700, %v738
        %v741 = vadd.f32 %v701, %v739
        %s742 = sld [smem:[#allocation13 + %s34]]
        %v743 = vstv %s742
        %v744 = vadd.f32 %v740, %v743
        %v745 = vadd.f32 %v741, %v743
        %v746 = vld [vmem:[#allocation6] sm:$0xff]
        %v747 = vld [vmem:[#allocation8] sm:$0xff]
        %v748 = vld [vmem:[#allocation8 + $0x8] sm:$0xff]
        %vm749 = vcmask 130048
        %v751 = vsel %vm749, %v439, 0
        %v754 = vsel %vm749, %v440, 0
        %756 = vmatprep.subr.mxu0 0.0
        %757 = vmatpush1.msra.mxu0 %v747
        %758 = vmatprep.subr.mxu0 0.0
        %759 = vmatpush1.msra.mxu0 %v748
        %760 = vmatprep.subr.mxu0 0.0
        %761 = vmatpush1.msra.mxu0 0.0
        %762 = vmatprep.subr.mxu0 0.0
        %763 = vmatpush1.msra.mxu0 0.0
        %764 = vmatprep.subr.mxu0 0.0
        %765 = vmatpush1.msra.mxu0 0.0
        %766 = vmatprep.subr.mxu0 0.0
        %767 = vmatpush1.msra.mxu0 0.0
        %768 = vmatprep.subr.mxu0 0.0
        %769 = vmatpush1.msra.mxu0 0.0
        %770 = vmatprep.subr.mxu0 0.0
        %771 = vmatpush1.msra.mxu0 0.0
        %772 = vmatprep.subr.mxu0 0.0
        %773 = vmatpush1.msra.mxu0 0.0
        %774 = vmatprep.subr.mxu0 0.0
        %775 = vmatpush1.msra.mxu0 0.0
        %776 = vmatprep.subr.mxu0 0.0
        %777 = vmatpush1.msra.mxu0 0.0
        %778 = vmatprep.subr.mxu0 0.0
        %779 = vmatpush1.msra.mxu0 0.0
        %780 = vmatprep.subr.mxu0 0.0
        %781 = vmatpush1.msra.mxu0 0.0
        %782 = vmatprep.subr.mxu0 0.0
        %783 = vmatpush1.msra.mxu0 0.0
        %784 = vmatprep.subr.mxu0 0.0
        %785 = vmatpush1.msra.mxu0 0.0
        %786 = vmatprep.subr.mxu0 0.0
        %787 = vmatpush1.msra.mxu0 0.0
        %788 = vmatprep.subr.mxu0 0.0
        %789 = vmatpush1.msra.mxu0 0.0
        %790 = vmatprep.subr.mxu0 0.0
        %791 = vmatpush1.msra.mxu0 0.0
        %792 = vmatprep.subr.mxu0 0.0
        %793 = vmatpush1.msra.mxu0 0.0
        %794 = vmatprep.subr.mxu0 0.0
        %795 = vmatpush1.msra.mxu0 0.0
        %796 = vmatprep.subr.mxu0 0.0
        %797 = vmatpush1.msra.mxu0 0.0
        %798 = vmatprep.subr.mxu0 0.0
        %799 = vmatpush1.msra.mxu0 0.0
        %800 = vmatprep.subr.mxu0 0.0
        %801 = vmatpush1.msra.mxu0 0.0
        %802 = vmatprep.subr.mxu0 0.0
        %803 = vmatpush1.msra.mxu0 0.0
        %804 = vmatprep.subr.mxu0 0.0
        %805 = vmatpush1.msra.mxu0 0.0
        %806 = vmatprep.subr.mxu0 0.0
        %807 = vmatpush1.msra.mxu0 0.0
        %808 = vmatprep.subr.mxu0 0.0
        %809 = vmatpush1.msra.mxu0 0.0
        %810 = vmatprep.subr.mxu0 0.0
        %811 = vmatpush1.msra.mxu0 0.0
        %812 = vmatprep.subr.mxu0 0.0
        %813 = vmatpush1.msra.mxu0 0.0
        %814 = vmatprep.subr.mxu0 0.0
        %815 = vmatpush1.msra.mxu0 0.0
        %816 = vmatprep.subr.mxu0 0.0
        %817 = vmatpush1.msra.mxu0 0.0
        %818 = vmatprep.subr.mxu0 0.0
        %819 = vmatpush1.msra.mxu0 0.0
        %820 = vmatprep.mubr.f32.mxu0 0.0
        %821 = vmatmul.mubr.f32.gmra.mrb[0].mxu0 %v751
        %v822 = vpop.f32.mrb[0].mxu0
        %v823 = vadd.f32 0.0, %v822
        %v824 = vpop.f32.mrb[0].mxu0
        %825 = vmatprep.mubr.f32.mxu0 0.0
        %826 = vmatmul.mubr.f32.gmra.mrb[0].mxu0 %v754
        %v827 = vpop.f32.mrb[0].mxu0
        %v828 = vadd.f32 0.0, %v827
        %v829 = vpop.f32.mrb[0].mxu0
        %830 = vdwg.mxu0
        %v832 = vsel %vm749, %v746, 0
        %834 = vmatprep.subr.mxu0 0.0
        %835 = vmatpush1.msra.mxu0 %v823
        %836 = vmatprep.subr.mxu0 0.0
        %837 = vmatpush1.msra.mxu0 %v828
        %838 = vmatprep.subr.mxu0 0.0
        %839 = vmatpush1.msra.mxu0 0.0
        %840 = vmatprep.subr.mxu0 0.0
        %841 = vmatpush1.msra.mxu0 0.0
        %842 = vmatprep.subr.mxu0 0.0
        %843 = vmatpush1.msra.mxu0 0.0
        %844 = vmatprep.subr.mxu0 0.0
        %845 = vmatpush1.msra.mxu0 0.0
        %846 = vmatprep.subr.mxu0 0.0
        %847 = vmatpush1.msra.mxu0 0.0
        %848 = vmatprep.subr.mxu0 0.0
        %849 = vmatpush1.msra.mxu0 0.0
        %850 = vmatprep.subr.mxu0 0.0
        %851 = vmatpush1.msra.mxu0 0.0
        %852 = vmatprep.subr.mxu0 0.0
        %853 = vmatpush1.msra.mxu0 0.0
        %854 = vmatprep.subr.mxu0 0.0
        %855 = vmatpush1.msra.mxu0 0.0
        %856 = vmatprep.subr.mxu0 0.0
        %857 = vmatpush1.msra.mxu0 0.0
        %858 = vmatprep.subr.mxu0 0.0
        %859 = vmatpush1.msra.mxu0 0.0
        %860 = vmatprep.subr.mxu0 0.0
        %861 = vmatpush1.msra.mxu0 0.0
        %862 = vmatprep.subr.mxu0 0.0
        %863 = vmatpush1.msra.mxu0 0.0
        %864 = vmatprep.subr.mxu0 0.0
        %865 = vmatpush1.msra.mxu0 0.0
        %866 = vmatprep.subr.mxu0 0.0
        %867 = vmatpush1.msra.mxu0 0.0
        %868 = vmatprep.subr.mxu0 0.0
        %869 = vmatpush1.msra.mxu0 0.0
        %870 = vmatprep.subr.mxu0 0.0
        %871 = vmatpush1.msra.mxu0 0.0
        %872 = vmatprep.subr.mxu0 0.0
        %873 = vmatpush1.msra.mxu0 0.0
        %874 = vmatprep.subr.mxu0 0.0
        %875 = vmatpush1.msra.mxu0 0.0
        %876 = vmatprep.subr.mxu0 0.0
        %877 = vmatpush1.msra.mxu0 0.0
        %878 = vmatprep.subr.mxu0 0.0
        %879 = vmatpush1.msra.mxu0 0.0
        %880 = vmatprep.subr.mxu0 0.0
        %881 = vmatpush1.msra.mxu0 0.0
        %882 = vmatprep.subr.mxu0 0.0
        %883 = vmatpush1.msra.mxu0 0.0
        %884 = vmatprep.subr.mxu0 0.0
        %885 = vmatpush1.msra.mxu0 0.0
        %886 = vmatprep.subr.mxu0 0.0
        %887 = vmatpush1.msra.mxu0 0.0
        %888 = vmatprep.subr.mxu0 0.0
        %889 = vmatpush1.msra.mxu0 0.0
        %890 = vmatprep.subr.mxu0 0.0
        %891 = vmatpush1.msra.mxu0 0.0
        %892 = vmatprep.subr.mxu0 0.0
        %893 = vmatpush1.msra.mxu0 0.0
        %894 = vmatprep.subr.mxu0 0.0
        %895 = vmatpush1.msra.mxu0 0.0
        %896 = vmatprep.subr.mxu0 0.0
        %897 = vmatpush1.msra.mxu0 0.0
        %898 = vmatprep.mubr.f32.mxu0 0.0
        %899 = vmatmul.mubr.f32.gmra.mrb[0].mxu0 %v832
        %v900 = vpop.f32.mrb[0].mxu0
        %v901 = vadd.f32 0.0, %v900
        %v902 = vpop.f32.mrb[0].mxu0
        %903 = vdwg.mxu0
        %s904 = sld [smem:[#allocation15 + %s441]]
        %s905 = sld [smem:[#allocation15 + %s443]]
        %s906 = sld [smem:[#allocation15 + %s445]]
        %s907 = sld [smem:[#allocation15 + %s447]]
        %s908 = sld [smem:[#allocation15 + %s449]]
        %s909 = sld [smem:[#allocation15 + %s451]]
        %s910 = sld [smem:[#allocation15 + %s453]]
        %s911 = sld [smem:[#allocation15 + %s455]]
        %s912 = sld [smem:[#allocation15 + %s457]]
        %s913 = sld [smem:[#allocation15 + %s459]]
        %s914 = sld [smem:[#allocation15 + %s461]]
        %s915 = sld [smem:[#allocation15 + %s463]]
        %s916 = sld [smem:[#allocation15 + %s465]]
        %s917 = sld [smem:[#allocation15 + %s467]]
        %s918 = sld [smem:[#allocation15 + %s469]]
        %s919 = sld [smem:[#allocation15 + %s471]]
        %s920 = sld [smem:[#allocation15 + %s473]]
        %s921 = sld [smem:[#allocation15 + %s475]]
        %s922 = sld [smem:[#allocation15 + %s477]]
        %s923 = sld [smem:[#allocation15 + %s479]]
        %s924 = sld [smem:[#allocation15 + %s481]]
        %s925 = sld [smem:[#allocation15 + %s483]]
        %s926 = sld [smem:[#allocation15 + %s485]]
        %s927 = sld [smem:[#allocation15 + %s487]]
        %s928 = sld [smem:[#allocation15 + %s489]]
        %vm929 = vcmask 1047616
        %930 = vrot.lane.b32.xlu0 %v901, 8
        %v931 = vpop.permute.xlu0 %930
        %v932 = vsel %vm929, %v931, %v901
        %933 = vrot.lane.b32.xlu0 %v932, 8
        %v934 = vpop.permute.xlu0 %933
        %v935 = vsel %vm929, %v934, %v901
        %vm936 = vcmp.lt.s32.totalorder %v509, 8
        %vm937 = vmand %vm510, %vm936
        %939 = vrot.lane.b32.xlu0 %v935, 122
        %v940 = vpop.permute.xlu0 %939
        %v942 = vsel %vm937, %v940, 0.0
        %vm943 = vcmp.lt.s32.totalorder %v523, 8
        %vm944 = vmand %vm524, %vm943
        %945 = vrot.lane.b32.xlu0 %v935, 121
        %v946 = vpop.permute.xlu0 %945
        %v948 = vsel %vm944, %v946, 0.0
        %vm949 = vcmp.lt.s32.totalorder %v535, 8
        %vm950 = vmand %vm536, %vm949
        %951 = vrot.lane.b32.xlu0 %v935, 127
        %v952 = vpop.permute.xlu0 %951
        %v954 = vsel %vm950, %v952, 0.0
        %vm955 = vcmp.lt.s32.totalorder %v547, 8
        %vm956 = vmand %vm548, %vm955
        %957 = vrot.lane.b32.xlu0 %v935, 126
        %v958 = vpop.permute.xlu0 %957
        %v960 = vsel %vm956, %v958, 0.0
        %v961 = vstv %s904
        %v962 = vmul.f32 %v942, %v961
        %v963 = vstv %s905
        %v964 = vmul.f32 %v948, %v963
        %v965 = vadd.f32 %v962, %v964
        %v966 = vstv %s906
        %v967 = vmul.f32 %v901, %v966
        %v968 = vadd.f32 %v965, %v967
        %v969 = vstv %s907
        %v970 = vmul.f32 %v954, %v969
        %v971 = vadd.f32 %v968, %v970
        %v972 = vstv %s908
        %v973 = vmul.f32 %v960, %v972
        %v974 = vadd.f32 %v971, %v973
        %v975 = vrot.slane %v974, 6
        %vm976 = vcmp.lt.s32.totalorder %v587, 8
        %vm977 = vmand %vm589, %vm976
        %v978 = vsel %vm977, %v975, 0.0
        %v979 = vstv %s909
        %v980 = vmul.f32 %v942, %v979
        %v981 = vstv %s910
        %v982 = vmul.f32 %v948, %v981
        %v983 = vadd.f32 %v980, %v982
        %v984 = vstv %s911
        %v985 = vmul.f32 %v901, %v984
        %v986 = vadd.f32 %v983, %v985
        %v987 = vstv %s912
        %v988 = vmul.f32 %v954, %v987
        %v989 = vadd.f32 %v986, %v988
        %v990 = vstv %s913
        %v991 = vmul.f32 %v960, %v990
        %v992 = vadd.f32 %v989, %v991
        %v993 = vrot.slane %v992, 7
        %vm994 = vcmp.lt.s32.totalorder %v625, 8
        %vm995 = vmand %vm627, %vm994
        %v996 = vsel %vm995, %v993, 0.0
        %v997 = vadd.f32 %v978, %v996
        %v998 = vstv %s914
        %v999 = vmul.f32 %v942, %v998
        %v1000 = vstv %s915
        %v1001 = vmul.f32 %v948, %v1000
        %v1002 = vadd.f32 %v999, %v1001
        %v1003 = vstv %s916
        %v1004 = vmul.f32 %v901, %v1003
        %v1005 = vadd.f32 %v1002, %v1004
        %v1006 = vstv %s917
        %v1007 = vmul.f32 %v954, %v1006
        %v1008 = vadd.f32 %v1005, %v1007
        %v1009 = vstv %s918
        %v1010 = vmul.f32 %v960, %v1009
        %v1011 = vadd.f32 %v1008, %v1010
        %v1012 = vadd.f32 %v997, %v1011
        %v1013 = vstv %s919
        %v1014 = vmul.f32 %v942, %v1013
        %v1015 = vstv %s920
        %v1016 = vmul.f32 %v948, %v1015
        %v1017 = vadd.f32 %v1014, %v1016
        %v1018 = vstv %s921
        %v1019 = vmul.f32 %v901, %v1018
        %v1020 = vadd.f32 %v1017, %v1019
        %v1021 = vstv %s922
        %v1022 = vmul.f32 %v954, %v1021
        %v1023 = vadd.f32 %v1020, %v1022
        %v1024 = vstv %s923
        %v1025 = vmul.f32 %v960, %v1024
        %v1026 = vadd.f32 %v1023, %v1025
        %v1027 = vrot.slane %v1026, 1
        %vm1028 = vcmp.lt.s32.totalorder %v690, 8
        %vm1029 = vmand %vm692, %vm1028
        %v1030 = vsel %vm1029, %v1027, 0.0
        %v1031 = vadd.f32 %v1012, %v1030
        %v1032 = vstv %s924
        %v1033 = vmul.f32 %v942, %v1032
        %v1034 = vstv %s925
        %v1035 = vmul.f32 %v948, %v1034
        %v1036 = vadd.f32 %v1033, %v1035
        %v1037 = vstv %s926
        %v1038 = vmul.f32 %v901, %v1037
        %v1039 = vadd.f32 %v1036, %v1038
        %v1040 = vstv %s927
        %v1041 = vmul.f32 %v954, %v1040
        %v1042 = vadd.f32 %v1039, %v1041
        %v1043 = vstv %s928
        %v1044 = vmul.f32 %v960, %v1043
        %v1045 = vadd.f32 %v1042, %v1044
        %v1046 = vrot.slane %v1045, 2
        %vm1047 = vcmp.lt.s32.totalorder %v730, 8
        %vm1048 = vmand %vm732, %vm1047
        %v1049 = vsel %vm1048, %v1046, 0.0
        %v1050 = vadd.f32 %v1031, %v1049
        %v1051 = vld [vmem:[#allocation9] sm:$0xff]
        %v1052 = vld [vmem:[#allocation9 + $0x8] sm:$0xff]
        %v1053 = vld [vmem:[#allocation11] sm:$0xff]
        %vm1054 = vcmask 64512
        %v1056 = vsel %vm1054, %v1050, 0
        %1058 = vmatprep.subr.mxu0 0.0
        %1059 = vmatpush1.msra.mxu0 %v1053
        %1060 = vmatprep.subr.mxu0 0.0
        %1061 = vmatpush1.msra.mxu0 0.0
        %1062 = vmatprep.subr.mxu0 0.0
        %1063 = vmatpush1.msra.mxu0 0.0
        %1064 = vmatprep.subr.mxu0 0.0
        %1065 = vmatpush1.msra.mxu0 0.0
        %1066 = vmatprep.subr.mxu0 0.0
        %1067 = vmatpush1.msra.mxu0 0.0
        %1068 = vmatprep.subr.mxu0 0.0
        %1069 = vmatpush1.msra.mxu0 0.0
        %1070 = vmatprep.subr.mxu0 0.0
        %1071 = vmatpush1.msra.mxu0 0.0
        %1072 = vmatprep.subr.mxu0 0.0
        %1073 = vmatpush1.msra.mxu0 0.0
        %1074 = vmatprep.subr.mxu0 0.0
        %1075 = vmatpush1.msra.mxu0 0.0
        %1076 = vmatprep.subr.mxu0 0.0
        %1077 = vmatpush1.msra.mxu0 0.0
        %1078 = vmatprep.subr.mxu0 0.0
        %1079 = vmatpush1.msra.mxu0 0.0
        %1080 = vmatprep.subr.mxu0 0.0
        %1081 = vmatpush1.msra.mxu0 0.0
        %1082 = vmatprep.subr.mxu0 0.0
        %1083 = vmatpush1.msra.mxu0 0.0
        %1084 = vmatprep.subr.mxu0 0.0
        %1085 = vmatpush1.msra.mxu0 0.0
        %1086 = vmatprep.subr.mxu0 0.0
        %1087 = vmatpush1.msra.mxu0 0.0
        %1088 = vmatprep.subr.mxu0 0.0
        %1089 = vmatpush1.msra.mxu0 0.0
        %1090 = vmatprep.subr.mxu0 0.0
        %1091 = vmatpush1.msra.mxu0 0.0
        %1092 = vmatprep.subr.mxu0 0.0
        %1093 = vmatpush1.msra.mxu0 0.0
        %1094 = vmatprep.subr.mxu0 0.0
        %1095 = vmatpush1.msra.mxu0 0.0
        %1096 = vmatprep.subr.mxu0 0.0
        %1097 = vmatpush1.msra.mxu0 0.0
        %1098 = vmatprep.subr.mxu0 0.0
        %1099 = vmatpush1.msra.mxu0 0.0
        %1100 = vmatprep.subr.mxu0 0.0
        %1101 = vmatpush1.msra.mxu0 0.0
        %1102 = vmatprep.subr.mxu0 0.0
        %1103 = vmatpush1.msra.mxu0 0.0
        %1104 = vmatprep.subr.mxu0 0.0
        %1105 = vmatpush1.msra.mxu0 0.0
        %1106 = vmatprep.subr.mxu0 0.0
        %1107 = vmatpush1.msra.mxu0 0.0
        %1108 = vmatprep.subr.mxu0 0.0
        %1109 = vmatpush1.msra.mxu0 0.0
        %1110 = vmatprep.subr.mxu0 0.0
        %1111 = vmatpush1.msra.mxu0 0.0
        %1112 = vmatprep.subr.mxu0 0.0
        %1113 = vmatpush1.msra.mxu0 0.0
        %1114 = vmatprep.subr.mxu0 0.0
        %1115 = vmatpush1.msra.mxu0 0.0
        %1116 = vmatprep.subr.mxu0 0.0
        %1117 = vmatpush1.msra.mxu0 0.0
        %1118 = vmatprep.subr.mxu0 0.0
        %1119 = vmatpush1.msra.mxu0 0.0
        %1120 = vmatprep.subr.mxu0 0.0
        %1121 = vmatpush1.msra.mxu0 0.0
        %1122 = vmatprep.mubr.f32.mxu0 0.0
        %1123 = vmatmul.mubr.f32.gmra.mrb[0].mxu0 %v1056
        %v1124 = vpop.f32.mrb[0].mxu0
        %v1125 = vadd.f32 0.0, %v1124
        %v1126 = vpop.f32.mrb[0].mxu0
        %1127 = vdwg.mxu0
        %v1129 = vsel %vm1054, %v1051, 0
        %v1132 = vsel %vm1054, %v1052, 0
        %1134 = vmatprep.subr.mxu0 0.0
        %1135 = vmatpush1.msra.mxu0 %v1125
        %1136 = vmatprep.subr.mxu0 0.0
        %1137 = vmatpush1.msra.mxu0 0.0
        %1138 = vmatprep.subr.mxu0 0.0
        %1139 = vmatpush1.msra.mxu0 0.0
        %1140 = vmatprep.subr.mxu0 0.0
        %1141 = vmatpush1.msra.mxu0 0.0
        %1142 = vmatprep.subr.mxu0 0.0
        %1143 = vmatpush1.msra.mxu0 0.0
        %1144 = vmatprep.subr.mxu0 0.0
        %1145 = vmatpush1.msra.mxu0 0.0
        %1146 = vmatprep.subr.mxu0 0.0
        %1147 = vmatpush1.msra.mxu0 0.0
        %1148 = vmatprep.subr.mxu0 0.0
        %1149 = vmatpush1.msra.mxu0 0.0
        %1150 = vmatprep.subr.mxu0 0.0
        %1151 = vmatpush1.msra.mxu0 0.0
        %1152 = vmatprep.subr.mxu0 0.0
        %1153 = vmatpush1.msra.mxu0 0.0
        %1154 = vmatprep.subr.mxu0 0.0
        %1155 = vmatpush1.msra.mxu0 0.0
        %1156 = vmatprep.subr.mxu0 0.0
        %1157 = vmatpush1.msra.mxu0 0.0
        %1158 = vmatprep.subr.mxu0 0.0
        %1159 = vmatpush1.msra.mxu0 0.0
        %1160 = vmatprep.subr.mxu0 0.0
        %1161 = vmatpush1.msra.mxu0 0.0
        %1162 = vmatprep.subr.mxu0 0.0
        %1163 = vmatpush1.msra.mxu0 0.0
        %1164 = vmatprep.subr.mxu0 0.0
        %1165 = vmatpush1.msra.mxu0 0.0
        %1166 = vmatprep.subr.mxu0 0.0
        %1167 = vmatpush1.msra.mxu0 0.0
        %1168 = vmatprep.subr.mxu0 0.0
        %1169 = vmatpush1.msra.mxu0 0.0
        %1170 = vmatprep.subr.mxu0 0.0
        %1171 = vmatpush1.msra.mxu0 0.0
        %1172 = vmatprep.subr.mxu0 0.0
        %1173 = vmatpush1.msra.mxu0 0.0
        %1174 = vmatprep.subr.mxu0 0.0
        %1175 = vmatpush1.msra.mxu0 0.0
        %1176 = vmatprep.subr.mxu0 0.0
        %1177 = vmatpush1.msra.mxu0 0.0
        %1178 = vmatprep.subr.mxu0 0.0
        %1179 = vmatpush1.msra.mxu0 0.0
        %1180 = vmatprep.subr.mxu0 0.0
        %1181 = vmatpush1.msra.mxu0 0.0
        %1182 = vmatprep.subr.mxu0 0.0
        %1183 = vmatpush1.msra.mxu0 0.0
        %1184 = vmatprep.subr.mxu0 0.0
        %1185 = vmatpush1.msra.mxu0 0.0
        %1186 = vmatprep.subr.mxu0 0.0
        %1187 = vmatpush1.msra.mxu0 0.0
        %1188 = vmatprep.subr.mxu0 0.0
        %1189 = vmatpush1.msra.mxu0 0.0
        %1190 = vmatprep.subr.mxu0 0.0
        %1191 = vmatpush1.msra.mxu0 0.0
        %1192 = vmatprep.subr.mxu0 0.0
        %1193 = vmatpush1.msra.mxu0 0.0
        %1194 = vmatprep.subr.mxu0 0.0
        %1195 = vmatpush1.msra.mxu0 0.0
        %1196 = vmatprep.subr.mxu0 0.0
        %1197 = vmatpush1.msra.mxu0 0.0
        %1198 = vmatprep.mubr.f32.mxu0 0.0
        %1199 = vmatmul.mubr.f32.gmra.mrb[0].mxu0 %v1129
        %v1200 = vpop.f32.mrb[0].mxu0
        %v1201 = vadd.f32 0.0, %v1200
        %v1202 = vpop.f32.mrb[0].mxu0
        %1203 = vmatprep.mubr.f32.mxu0 0.0
        %1204 = vmatmul.mubr.f32.gmra.mrb[0].mxu0 %v1132
        %v1205 = vpop.f32.mrb[0].mxu0
        %v1206 = vadd.f32 0.0, %v1205
        %v1207 = vpop.f32.mrb[0].mxu0
        %1208 = vdwg.mxu0
        %v1209 = vadd.f32 %v744, %v1201
        %v1210 = vadd.f32 %v745, %v1206
        %s1211 = scalar_lea.vmem [#allocation6], 8
        %v1212 = vld [vmem:[%s1211] sm:$0xff]
        %v1214 = vsel %vm749, %v1212, 0
        %1216 = vmatprep.subr.mxu0 0.0
        %1217 = vmatpush1.msra.mxu0 %v823
        %1218 = vmatprep.subr.mxu0 0.0
        %1219 = vmatpush1.msra.mxu0 %v828
        %1220 = vmatprep.subr.mxu0 0.0
        %1221 = vmatpush1.msra.mxu0 0.0
        %1222 = vmatprep.subr.mxu0 0.0
        %1223 = vmatpush1.msra.mxu0 0.0
        %1224 = vmatprep.subr.mxu0 0.0
        %1225 = vmatpush1.msra.mxu0 0.0
        %1226 = vmatprep.subr.mxu0 0.0
        %1227 = vmatpush1.msra.mxu0 0.0
        %1228 = vmatprep.subr.mxu0 0.0
        %1229 = vmatpush1.msra.mxu0 0.0
        %1230 = vmatprep.subr.mxu0 0.0
        %1231 = vmatpush1.msra.mxu0 0.0
        %1232 = vmatprep.subr.mxu0 0.0
        %1233 = vmatpush1.msra.mxu0 0.0
        %1234 = vmatprep.subr.mxu0 0.0
        %1235 = vmatpush1.msra.mxu0 0.0
        %1236 = vmatprep.subr.mxu0 0.0
        %1237 = vmatpush1.msra.mxu0 0.0
        %1238 = vmatprep.subr.mxu0 0.0
        %1239 = vmatpush1.msra.mxu0 0.0
        %1240 = vmatprep.subr.mxu0 0.0
        %1241 = vmatpush1.msra.mxu0 0.0
        %1242 = vmatprep.subr.mxu0 0.0
        %1243 = vmatpush1.msra.mxu0 0.0
        %1244 = vmatprep.subr.mxu0 0.0
        %1245 = vmatpush1.msra.mxu0 0.0
        %1246 = vmatprep.subr.mxu0 0.0
        %1247 = vmatpush1.msra.mxu0 0.0
        %1248 = vmatprep.subr.mxu0 0.0
        %1249 = vmatpush1.msra.mxu0 0.0
        %1250 = vmatprep.subr.mxu0 0.0
        %1251 = vmatpush1.msra.mxu0 0.0
        %1252 = vmatprep.subr.mxu0 0.0
        %1253 = vmatpush1.msra.mxu0 0.0
        %1254 = vmatprep.subr.mxu0 0.0
        %1255 = vmatpush1.msra.mxu0 0.0
        %1256 = vmatprep.subr.mxu0 0.0
        %1257 = vmatpush1.msra.mxu0 0.0
        %1258 = vmatprep.subr.mxu0 0.0
        %1259 = vmatpush1.msra.mxu0 0.0
        %1260 = vmatprep.subr.mxu0 0.0
        %1261 = vmatpush1.msra.mxu0 0.0
        %1262 = vmatprep.subr.mxu0 0.0
        %1263 = vmatpush1.msra.mxu0 0.0
        %1264 = vmatprep.subr.mxu0 0.0
        %1265 = vmatpush1.msra.mxu0 0.0
        %1266 = vmatprep.subr.mxu0 0.0
        %1267 = vmatpush1.msra.mxu0 0.0
        %1268 = vmatprep.subr.mxu0 0.0
        %1269 = vmatpush1.msra.mxu0 0.0
        %1270 = vmatprep.subr.mxu0 0.0
        %1271 = vmatpush1.msra.mxu0 0.0
        %1272 = vmatprep.subr.mxu0 0.0
        %1273 = vmatpush1.msra.mxu0 0.0
        %1274 = vmatprep.subr.mxu0 0.0
        %1275 = vmatpush1.msra.mxu0 0.0
        %1276 = vmatprep.subr.mxu0 0.0
        %1277 = vmatpush1.msra.mxu0 0.0
        %1278 = vmatprep.subr.mxu0 0.0
        %1279 = vmatpush1.msra.mxu0 0.0
        %1280 = vmatprep.mubr.f32.mxu0 0.0
        %1281 = vmatmul.mubr.f32.gmra.mrb[0].mxu0 %v1214
        %v1282 = vpop.f32.mrb[0].mxu0
        %v1283 = vadd.f32 0.0, %v1282
        %v1284 = vpop.f32.mrb[0].mxu0
        %1285 = vdwg.mxu0
        %s1286 = sadd.s32 %s441, 25
        %s1287 = sld [smem:[#allocation15 + %s1286]]
        %s1288 = sadd.s32 %s441, 26
        %s1289 = sld [smem:[#allocation15 + %s1288]]
        %s1290 = sadd.s32 %s441, 27
        %s1291 = sld [smem:[#allocation15 + %s1290]]
        %s1292 = sadd.s32 %s441, 28
        %s1293 = sld [smem:[#allocation15 + %s1292]]
        %s1294 = sadd.s32 %s441, 29
        %s1295 = sld [smem:[#allocation15 + %s1294]]
        %s1296 = sadd.s32 %s441, 30
        %s1297 = sld [smem:[#allocation15 + %s1296]]
        %s1298 = sadd.s32 %s441, 31
        %s1299 = sld [smem:[#allocation15 + %s1298]]
        %s1300 = sadd.s32 %s441, 32
        %s1301 = sld [smem:[#allocation15 + %s1300]]
        %s1302 = sadd.s32 %s441, 33
        %s1303 = sld [smem:[#allocation15 + %s1302]]
        %s1304 = sadd.s32 %s441, 34
        %s1305 = sld [smem:[#allocation15 + %s1304]]
        %s1306 = sadd.s32 %s441, 35
        %s1307 = sld [smem:[#allocation15 + %s1306]]
        %s1308 = sadd.s32 %s441, 36
        %s1309 = sld [smem:[#allocation15 + %s1308]]
        %s1310 = sadd.s32 %s441, 37
        %s1311 = sld [smem:[#allocation15 + %s1310]]
        %s1312 = sadd.s32 %s441, 38
        %s1313 = sld [smem:[#allocation15 + %s1312]]
        %s1314 = sadd.s32 %s441, 39
        %s1315 = sld [smem:[#allocation15 + %s1314]]
        %s1316 = sadd.s32 %s441, 40
        %s1317 = sld [smem:[#allocation15 + %s1316]]
        %s1318 = sadd.s32 %s441, 41
        %s1319 = sld [smem:[#allocation15 + %s1318]]
        %s1320 = sadd.s32 %s441, 42
        %s1321 = sld [smem:[#allocation15 + %s1320]]
        %s1322 = sadd.s32 %s441, 43
        %s1323 = sld [smem:[#allocation15 + %s1322]]
        %s1324 = sadd.s32 %s441, 44
        %s1325 = sld [smem:[#allocation15 + %s1324]]
        %s1326 = sadd.s32 %s441, 45
        %s1327 = sld [smem:[#allocation15 + %s1326]]
        %s1328 = sadd.s32 %s441, 46
        %s1329 = sld [smem:[#allocation15 + %s1328]]
        %s1330 = sadd.s32 %s441, 47
        %s1331 = sld [smem:[#allocation15 + %s1330]]
        %s1332 = sadd.s32 %s441, 48
        %s1333 = sld [smem:[#allocation15 + %s1332]]
        %s1334 = sadd.s32 %s441, 49
        %s1335 = sld [smem:[#allocation15 + %s1334]]
        %1336 = vrot.lane.b32.xlu0 %v1283, 8
        %v1337 = vpop.permute.xlu0 %1336
        %v1338 = vsel %vm929, %v1337, %v1283
        %1339 = vrot.lane.b32.xlu0 %v1338, 8
        %v1340 = vpop.permute.xlu0 %1339
        %v1341 = vsel %vm929, %v1340, %v1283
        %1343 = vrot.lane.b32.xlu0 %v1341, 122
        %v1344 = vpop.permute.xlu0 %1343
        %v1346 = vsel %vm937, %v1344, 0.0
        %1347 = vrot.lane.b32.xlu0 %v1341, 121
        %v1348 = vpop.permute.xlu0 %1347
        %v1350 = vsel %vm944, %v1348, 0.0
        %1351 = vrot.lane.b32.xlu0 %v1341, 127
        %v1352 = vpop.permute.xlu0 %1351
        %v1354 = vsel %vm950, %v1352, 0.0
        %1355 = vrot.lane.b32.xlu0 %v1341, 126
        %v1356 = vpop.permute.xlu0 %1355
        %v1358 = vsel %vm956, %v1356, 0.0
        %v1359 = vstv %s1287
        %v1360 = vmul.f32 %v1346, %v1359
        %v1361 = vstv %s1289
        %v1362 = vmul.f32 %v1350, %v1361
        %v1363 = vadd.f32 %v1360, %v1362
        %v1364 = vstv %s1291
        %v1365 = vmul.f32 %v1283, %v1364
        %v1366 = vadd.f32 %v1363, %v1365
        %v1367 = vstv %s1293
        %v1368 = vmul.f32 %v1354, %v1367
        %v1369 = vadd.f32 %v1366, %v1368
        %v1370 = vstv %s1295
        %v1371 = vmul.f32 %v1358, %v1370
        %v1372 = vadd.f32 %v1369, %v1371
        %v1373 = vrot.slane %v1372, 6
        %v1374 = vsel %vm977, %v1373, 0.0
        %v1375 = vstv %s1297
        %v1376 = vmul.f32 %v1346, %v1375
        %v1377 = vstv %s1299
        %v1378 = vmul.f32 %v1350, %v1377
        %v1379 = vadd.f32 %v1376, %v1378
        %v1380 = vstv %s1301
        %v1381 = vmul.f32 %v1283, %v1380
        %v1382 = vadd.f32 %v1379, %v1381
        %v1383 = vstv %s1303
        %v1384 = vmul.f32 %v1354, %v1383
        %v1385 = vadd.f32 %v1382, %v1384
        %v1386 = vstv %s1305
        %v1387 = vmul.f32 %v1358, %v1386
        %v1388 = vadd.f32 %v1385, %v1387
        %v1389 = vrot.slane %v1388, 7
        %v1390 = vsel %vm995, %v1389, 0.0
        %v1391 = vadd.f32 %v1374, %v1390
        %v1392 = vstv %s1307
        %v1393 = vmul.f32 %v1346, %v1392
        %v1394 = vstv %s1309
        %v1395 = vmul.f32 %v1350, %v1394
        %v1396 = vadd.f32 %v1393, %v1395
        %v1397 = vstv %s1311
        %v1398 = vmul.f32 %v1283, %v1397
        %v1399 = vadd.f32 %v1396, %v1398
        %v1400 = vstv %s1313
        %v1401 = vmul.f32 %v1354, %v1400
        %v1402 = vadd.f32 %v1399, %v1401
        %v1403 = vstv %s1315
        %v1404 = vmul.f32 %v1358, %v1403
        %v1405 = vadd.f32 %v1402, %v1404
        %v1406 = vadd.f32 %v1391, %v1405
        %v1407 = vstv %s1317
        %v1408 = vmul.f32 %v1346, %v1407
        %v1409 = vstv %s1319
        %v1410 = vmul.f32 %v1350, %v1409
        %v1411 = vadd.f32 %v1408, %v1410
        %v1412 = vstv %s1321
        %v1413 = vmul.f32 %v1283, %v1412
        %v1414 = vadd.f32 %v1411, %v1413
        %v1415 = vstv %s1323
        %v1416 = vmul.f32 %v1354, %v1415
        %v1417 = vadd.f32 %v1414, %v1416
        %v1418 = vstv %s1325
        %v1419 = vmul.f32 %v1358, %v1418
        %v1420 = vadd.f32 %v1417, %v1419
        %v1421 = vrot.slane %v1420, 1
        %v1422 = vsel %vm1029, %v1421, 0.0
        %v1423 = vadd.f32 %v1406, %v1422
        %v1424 = vstv %s1327
        %v1425 = vmul.f32 %v1346, %v1424
        %v1426 = vstv %s1329
        %v1427 = vmul.f32 %v1350, %v1426
        %v1428 = vadd.f32 %v1425, %v1427
        %v1429 = vstv %s1331
        %v1430 = vmul.f32 %v1283, %v1429
        %v1431 = vadd.f32 %v1428, %v1430
        %v1432 = vstv %s1333
        %v1433 = vmul.f32 %v1354, %v1432
        %v1434 = vadd.f32 %v1431, %v1433
        %v1435 = vstv %s1335
        %v1436 = vmul.f32 %v1358, %v1435
        %v1437 = vadd.f32 %v1434, %v1436
        %v1438 = vrot.slane %v1437, 2
        %v1439 = vsel %vm1048, %v1438, 0.0
        %v1440 = vadd.f32 %v1423, %v1439
        %s1441 = scalar_lea.vmem [#allocation9], 16
        %v1442 = vld [vmem:[%s1441] sm:$0xff]
        %v1443 = vld [vmem:[%s1441 + $0x8] sm:$0xff]
        %v1445 = vsel %vm1054, %v1440, 0
        %1447 = vmatprep.subr.mxu0 0.0
        %1448 = vmatpush1.msra.mxu0 %v1053
        %1449 = vmatprep.subr.mxu0 0.0
        %1450 = vmatpush1.msra.mxu0 0.0
        %1451 = vmatprep.subr.mxu0 0.0
        %1452 = vmatpush1.msra.mxu0 0.0
        %1453 = vmatprep.subr.mxu0 0.0
        %1454 = vmatpush1.msra.mxu0 0.0
        %1455 = vmatprep.subr.mxu0 0.0
        %1456 = vmatpush1.msra.mxu0 0.0
        %1457 = vmatprep.subr.mxu0 0.0
        %1458 = vmatpush1.msra.mxu0 0.0
        %1459 = vmatprep.subr.mxu0 0.0
        %1460 = vmatpush1.msra.mxu0 0.0
        %1461 = vmatprep.subr.mxu0 0.0
        %1462 = vmatpush1.msra.mxu0 0.0
        %1463 = vmatprep.subr.mxu0 0.0
        %1464 = vmatpush1.msra.mxu0 0.0
        %1465 = vmatprep.subr.mxu0 0.0
        %1466 = vmatpush1.msra.mxu0 0.0
        %1467 = vmatprep.subr.mxu0 0.0
        %1468 = vmatpush1.msra.mxu0 0.0
        %1469 = vmatprep.subr.mxu0 0.0
        %1470 = vmatpush1.msra.mxu0 0.0
        %1471 = vmatprep.subr.mxu0 0.0
        %1472 = vmatpush1.msra.mxu0 0.0
        %1473 = vmatprep.subr.mxu0 0.0
        %1474 = vmatpush1.msra.mxu0 0.0
        %1475 = vmatprep.subr.mxu0 0.0
        %1476 = vmatpush1.msra.mxu0 0.0
        %1477 = vmatprep.subr.mxu0 0.0
        %1478 = vmatpush1.msra.mxu0 0.0
        %1479 = vmatprep.subr.mxu0 0.0
        %1480 = vmatpush1.msra.mxu0 0.0
        %1481 = vmatprep.subr.mxu0 0.0
        %1482 = vmatpush1.msra.mxu0 0.0
        %1483 = vmatprep.subr.mxu0 0.0
        %1484 = vmatpush1.msra.mxu0 0.0
        %1485 = vmatprep.subr.mxu0 0.0
        %1486 = vmatpush1.msra.mxu0 0.0
        %1487 = vmatprep.subr.mxu0 0.0
        %1488 = vmatpush1.msra.mxu0 0.0
        %1489 = vmatprep.subr.mxu0 0.0
        %1490 = vmatpush1.msra.mxu0 0.0
        %1491 = vmatprep.subr.mxu0 0.0
        %1492 = vmatpush1.msra.mxu0 0.0
        %1493 = vmatprep.subr.mxu0 0.0
        %1494 = vmatpush1.msra.mxu0 0.0
        %1495 = vmatprep.subr.mxu0 0.0
        %1496 = vmatpush1.msra.mxu0 0.0
        %1497 = vmatprep.subr.mxu0 0.0
        %1498 = vmatpush1.msra.mxu0 0.0
        %1499 = vmatprep.subr.mxu0 0.0
        %1500 = vmatpush1.msra.mxu0 0.0
        %1501 = vmatprep.subr.mxu0 0.0
        %1502 = vmatpush1.msra.mxu0 0.0
        %1503 = vmatprep.subr.mxu0 0.0
        %1504 = vmatpush1.msra.mxu0 0.0
        %1505 = vmatprep.subr.mxu0 0.0
        %1506 = vmatpush1.msra.mxu0 0.0
        %1507 = vmatprep.subr.mxu0 0.0
        %1508 = vmatpush1.msra.mxu0 0.0
        %1509 = vmatprep.subr.mxu0 0.0
        %1510 = vmatpush1.msra.mxu0 0.0
        %1511 = vmatprep.mubr.f32.mxu0 0.0
        %1512 = vmatmul.mubr.f32.gmra.mrb[0].mxu0 %v1445
        %v1513 = vpop.f32.mrb[0].mxu0
        %v1514 = vadd.f32 0.0, %v1513
        %v1515 = vpop.f32.mrb[0].mxu0
        %1516 = vdwg.mxu0
        %v1518 = vsel %vm1054, %v1442, 0
        %v1521 = vsel %vm1054, %v1443, 0
        %1523 = vmatprep.subr.mxu0 0.0
        %1524 = vmatpush1.msra.mxu0 %v1514
        %1525 = vmatprep.subr.mxu0 0.0
        %1526 = vmatpush1.msra.mxu0 0.0
        %1527 = vmatprep.subr.mxu0 0.0
        %1528 = vmatpush1.msra.mxu0 0.0
        %1529 = vmatprep.subr.mxu0 0.0
        %1530 = vmatpush1.msra.mxu0 0.0
        %1531 = vmatprep.subr.mxu0 0.0
        %1532 = vmatpush1.msra.mxu0 0.0
        %1533 = vmatprep.subr.mxu0 0.0
        %1534 = vmatpush1.msra.mxu0 0.0
        %1535 = vmatprep.subr.mxu0 0.0
        %1536 = vmatpush1.msra.mxu0 0.0
        %1537 = vmatprep.subr.mxu0 0.0
        %1538 = vmatpush1.msra.mxu0 0.0
        %1539 = vmatprep.subr.mxu0 0.0
        %1540 = vmatpush1.msra.mxu0 0.0
        %1541 = vmatprep.subr.mxu0 0.0
        %1542 = vmatpush1.msra.mxu0 0.0
        %1543 = vmatprep.subr.mxu0 0.0
        %1544 = vmatpush1.msra.mxu0 0.0
        %1545 = vmatprep.subr.mxu0 0.0
        %1546 = vmatpush1.msra.mxu0 0.0
        %1547 = vmatprep.subr.mxu0 0.0
        %1548 = vmatpush1.msra.mxu0 0.0
        %1549 = vmatprep.subr.mxu0 0.0
        %1550 = vmatpush1.msra.mxu0 0.0
        %1551 = vmatprep.subr.mxu0 0.0
        %1552 = vmatpush1.msra.mxu0 0.0
        %1553 = vmatprep.subr.mxu0 0.0
        %1554 = vmatpush1.msra.mxu0 0.0
        %1555 = vmatprep.subr.mxu0 0.0
        %1556 = vmatpush1.msra.mxu0 0.0
        %1557 = vmatprep.subr.mxu0 0.0
        %1558 = vmatpush1.msra.mxu0 0.0
        %1559 = vmatprep.subr.mxu0 0.0
        %1560 = vmatpush1.msra.mxu0 0.0
        %1561 = vmatprep.subr.mxu0 0.0
        %1562 = vmatpush1.msra.mxu0 0.0
        %1563 = vmatprep.subr.mxu0 0.0
        %1564 = vmatpush1.msra.mxu0 0.0
        %1565 = vmatprep.subr.mxu0 0.0
        %1566 = vmatpush1.msra.mxu0 0.0
        %1567 = vmatprep.subr.mxu0 0.0
        %1568 = vmatpush1.msra.mxu0 0.0
        %1569 = vmatprep.subr.mxu0 0.0
        %1570 = vmatpush1.msra.mxu0 0.0
        %1571 = vmatprep.subr.mxu0 0.0
        %1572 = vmatpush1.msra.mxu0 0.0
        %1573 = vmatprep.subr.mxu0 0.0
        %1574 = vmatpush1.msra.mxu0 0.0
        %1575 = vmatprep.subr.mxu0 0.0
        %1576 = vmatpush1.msra.mxu0 0.0
        %1577 = vmatprep.subr.mxu0 0.0
        %1578 = vmatpush1.msra.mxu0 0.0
        %1579 = vmatprep.subr.mxu0 0.0
        %1580 = vmatpush1.msra.mxu0 0.0
        %1581 = vmatprep.subr.mxu0 0.0
        %1582 = vmatpush1.msra.mxu0 0.0
        %1583 = vmatprep.subr.mxu0 0.0
        %1584 = vmatpush1.msra.mxu0 0.0
        %1585 = vmatprep.subr.mxu0 0.0
        %1586 = vmatpush1.msra.mxu0 0.0
        %1587 = vmatprep.mubr.f32.mxu0 0.0
        %1588 = vmatmul.mubr.f32.gmra.mrb[0].mxu0 %v1518
        %v1589 = vpop.f32.mrb[0].mxu0
        %v1590 = vadd.f32 0.0, %v1589
        %v1591 = vpop.f32.mrb[0].mxu0
        %1592 = vmatprep.mubr.f32.mxu0 0.0
        %1593 = vmatmul.mubr.f32.gmra.mrb[0].mxu0 %v1521
        %v1594 = vpop.f32.mrb[0].mxu0
        %v1595 = vadd.f32 0.0, %v1594
        %v1596 = vpop.f32.mrb[0].mxu0
        %1597 = vdwg.mxu0
        %v1598 = vadd.f32 %v1209, %v1590
        %v1599 = vadd.f32 %v1210, %v1595
        %s1600 = scalar_lea.vmem [#allocation8], 16
        %v1601 = vld [vmem:[%s1600] sm:$0xff]
        %v1602 = vld [vmem:[%s1600 + $0x8] sm:$0xff]
        %1603 = vmatprep.subr.mxu0 0.0
        %1604 = vmatpush1.msra.mxu0 %v1601
        %1605 = vmatprep.subr.mxu0 0.0
        %1606 = vmatpush1.msra.mxu0 %v1602
        %1607 = vmatprep.subr.mxu0 0.0
        %1608 = vmatpush1.msra.mxu0 0.0
        %1609 = vmatprep.subr.mxu0 0.0
        %1610 = vmatpush1.msra.mxu0 0.0
        %1611 = vmatprep.subr.mxu0 0.0
        %1612 = vmatpush1.msra.mxu0 0.0
        %1613 = vmatprep.subr.mxu0 0.0
        %1614 = vmatpush1.msra.mxu0 0.0
        %1615 = vmatprep.subr.mxu0 0.0
        %1616 = vmatpush1.msra.mxu0 0.0
        %1617 = vmatprep.subr.mxu0 0.0
        %1618 = vmatpush1.msra.mxu0 0.0
        %1619 = vmatprep.subr.mxu0 0.0
        %1620 = vmatpush1.msra.mxu0 0.0
        %1621 = vmatprep.subr.mxu0 0.0
        %1622 = vmatpush1.msra.mxu0 0.0
        %1623 = vmatprep.subr.mxu0 0.0
        %1624 = vmatpush1.msra.mxu0 0.0
        %1625 = vmatprep.subr.mxu0 0.0
        %1626 = vmatpush1.msra.mxu0 0.0
        %1627 = vmatprep.subr.mxu0 0.0
        %1628 = vmatpush1.msra.mxu0 0.0
        %1629 = vmatprep.subr.mxu0 0.0
        %1630 = vmatpush1.msra.mxu0 0.0
        %1631 = vmatprep.subr.mxu0 0.0
        %1632 = vmatpush1.msra.mxu0 0.0
        %1633 = vmatprep.subr.mxu0 0.0
        %1634 = vmatpush1.msra.mxu0 0.0
        %1635 = vmatprep.subr.mxu0 0.0
        %1636 = vmatpush1.msra.mxu0 0.0
        %1637 = vmatprep.subr.mxu0 0.0
        %1638 = vmatpush1.msra.mxu0 0.0
        %1639 = vmatprep.subr.mxu0 0.0
        %1640 = vmatpush1.msra.mxu0 0.0
        %1641 = vmatprep.subr.mxu0 0.0
        %1642 = vmatpush1.msra.mxu0 0.0
        %1643 = vmatprep.subr.mxu0 0.0
        %1644 = vmatpush1.msra.mxu0 0.0
        %1645 = vmatprep.subr.mxu0 0.0
        %1646 = vmatpush1.msra.mxu0 0.0
        %1647 = vmatprep.subr.mxu0 0.0
        %1648 = vmatpush1.msra.mxu0 0.0
        %1649 = vmatprep.subr.mxu0 0.0
        %1650 = vmatpush1.msra.mxu0 0.0
        %1651 = vmatprep.subr.mxu0 0.0
        %1652 = vmatpush1.msra.mxu0 0.0
        %1653 = vmatprep.subr.mxu0 0.0
        %1654 = vmatpush1.msra.mxu0 0.0
        %1655 = vmatprep.subr.mxu0 0.0
        %1656 = vmatpush1.msra.mxu0 0.0
        %1657 = vmatprep.subr.mxu0 0.0
        %1658 = vmatpush1.msra.mxu0 0.0
        %1659 = vmatprep.subr.mxu0 0.0
        %1660 = vmatpush1.msra.mxu0 0.0
        %1661 = vmatprep.subr.mxu0 0.0
        %1662 = vmatpush1.msra.mxu0 0.0
        %1663 = vmatprep.subr.mxu0 0.0
        %1664 = vmatpush1.msra.mxu0 0.0
        %1665 = vmatprep.subr.mxu0 0.0
        %1666 = vmatpush1.msra.mxu0 0.0
        %1667 = vmatprep.mubr.f32.mxu0 0.0
        %1668 = vmatmul.mubr.f32.gmra.mrb[0].mxu0 %v751
        %v1669 = vpop.f32.mrb[0].mxu0
        %v1670 = vadd.f32 0.0, %v1669
        %v1671 = vpop.f32.mrb[0].mxu0
        %1672 = vmatprep.mubr.f32.mxu0 0.0
        %1673 = vmatmul.mubr.f32.gmra.mrb[0].mxu0 %v754
        %v1674 = vpop.f32.mrb[0].mxu0
        %v1675 = vadd.f32 0.0, %v1674
        %v1676 = vpop.f32.mrb[0].mxu0
        %1677 = vdwg.mxu0
        %1678 = vmatprep.subr.mxu0 0.0
        %1679 = vmatpush1.msra.mxu0 %v1670
        %1680 = vmatprep.subr.mxu0 0.0
        %1681 = vmatpush1.msra.mxu0 %v1675
        %1682 = vmatprep.subr.mxu0 0.0
        %1683 = vmatpush1.msra.mxu0 0.0
        %1684 = vmatprep.subr.mxu0 0.0
        %1685 = vmatpush1.msra.mxu0 0.0
        %1686 = vmatprep.subr.mxu0 0.0
        %1687 = vmatpush1.msra.mxu0 0.0
        %1688 = vmatprep.subr.mxu0 0.0
        %1689 = vmatpush1.msra.mxu0 0.0
        %1690 = vmatprep.subr.mxu0 0.0
        %1691 = vmatpush1.msra.mxu0 0.0
        %1692 = vmatprep.subr.mxu0 0.0
        %1693 = vmatpush1.msra.mxu0 0.0
        %1694 = vmatprep.subr.mxu0 0.0
        %1695 = vmatpush1.msra.mxu0 0.0
        %1696 = vmatprep.subr.mxu0 0.0
        %1697 = vmatpush1.msra.mxu0 0.0
        %1698 = vmatprep.subr.mxu0 0.0
        %1699 = vmatpush1.msra.mxu0 0.0
        %1700 = vmatprep.subr.mxu0 0.0
        %1701 = vmatpush1.msra.mxu0 0.0
        %1702 = vmatprep.subr.mxu0 0.0
        %1703 = vmatpush1.msra.mxu0 0.0
        %1704 = vmatprep.subr.mxu0 0.0
        %1705 = vmatpush1.msra.mxu0 0.0
        %1706 = vmatprep.subr.mxu0 0.0
        %1707 = vmatpush1.msra.mxu0 0.0
        %1708 = vmatprep.subr.mxu0 0.0
        %1709 = vmatpush1.msra.mxu0 0.0
        %1710 = vmatprep.subr.mxu0 0.0
        %1711 = vmatpush1.msra.mxu0 0.0
        %1712 = vmatprep.subr.mxu0 0.0
        %1713 = vmatpush1.msra.mxu0 0.0
        %1714 = vmatprep.subr.mxu0 0.0
        %1715 = vmatpush1.msra.mxu0 0.0
        %1716 = vmatprep.subr.mxu0 0.0
        %1717 = vmatpush1.msra.mxu0 0.0
        %1718 = vmatprep.subr.mxu0 0.0
        %1719 = vmatpush1.msra.mxu0 0.0
        %1720 = vmatprep.subr.mxu0 0.0
        %1721 = vmatpush1.msra.mxu0 0.0
        %1722 = vmatprep.subr.mxu0 0.0
        %1723 = vmatpush1.msra.mxu0 0.0
        %1724 = vmatprep.subr.mxu0 0.0
        %1725 = vmatpush1.msra.mxu0 0.0
        %1726 = vmatprep.subr.mxu0 0.0
        %1727 = vmatpush1.msra.mxu0 0.0
        %1728 = vmatprep.subr.mxu0 0.0
        %1729 = vmatpush1.msra.mxu0 0.0
        %1730 = vmatprep.subr.mxu0 0.0
        %1731 = vmatpush1.msra.mxu0 0.0
        %1732 = vmatprep.subr.mxu0 0.0
        %1733 = vmatpush1.msra.mxu0 0.0
        %1734 = vmatprep.subr.mxu0 0.0
        %1735 = vmatpush1.msra.mxu0 0.0
        %1736 = vmatprep.subr.mxu0 0.0
        %1737 = vmatpush1.msra.mxu0 0.0
        %1738 = vmatprep.subr.mxu0 0.0
        %1739 = vmatpush1.msra.mxu0 0.0
        %1740 = vmatprep.subr.mxu0 0.0
        %1741 = vmatpush1.msra.mxu0 0.0
        %1742 = vmatprep.mubr.f32.mxu0 0.0
        %1743 = vmatmul.mubr.f32.gmra.mrb[0].mxu0 %v832
        %v1744 = vpop.f32.mrb[0].mxu0
        %v1745 = vadd.f32 0.0, %v1744
        %v1746 = vpop.f32.mrb[0].mxu0
        %1747 = vdwg.mxu0
        %s1748 = sadd.s32 %s441, 50
        %s1749 = sld [smem:[#allocation15 + %s1748]]
        %s1750 = sadd.s32 %s441, 51
        %s1751 = sld [smem:[#allocation15 + %s1750]]
        %s1752 = sadd.s32 %s441, 52
        %s1753 = sld [smem:[#allocation15 + %s1752]]
        %s1754 = sadd.s32 %s441, 53
        %s1755 = sld [smem:[#allocation15 + %s1754]]
        %s1756 = sadd.s32 %s441, 54
        %s1757 = sld [smem:[#allocation15 + %s1756]]
        %s1758 = sadd.s32 %s441, 55
        %s1759 = sld [smem:[#allocation15 + %s1758]]
        %s1760 = sadd.s32 %s441, 56
        %s1761 = sld [smem:[#allocation15 + %s1760]]
        %s1762 = sadd.s32 %s441, 57
        %s1763 = sld [smem:[#allocation15 + %s1762]]
        %s1764 = sadd.s32 %s441, 58
        %s1765 = sld [smem:[#allocation15 + %s1764]]
        %s1766 = sadd.s32 %s441, 59
        %s1767 = sld [smem:[#allocation15 + %s1766]]
        %s1768 = sadd.s32 %s441, 60
        %s1769 = sld [smem:[#allocation15 + %s1768]]
        %s1770 = sadd.s32 %s441, 61
        %s1771 = sld [smem:[#allocation15 + %s1770]]
        %s1772 = sadd.s32 %s441, 62
        %s1773 = sld [smem:[#allocation15 + %s1772]]
        %s1774 = sadd.s32 %s441, 63
        %s1775 = sld [smem:[#allocation15 + %s1774]]
        %s1776 = sadd.s32 %s441, 64
        %s1777 = sld [smem:[#allocation15 + %s1776]]
        %s1778 = sadd.s32 %s441, 65
        %s1779 = sld [smem:[#allocation15 + %s1778]]
        %s1780 = sadd.s32 %s441, 66
        %s1781 = sld [smem:[#allocation15 + %s1780]]
        %s1782 = sadd.s32 %s441, 67
        %s1783 = sld [smem:[#allocation15 + %s1782]]
        %s1784 = sadd.s32 %s441, 68
        %s1785 = sld [smem:[#allocation15 + %s1784]]
        %s1786 = sadd.s32 %s441, 69
        %s1787 = sld [smem:[#allocation15 + %s1786]]
        %s1788 = sadd.s32 %s441, 70
        %s1789 = sld [smem:[#allocation15 + %s1788]]
        %s1790 = sadd.s32 %s441, 71
        %s1791 = sld [smem:[#allocation15 + %s1790]]
        %s1792 = sadd.s32 %s441, 72
        %s1793 = sld [smem:[#allocation15 + %s1792]]
        %s1794 = sadd.s32 %s441, 73
        %s1795 = sld [smem:[#allocation15 + %s1794]]
        %s1796 = sadd.s32 %s441, 74
        %s1797 = sld [smem:[#allocation15 + %s1796]]
        %1798 = vrot.lane.b32.xlu0 %v1745, 8
        %v1799 = vpop.permute.xlu0 %1798
        %v1800 = vsel %vm929, %v1799, %v1745
        %1801 = vrot.lane.b32.xlu0 %v1800, 8
        %v1802 = vpop.permute.xlu0 %1801
        %v1803 = vsel %vm929, %v1802, %v1745
        %1805 = vrot.lane.b32.xlu0 %v1803, 122
        %v1806 = vpop.permute.xlu0 %1805
        %v1808 = vsel %vm937, %v1806, 0.0
        %1809 = vrot.lane.b32.xlu0 %v1803, 121
        %v1810 = vpop.permute.xlu0 %1809
        %v1812 = vsel %vm944, %v1810, 0.0
        %1813 = vrot.lane.b32.xlu0 %v1803, 127
        %v1814 = vpop.permute.xlu0 %1813
        %v1816 = vsel %vm950, %v1814, 0.0
        %1817 = vrot.lane.b32.xlu0 %v1803, 126
        %v1818 = vpop.permute.xlu0 %1817
        %v1820 = vsel %vm956, %v1818, 0.0
        %v1821 = vstv %s1749
        %v1822 = vmul.f32 %v1808, %v1821
        %v1823 = vstv %s1751
        %v1824 = vmul.f32 %v1812, %v1823
        %v1825 = vadd.f32 %v1822, %v1824
        %v1826 = vstv %s1753
        %v1827 = vmul.f32 %v1745, %v1826
        %v1828 = vadd.f32 %v1825, %v1827
        %v1829 = vstv %s1755
        %v1830 = vmul.f32 %v1816, %v1829
        %v1831 = vadd.f32 %v1828, %v1830
        %v1832 = vstv %s1757
        %v1833 = vmul.f32 %v1820, %v1832
        %v1834 = vadd.f32 %v1831, %v1833
        %v1835 = vrot.slane %v1834, 6
        %v1836 = vsel %vm977, %v1835, 0.0
        %v1837 = vstv %s1759
        %v1838 = vmul.f32 %v1808, %v1837
        %v1839 = vstv %s1761
        %v1840 = vmul.f32 %v1812, %v1839
        %v1841 = vadd.f32 %v1838, %v1840
        %v1842 = vstv %s1763
        %v1843 = vmul.f32 %v1745, %v1842
        %v1844 = vadd.f32 %v1841, %v1843
        %v1845 = vstv %s1765
        %v1846 = vmul.f32 %v1816, %v1845
        %v1847 = vadd.f32 %v1844, %v1846
        %v1848 = vstv %s1767
        %v1849 = vmul.f32 %v1820, %v1848
        %v1850 = vadd.f32 %v1847, %v1849
        %v1851 = vrot.slane %v1850, 7
        %v1852 = vsel %vm995, %v1851, 0.0
        %v1853 = vadd.f32 %v1836, %v1852
        %v1854 = vstv %s1769
        %v1855 = vmul.f32 %v1808, %v1854
        %v1856 = vstv %s1771
        %v1857 = vmul.f32 %v1812, %v1856
        %v1858 = vadd.f32 %v1855, %v1857
        %v1859 = vstv %s1773
        %v1860 = vmul.f32 %v1745, %v1859
        %v1861 = vadd.f32 %v1858, %v1860
        %v1862 = vstv %s1775
        %v1863 = vmul.f32 %v1816, %v1862
        %v1864 = vadd.f32 %v1861, %v1863
        %v1865 = vstv %s1777
        %v1866 = vmul.f32 %v1820, %v1865
        %v1867 = vadd.f32 %v1864, %v1866
        %v1868 = vadd.f32 %v1853, %v1867
        %v1869 = vstv %s1779
        %v1870 = vmul.f32 %v1808, %v1869
        %v1871 = vstv %s1781
        %v1872 = vmul.f32 %v1812, %v1871
        %v1873 = vadd.f32 %v1870, %v1872
        %v1874 = vstv %s1783
        %v1875 = vmul.f32 %v1745, %v1874
        %v1876 = vadd.f32 %v1873, %v1875
        %v1877 = vstv %s1785
        %v1878 = vmul.f32 %v1816, %v1877
        %v1879 = vadd.f32 %v1876, %v1878
        %v1880 = vstv %s1787
        %v1881 = vmul.f32 %v1820, %v1880
        %v1882 = vadd.f32 %v1879, %v1881
        %v1883 = vrot.slane %v1882, 1
        %v1884 = vsel %vm1029, %v1883, 0.0
        %v1885 = vadd.f32 %v1868, %v1884
        %v1886 = vstv %s1789
        %v1887 = vmul.f32 %v1808, %v1886
        %v1888 = vstv %s1791
        %v1889 = vmul.f32 %v1812, %v1888
        %v1890 = vadd.f32 %v1887, %v1889
        %v1891 = vstv %s1793
        %v1892 = vmul.f32 %v1745, %v1891
        %v1893 = vadd.f32 %v1890, %v1892
        %v1894 = vstv %s1795
        %v1895 = vmul.f32 %v1816, %v1894
        %v1896 = vadd.f32 %v1893, %v1895
        %v1897 = vstv %s1797
        %v1898 = vmul.f32 %v1820, %v1897
        %v1899 = vadd.f32 %v1896, %v1898
        %v1900 = vrot.slane %v1899, 2
        %v1901 = vsel %vm1048, %v1900, 0.0
        %v1902 = vadd.f32 %v1885, %v1901
        %s1903 = scalar_lea.vmem [#allocation11], 8
        %v1904 = vld [vmem:[%s1903] sm:$0xff]
        %v1906 = vsel %vm1054, %v1902, 0
        %1908 = vmatprep.subr.mxu0 0.0
        %1909 = vmatpush1.msra.mxu0 %v1904
        %1910 = vmatprep.subr.mxu0 0.0
        %1911 = vmatpush1.msra.mxu0 0.0
        %1912 = vmatprep.subr.mxu0 0.0
        %1913 = vmatpush1.msra.mxu0 0.0
        %1914 = vmatprep.subr.mxu0 0.0
        %1915 = vmatpush1.msra.mxu0 0.0
        %1916 = vmatprep.subr.mxu0 0.0
        %1917 = vmatpush1.msra.mxu0 0.0
        %1918 = vmatprep.subr.mxu0 0.0
        %1919 = vmatpush1.msra.mxu0 0.0
        %1920 = vmatprep.subr.mxu0 0.0
        %1921 = vmatpush1.msra.mxu0 0.0
        %1922 = vmatprep.subr.mxu0 0.0
        %1923 = vmatpush1.msra.mxu0 0.0
        %1924 = vmatprep.subr.mxu0 0.0
        %1925 = vmatpush1.msra.mxu0 0.0
        %1926 = vmatprep.subr.mxu0 0.0
        %1927 = vmatpush1.msra.mxu0 0.0
        %1928 = vmatprep.subr.mxu0 0.0
        %1929 = vmatpush1.msra.mxu0 0.0
        %1930 = vmatprep.subr.mxu0 0.0
        %1931 = vmatpush1.msra.mxu0 0.0
        %1932 = vmatprep.subr.mxu0 0.0
        %1933 = vmatpush1.msra.mxu0 0.0
        %1934 = vmatprep.subr.mxu0 0.0
        %1935 = vmatpush1.msra.mxu0 0.0
        %1936 = vmatprep.subr.mxu0 0.0
        %1937 = vmatpush1.msra.mxu0 0.0
        %1938 = vmatprep.subr.mxu0 0.0
        %1939 = vmatpush1.msra.mxu0 0.0
        %1940 = vmatprep.subr.mxu0 0.0
        %1941 = vmatpush1.msra.mxu0 0.0
        %1942 = vmatprep.subr.mxu0 0.0
        %1943 = vmatpush1.msra.mxu0 0.0
        %1944 = vmatprep.subr.mxu0 0.0
        %1945 = vmatpush1.msra.mxu0 0.0
        %1946 = vmatprep.subr.mxu0 0.0
        %1947 = vmatpush1.msra.mxu0 0.0
        %1948 = vmatprep.subr.mxu0 0.0
        %1949 = vmatpush1.msra.mxu0 0.0
        %1950 = vmatprep.subr.mxu0 0.0
        %1951 = vmatpush1.msra.mxu0 0.0
        %1952 = vmatprep.subr.mxu0 0.0
        %1953 = vmatpush1.msra.mxu0 0.0
        %1954 = vmatprep.subr.mxu0 0.0
        %1955 = vmatpush1.msra.mxu0 0.0
        %1956 = vmatprep.subr.mxu0 0.0
        %1957 = vmatpush1.msra.mxu0 0.0
        %1958 = vmatprep.subr.mxu0 0.0
        %1959 = vmatpush1.msra.mxu0 0.0
        %1960 = vmatprep.subr.mxu0 0.0
        %1961 = vmatpush1.msra.mxu0 0.0
        %1962 = vmatprep.subr.mxu0 0.0
        %1963 = vmatpush1.msra.mxu0 0.0
        %1964 = vmatprep.subr.mxu0 0.0
        %1965 = vmatpush1.msra.mxu0 0.0
        %1966 = vmatprep.subr.mxu0 0.0
        %1967 = vmatpush1.msra.mxu0 0.0
        %1968 = vmatprep.subr.mxu0 0.0
        %1969 = vmatpush1.msra.mxu0 0.0
        %1970 = vmatprep.subr.mxu0 0.0
        %1971 = vmatpush1.msra.mxu0 0.0
        %1972 = vmatprep.mubr.f32.mxu0 0.0
        %1973 = vmatmul.mubr.f32.gmra.mrb[0].mxu0 %v1906
        %v1974 = vpop.f32.mrb[0].mxu0
        %v1975 = vadd.f32 0.0, %v1974
        %v1976 = vpop.f32.mrb[0].mxu0
        %1977 = vdwg.mxu0
        %1978 = vmatprep.subr.mxu0 0.0
        %1979 = vmatpush1.msra.mxu0 %v1975
        %1980 = vmatprep.subr.mxu0 0.0
        %1981 = vmatpush1.msra.mxu0 0.0
        %1982 = vmatprep.subr.mxu0 0.0
        %1983 = vmatpush1.msra.mxu0 0.0
        %1984 = vmatprep.subr.mxu0 0.0
        %1985 = vmatpush1.msra.mxu0 0.0
        %1986 = vmatprep.subr.mxu0 0.0
        %1987 = vmatpush1.msra.mxu0 0.0
        %1988 = vmatprep.subr.mxu0 0.0
        %1989 = vmatpush1.msra.mxu0 0.0
        %1990 = vmatprep.subr.mxu0 0.0
        %1991 = vmatpush1.msra.mxu0 0.0
        %1992 = vmatprep.subr.mxu0 0.0
        %1993 = vmatpush1.msra.mxu0 0.0
        %1994 = vmatprep.subr.mxu0 0.0
        %1995 = vmatpush1.msra.mxu0 0.0
        %1996 = vmatprep.subr.mxu0 0.0
        %1997 = vmatpush1.msra.mxu0 0.0
        %1998 = vmatprep.subr.mxu0 0.0
        %1999 = vmatpush1.msra.mxu0 0.0
        %2000 = vmatprep.subr.mxu0 0.0
        %2001 = vmatpush1.msra.mxu0 0.0
        %2002 = vmatprep.subr.mxu0 0.0
        %2003 = vmatpush1.msra.mxu0 0.0
        %2004 = vmatprep.subr.mxu0 0.0
        %2005 = vmatpush1.msra.mxu0 0.0
        %2006 = vmatprep.subr.mxu0 0.0
        %2007 = vmatpush1.msra.mxu0 0.0
        %2008 = vmatprep.subr.mxu0 0.0
        %2009 = vmatpush1.msra.mxu0 0.0
        %2010 = vmatprep.subr.mxu0 0.0
        %2011 = vmatpush1.msra.mxu0 0.0
        %2012 = vmatprep.subr.mxu0 0.0
        %2013 = vmatpush1.msra.mxu0 0.0
        %2014 = vmatprep.subr.mxu0 0.0
        %2015 = vmatpush1.msra.mxu0 0.0
        %2016 = vmatprep.subr.mxu0 0.0
        %2017 = vmatpush1.msra.mxu0 0.0
        %2018 = vmatprep.subr.mxu0 0.0
        %2019 = vmatpush1.msra.mxu0 0.0
        %2020 = vmatprep.subr.mxu0 0.0
        %2021 = vmatpush1.msra.mxu0 0.0
        %2022 = vmatprep.subr.mxu0 0.0
        %2023 = vmatpush1.msra.mxu0 0.0
        %2024 = vmatprep.subr.mxu0 0.0
        %2025 = vmatpush1.msra.mxu0 0.0
        %2026 = vmatprep.subr.mxu0 0.0
        %2027 = vmatpush1.msra.mxu0 0.0
        %2028 = vmatprep.subr.mxu0 0.0
        %2029 = vmatpush1.msra.mxu0 0.0
        %2030 = vmatprep.subr.mxu0 0.0
        %2031 = vmatpush1.msra.mxu0 0.0
        %2032 = vmatprep.subr.mxu0 0.0
        %2033 = vmatpush1.msra.mxu0 0.0
        %2034 = vmatprep.subr.mxu0 0.0
        %2035 = vmatpush1.msra.mxu0 0.0
        %2036 = vmatprep.subr.mxu0 0.0
        %2037 = vmatpush1.msra.mxu0 0.0
        %2038 = vmatprep.subr.mxu0 0.0
        %2039 = vmatpush1.msra.mxu0 0.0
        %2040 = vmatprep.subr.mxu0 0.0
        %2041 = vmatpush1.msra.mxu0 0.0
        %2042 = vmatprep.mubr.f32.mxu0 0.0
        %2043 = vmatmul.mubr.f32.gmra.mrb[0].mxu0 %v1129
        %v2044 = vpop.f32.mrb[0].mxu0
        %v2045 = vadd.f32 0.0, %v2044
        %v2046 = vpop.f32.mrb[0].mxu0
        %2047 = vmatprep.mubr.f32.mxu0 0.0
        %2048 = vmatmul.mubr.f32.gmra.mrb[0].mxu0 %v1132
        %v2049 = vpop.f32.mrb[0].mxu0
        %v2050 = vadd.f32 0.0, %v2049
        %v2051 = vpop.f32.mrb[0].mxu0
        %2052 = vdwg.mxu0
        %v2053 = vadd.f32 %v1598, %v2045
        %v2054 = vadd.f32 %v1599, %v2050
        %2055 = vmatprep.subr.mxu0 0.0
        %2056 = vmatpush1.msra.mxu0 %v1670
        %2057 = vmatprep.subr.mxu0 0.0
        %2058 = vmatpush1.msra.mxu0 %v1675
        %2059 = vmatprep.subr.mxu0 0.0
        %2060 = vmatpush1.msra.mxu0 0.0
        %2061 = vmatprep.subr.mxu0 0.0
        %2062 = vmatpush1.msra.mxu0 0.0
        %2063 = vmatprep.subr.mxu0 0.0
        %2064 = vmatpush1.msra.mxu0 0.0
        %2065 = vmatprep.subr.mxu0 0.0
        %2066 = vmatpush1.msra.mxu0 0.0
        %2067 = vmatprep.subr.mxu0 0.0
        %2068 = vmatpush1.msra.mxu0 0.0
        %2069 = vmatprep.subr.mxu0 0.0
        %2070 = vmatpush1.msra.mxu0 0.0
        %2071 = vmatprep.subr.mxu0 0.0
        %2072 = vmatpush1.msra.mxu0 0.0
        %2073 = vmatprep.subr.mxu0 0.0
        %2074 = vmatpush1.msra.mxu0 0.0
        %2075 = vmatprep.subr.mxu0 0.0
        %2076 = vmatpush1.msra.mxu0 0.0
        %2077 = vmatprep.subr.mxu0 0.0
        %2078 = vmatpush1.msra.mxu0 0.0
        %2079 = vmatprep.subr.mxu0 0.0
        %2080 = vmatpush1.msra.mxu0 0.0
        %2081 = vmatprep.subr.mxu0 0.0
        %2082 = vmatpush1.msra.mxu0 0.0
        %2083 = vmatprep.subr.mxu0 0.0
        %2084 = vmatpush1.msra.mxu0 0.0
        %2085 = vmatprep.subr.mxu0 0.0
        %2086 = vmatpush1.msra.mxu0 0.0
        %2087 = vmatprep.subr.mxu0 0.0
        %2088 = vmatpush1.msra.mxu0 0.0
        %2089 = vmatprep.subr.mxu0 0.0
        %2090 = vmatpush1.msra.mxu0 0.0
        %2091 = vmatprep.subr.mxu0 0.0
        %2092 = vmatpush1.msra.mxu0 0.0
        %2093 = vmatprep.subr.mxu0 0.0
        %2094 = vmatpush1.msra.mxu0 0.0
        %2095 = vmatprep.subr.mxu0 0.0
        %2096 = vmatpush1.msra.mxu0 0.0
        %2097 = vmatprep.subr.mxu0 0.0
        %2098 = vmatpush1.msra.mxu0 0.0
        %2099 = vmatprep.subr.mxu0 0.0
        %2100 = vmatpush1.msra.mxu0 0.0
        %2101 = vmatprep.subr.mxu0 0.0
        %2102 = vmatpush1.msra.mxu0 0.0
        %2103 = vmatprep.subr.mxu0 0.0
        %2104 = vmatpush1.msra.mxu0 0.0
        %2105 = vmatprep.subr.mxu0 0.0
        %2106 = vmatpush1.msra.mxu0 0.0
        %2107 = vmatprep.subr.mxu0 0.0
        %2108 = vmatpush1.msra.mxu0 0.0
        %2109 = vmatprep.subr.mxu0 0.0
        %2110 = vmatpush1.msra.mxu0 0.0
        %2111 = vmatprep.subr.mxu0 0.0
        %2112 = vmatpush1.msra.mxu0 0.0
        %2113 = vmatprep.subr.mxu0 0.0
        %2114 = vmatpush1.msra.mxu0 0.0
        %2115 = vmatprep.subr.mxu0 0.0
        %2116 = vmatpush1.msra.mxu0 0.0
        %2117 = vmatprep.subr.mxu0 0.0
        %2118 = vmatpush1.msra.mxu0 0.0
        %2119 = vmatprep.mubr.f32.mxu0 0.0
        %2120 = vmatmul.mubr.f32.gmra.mrb[0].mxu0 %v1214
        %v2121 = vpop.f32.mrb[0].mxu0
        %v2122 = vadd.f32 0.0, %v2121
        %v2123 = vpop.f32.mrb[0].mxu0
        %2124 = vdwg.mxu0
        %s2125 = sadd.s32 %s441, 75
        %s2126 = sld [smem:[#allocation15 + %s2125]]
        %s2127 = sadd.s32 %s441, 76
        %s2128 = sld [smem:[#allocation15 + %s2127]]
        %s2129 = sadd.s32 %s441, 77
        %s2130 = sld [smem:[#allocation15 + %s2129]]
        %s2131 = sadd.s32 %s441, 78
        %s2132 = sld [smem:[#allocation15 + %s2131]]
        %s2133 = sadd.s32 %s441, 79
        %s2134 = sld [smem:[#allocation15 + %s2133]]
        %s2135 = sadd.s32 %s441, 80
        %s2136 = sld [smem:[#allocation15 + %s2135]]
        %s2137 = sadd.s32 %s441, 81
        %s2138 = sld [smem:[#allocation15 + %s2137]]
        %s2139 = sadd.s32 %s441, 82
        %s2140 = sld [smem:[#allocation15 + %s2139]]
        %s2141 = sadd.s32 %s441, 83
        %s2142 = sld [smem:[#allocation15 + %s2141]]
        %s2143 = sadd.s32 %s441, 84
        %s2144 = sld [smem:[#allocation15 + %s2143]]
        %s2145 = sadd.s32 %s441, 85
        %s2146 = sld [smem:[#allocation15 + %s2145]]
        %s2147 = sadd.s32 %s441, 86
        %s2148 = sld [smem:[#allocation15 + %s2147]]
        %s2149 = sadd.s32 %s441, 87
        %s2150 = sld [smem:[#allocation15 + %s2149]]
        %s2151 = sadd.s32 %s441, 88
        %s2152 = sld [smem:[#allocation15 + %s2151]]
        %s2153 = sadd.s32 %s441, 89
        %s2154 = sld [smem:[#allocation15 + %s2153]]
        %s2155 = sadd.s32 %s441, 90
        %s2156 = sld [smem:[#allocation15 + %s2155]]
        %s2157 = sadd.s32 %s441, 91
        %s2158 = sld [smem:[#allocation15 + %s2157]]
        %s2159 = sadd.s32 %s441, 92
        %s2160 = sld [smem:[#allocation15 + %s2159]]
        %s2161 = sadd.s32 %s441, 93
        %s2162 = sld [smem:[#allocation15 + %s2161]]
        %s2163 = sadd.s32 %s441, 94
        %s2164 = sld [smem:[#allocation15 + %s2163]]
        %s2165 = sadd.s32 %s441, 95
        %s2166 = sld [smem:[#allocation15 + %s2165]]
        %s2167 = sadd.s32 %s441, 96
        %s2168 = sld [smem:[#allocation15 + %s2167]]
        %s2169 = sadd.s32 %s441, 97
        %s2170 = sld [smem:[#allocation15 + %s2169]]
        %s2171 = sadd.s32 %s441, 98
        %s2172 = sld [smem:[#allocation15 + %s2171]]
        %s2173 = sadd.s32 %s441, 99
        %s2174 = sld [smem:[#allocation15 + %s2173]]
        %2175 = vrot.lane.b32.xlu0 %v2122, 8
        %v2176 = vpop.permute.xlu0 %2175
        %v2177 = vsel %vm929, %v2176, %v2122
        %2178 = vrot.lane.b32.xlu0 %v2177, 8
        %v2179 = vpop.permute.xlu0 %2178
        %v2180 = vsel %vm929, %v2179, %v2122
        %2182 = vrot.lane.b32.xlu0 %v2180, 122
        %v2183 = vpop.permute.xlu0 %2182
        %v2185 = vsel %vm937, %v2183, 0.0
        %2186 = vrot.lane.b32.xlu0 %v2180, 121
        %v2187 = vpop.permute.xlu0 %2186
        %v2189 = vsel %vm944, %v2187, 0.0
        %2190 = vrot.lane.b32.xlu0 %v2180, 127
        %v2191 = vpop.permute.xlu0 %2190
        %v2193 = vsel %vm950, %v2191, 0.0
        %2194 = vrot.lane.b32.xlu0 %v2180, 126
        %v2195 = vpop.permute.xlu0 %2194
        %v2197 = vsel %vm956, %v2195, 0.0
        %v2198 = vstv %s2126
        %v2199 = vmul.f32 %v2185, %v2198
        %v2200 = vstv %s2128
        %v2201 = vmul.f32 %v2189, %v2200
        %v2202 = vadd.f32 %v2199, %v2201
        %v2203 = vstv %s2130
        %v2204 = vmul.f32 %v2122, %v2203
        %v2205 = vadd.f32 %v2202, %v2204
        %v2206 = vstv %s2132
        %v2207 = vmul.f32 %v2193, %v2206
        %v2208 = vadd.f32 %v2205, %v2207
        %v2209 = vstv %s2134
        %v2210 = vmul.f32 %v2197, %v2209
        %v2211 = vadd.f32 %v2208, %v2210
        %v2212 = vrot.slane %v2211, 6
        %v2213 = vsel %vm977, %v2212, 0.0
        %v2214 = vstv %s2136
        %v2215 = vmul.f32 %v2185, %v2214
        %v2216 = vstv %s2138
        %v2217 = vmul.f32 %v2189, %v2216
        %v2218 = vadd.f32 %v2215, %v2217
        %v2219 = vstv %s2140
        %v2220 = vmul.f32 %v2122, %v2219
        %v2221 = vadd.f32 %v2218, %v2220
        %v2222 = vstv %s2142
        %v2223 = vmul.f32 %v2193, %v2222
        %v2224 = vadd.f32 %v2221, %v2223
        %v2225 = vstv %s2144
        %v2226 = vmul.f32 %v2197, %v2225
        %v2227 = vadd.f32 %v2224, %v2226
        %v2228 = vrot.slane %v2227, 7
        %v2229 = vsel %vm995, %v2228, 0.0
        %v2230 = vadd.f32 %v2213, %v2229
        %v2231 = vstv %s2146
        %v2232 = vmul.f32 %v2185, %v2231
        %v2233 = vstv %s2148
        %v2234 = vmul.f32 %v2189, %v2233
        %v2235 = vadd.f32 %v2232, %v2234
        %v2236 = vstv %s2150
        %v2237 = vmul.f32 %v2122, %v2236
        %v2238 = vadd.f32 %v2235, %v2237
        %v2239 = vstv %s2152
        %v2240 = vmul.f32 %v2193, %v2239
        %v2241 = vadd.f32 %v2238, %v2240
        %v2242 = vstv %s2154
        %v2243 = vmul.f32 %v2197, %v2242
        %v2244 = vadd.f32 %v2241, %v2243
        %v2245 = vadd.f32 %v2230, %v2244
        %v2246 = vstv %s2156
        %v2247 = vmul.f32 %v2185, %v2246
        %v2248 = vstv %s2158
        %v2249 = vmul.f32 %v2189, %v2248
        %v2250 = vadd.f32 %v2247, %v2249
        %v2251 = vstv %s2160
        %v2252 = vmul.f32 %v2122, %v2251
        %v2253 = vadd.f32 %v2250, %v2252
        %v2254 = vstv %s2162
        %v2255 = vmul.f32 %v2193, %v2254
        %v2256 = vadd.f32 %v2253, %v2255
        %v2257 = vstv %s2164
        %v2258 = vmul.f32 %v2197, %v2257
        %v2259 = vadd.f32 %v2256, %v2258
        %v2260 = vrot.slane %v2259, 1
        %v2261 = vsel %vm1029, %v2260, 0.0
        %v2262 = vadd.f32 %v2245, %v2261
        %v2263 = vstv %s2166
        %v2264 = vmul.f32 %v2185, %v2263
        %v2265 = vstv %s2168
        %v2266 = vmul.f32 %v2189, %v2265
        %v2267 = vadd.f32 %v2264, %v2266
        %v2268 = vstv %s2170
        %v2269 = vmul.f32 %v2122, %v2268
        %v2270 = vadd.f32 %v2267, %v2269
        %v2271 = vstv %s2172
        %v2272 = vmul.f32 %v2193, %v2271
        %v2273 = vadd.f32 %v2270, %v2272
        %v2274 = vstv %s2174
        %v2275 = vmul.f32 %v2197, %v2274
        %v2276 = vadd.f32 %v2273, %v2275
        %v2277 = vrot.slane %v2276, 2
        %v2278 = vsel %vm1048, %v2277, 0.0
        %v2279 = vadd.f32 %v2262, %v2278
        %v2281 = vsel %vm1054, %v2279, 0
        %2283 = vmatprep.subr.mxu0 0.0
        %2284 = vmatpush1.msra.mxu0 %v1904
        %2285 = vmatprep.subr.mxu0 0.0
        %2286 = vmatpush1.msra.mxu0 0.0
        %2287 = vmatprep.subr.mxu0 0.0
        %2288 = vmatpush1.msra.mxu0 0.0
        %2289 = vmatprep.subr.mxu0 0.0
        %2290 = vmatpush1.msra.mxu0 0.0
        %2291 = vmatprep.subr.mxu0 0.0
        %2292 = vmatpush1.msra.mxu0 0.0
        %2293 = vmatprep.subr.mxu0 0.0
        %2294 = vmatpush1.msra.mxu0 0.0
        %2295 = vmatprep.subr.mxu0 0.0
        %2296 = vmatpush1.msra.mxu0 0.0
        %2297 = vmatprep.subr.mxu0 0.0
        %2298 = vmatpush1.msra.mxu0 0.0
        %2299 = vmatprep.subr.mxu0 0.0
        %2300 = vmatpush1.msra.mxu0 0.0
        %2301 = vmatprep.subr.mxu0 0.0
        %2302 = vmatpush1.msra.mxu0 0.0
        %2303 = vmatprep.subr.mxu0 0.0
        %2304 = vmatpush1.msra.mxu0 0.0
        %2305 = vmatprep.subr.mxu0 0.0
        %2306 = vmatpush1.msra.mxu0 0.0
        %2307 = vmatprep.subr.mxu0 0.0
        %2308 = vmatpush1.msra.mxu0 0.0
        %2309 = vmatprep.subr.mxu0 0.0
        %2310 = vmatpush1.msra.mxu0 0.0
        %2311 = vmatprep.subr.mxu0 0.0
        %2312 = vmatpush1.msra.mxu0 0.0
        %2313 = vmatprep.subr.mxu0 0.0
        %2314 = vmatpush1.msra.mxu0 0.0
        %2315 = vmatprep.subr.mxu0 0.0
        %2316 = vmatpush1.msra.mxu0 0.0
        %2317 = vmatprep.subr.mxu0 0.0
        %2318 = vmatpush1.msra.mxu0 0.0
        %2319 = vmatprep.subr.mxu0 0.0
        %2320 = vmatpush1.msra.mxu0 0.0
        %2321 = vmatprep.subr.mxu0 0.0
        %2322 = vmatpush1.msra.mxu0 0.0
        %2323 = vmatprep.subr.mxu0 0.0
        %2324 = vmatpush1.msra.mxu0 0.0
        %2325 = vmatprep.subr.mxu0 0.0
        %2326 = vmatpush1.msra.mxu0 0.0
        %2327 = vmatprep.subr.mxu0 0.0
        %2328 = vmatpush1.msra.mxu0 0.0
        %2329 = vmatprep.subr.mxu0 0.0
        %2330 = vmatpush1.msra.mxu0 0.0
        %2331 = vmatprep.subr.mxu0 0.0
        %2332 = vmatpush1.msra.mxu0 0.0
        %2333 = vmatprep.subr.mxu0 0.0
        %2334 = vmatpush1.msra.mxu0 0.0
        %2335 = vmatprep.subr.mxu0 0.0
        %2336 = vmatpush1.msra.mxu0 0.0
        %2337 = vmatprep.subr.mxu0 0.0
        %2338 = vmatpush1.msra.mxu0 0.0
        %2339 = vmatprep.subr.mxu0 0.0
        %2340 = vmatpush1.msra.mxu0 0.0
        %2341 = vmatprep.subr.mxu0 0.0
        %2342 = vmatpush1.msra.mxu0 0.0
        %2343 = vmatprep.subr.mxu0 0.0
        %2344 = vmatpush1.msra.mxu0 0.0
        %2345 = vmatprep.subr.mxu0 0.0
        %2346 = vmatpush1.msra.mxu0 0.0
        %2347 = vmatprep.mubr.f32.mxu0 0.0
        %2348 = vmatmul.mubr.f32.gmra.mrb[0].mxu0 %v2281
        %v2349 = vpop.f32.mrb[0].mxu0
        %v2350 = vadd.f32 0.0, %v2349
        %v2351 = vpop.f32.mrb[0].mxu0
        %2352 = vdwg.mxu0
        %2353 = vmatprep.subr.mxu0 0.0
        %2354 = vmatpush1.msra.mxu0 %v2350
        %2355 = vmatprep.subr.mxu0 0.0
        %2356 = vmatpush1.msra.mxu0 0.0
        %2357 = vmatprep.subr.mxu0 0.0
        %2358 = vmatpush1.msra.mxu0 0.0
        %2359 = vmatprep.subr.mxu0 0.0
        %2360 = vmatpush1.msra.mxu0 0.0
        %2361 = vmatprep.subr.mxu0 0.0
        %2362 = vmatpush1.msra.mxu0 0.0
        %2363 = vmatprep.subr.mxu0 0.0
        %2364 = vmatpush1.msra.mxu0 0.0
        %2365 = vmatprep.subr.mxu0 0.0
        %2366 = vmatpush1.msra.mxu0 0.0
        %2367 = vmatprep.subr.mxu0 0.0
        %2368 = vmatpush1.msra.mxu0 0.0
        %2369 = vmatprep.subr.mxu0 0.0
        %2370 = vmatpush1.msra.mxu0 0.0
        %2371 = vmatprep.subr.mxu0 0.0
        %2372 = vmatpush1.msra.mxu0 0.0
        %2373 = vmatprep.subr.mxu0 0.0
        %2374 = vmatpush1.msra.mxu0 0.0
        %2375 = vmatprep.subr.mxu0 0.0
        %2376 = vmatpush1.msra.mxu0 0.0
        %2377 = vmatprep.subr.mxu0 0.0
        %2378 = vmatpush1.msra.mxu0 0.0
        %2379 = vmatprep.subr.mxu0 0.0
        %2380 = vmatpush1.msra.mxu0 0.0
        %2381 = vmatprep.subr.mxu0 0.0
        %2382 = vmatpush1.msra.mxu0 0.0
        %2383 = vmatprep.subr.mxu0 0.0
        %2384 = vmatpush1.msra.mxu0 0.0
        %2385 = vmatprep.subr.mxu0 0.0
        %2386 = vmatpush1.msra.mxu0 0.0
        %2387 = vmatprep.subr.mxu0 0.0
        %2388 = vmatpush1.msra.mxu0 0.0
        %2389 = vmatprep.subr.mxu0 0.0
        %2390 = vmatpush1.msra.mxu0 0.0
        %2391 = vmatprep.subr.mxu0 0.0
        %2392 = vmatpush1.msra.mxu0 0.0
        %2393 = vmatprep.subr.mxu0 0.0
        %2394 = vmatpush1.msra.mxu0 0.0
        %2395 = vmatprep.subr.mxu0 0.0
        %2396 = vmatpush1.msra.mxu0 0.0
        %2397 = vmatprep.subr.mxu0 0.0
        %2398 = vmatpush1.msra.mxu0 0.0
        %2399 = vmatprep.subr.mxu0 0.0
        %2400 = vmatpush1.msra.mxu0 0.0
        %2401 = vmatprep.subr.mxu0 0.0
        %2402 = vmatpush1.msra.mxu0 0.0
        %2403 = vmatprep.subr.mxu0 0.0
        %2404 = vmatpush1.msra.mxu0 0.0
        %2405 = vmatprep.subr.mxu0 0.0
        %2406 = vmatpush1.msra.mxu0 0.0
        %2407 = vmatprep.subr.mxu0 0.0
        %2408 = vmatpush1.msra.mxu0 0.0
        %2409 = vmatprep.subr.mxu0 0.0
        %2410 = vmatpush1.msra.mxu0 0.0
        %2411 = vmatprep.subr.mxu0 0.0
        %2412 = vmatpush1.msra.mxu0 0.0
        %2413 = vmatprep.subr.mxu0 0.0
        %2414 = vmatpush1.msra.mxu0 0.0
        %2415 = vmatprep.subr.mxu0 0.0
        %2416 = vmatpush1.msra.mxu0 0.0
        %2417 = vmatprep.mubr.f32.mxu0 0.0
        %2418 = vmatmul.mubr.f32.gmra.mrb[0].mxu0 %v1518
        %v2419 = vpop.f32.mrb[0].mxu0
        %v2420 = vadd.f32 0.0, %v2419
        %v2421 = vpop.f32.mrb[0].mxu0
        %2422 = vmatprep.mubr.f32.mxu0 0.0
        %2423 = vmatmul.mubr.f32.gmra.mrb[0].mxu0 %v1521
        %v2424 = vpop.f32.mrb[0].mxu0
        %v2425 = vadd.f32 0.0, %v2424
        %v2426 = vpop.f32.mrb[0].mxu0
        %2427 = vdwg.mxu0
        %v2428 = vadd.f32 %v2053, %v2420
        %v2429 = vadd.f32 %v2054, %v2425
        %2430 = vst.msk [vmem:[%s438] sm:$0xff] %vm749, %v2428
        %2431 = vst.msk [vmem:[%s438 + $0x8] sm:$0xff] %vm749, %v2429
        %s2432 = sand.u32 %s226, 1
        %s2433 = scalar_lea.sflag [#allocation4], %s2432
        %s2434 = sand.u32 %s226, 1
        %s2435 = smul.addr %s2434, 16
        %s2436 = scalar_lea.vmem [#allocation16], %s2435
        // Predicated region
        $region85: #{_lambda_.1} parent=51 // pred_check
          %p2437 = pneg %p236
        $region86: #{_lambda_.1} parent=51 // pred_check_branch
          %2439 = sbr.rel (%p2437) target = $region88
        $region87: #{_lambda_.1} parent=51 // pred_region
          %s2441 = ssub.s32 256, 256
          %2442 = vsyncadd %s2433, %s2441
          %s2443 = smul.addr %s34, 2
          %s2444 = smul.addr %s33, 8
          %s2445 = sadd.s32 %s2443, %s2444
          %s2446 = smul.addr %s2445, 128
          %s2447 = scalar_lea.hbm %s8, %s2446
          %s2448 = sshll.u32 %s2436, 4
          %s2449 = int_to_ptr.vmem [resolvable:$true] %s2448
          %2454 = dma.vmem_to_hbm [thread:$0]  %s2449, 256, %s2447, %s2433, 128, 128, 8
        $region88: #{_lambda_.1} parent=51 // pred_fallthru
          _
      $region52: #{_lambda_.1} parent=5 // pred_fallthru
        _
      %p2455 = scmp.le.s32.totalorder 2, %s24
      // Predicated region
      $region89: #{_lambda_.1} parent=5 // pred_check
        %p2456 = pneg %p2455
      $region90: #{_lambda_.1} parent=5 // pred_check_branch
        %2458 = sbr.rel (%p2456) target = $region92
      $region91: #{_lambda_.1} parent=5 // pred_region
        %s2459 = ssub.s32 %s24, 2
        // Predicated region
        $region93: #{_lambda_.1} parent=91 // pred_check
          %p2460 = pneg %p242
        $region94: #{_lambda_.1} parent=91 // pred_check_branch
          %2462 = sbr.rel (%p2460) target = $region96
        $region95: #{_lambda_.1} parent=91 // pred_region
          %s2463 = sand.u32 %s227, 1
          %s2464 = scalar_lea.sflag [#allocation4], %s2463
          %s2465 = sand.u32 %s227, 1
          %s2466 = smul.addr %s2465, 16
          %s2467 = scalar_lea.vmem [#allocation16], %s2466
          %2468 = dma.done %s2464, 256
        $region96: #{_lambda_.1} parent=91 // pred_fallthru
          _
      $region92: #{_lambda_.1} parent=5 // pred_fallthru
        _
    $region6: #{_lambda_.1} parent=1 // loop_footer
      %s28 = sadd.s32 1, %s24
    $region7: #{_lambda_.1} parent=1 // loop_footer_branch
      %23 = sbr.rel target = $region3
    $region8: #{_lambda_.1} parent=1 // loop_exit
      _
    %2469 = vsyncpa [#allocation3], 1
    %s2470 = scalar_lea.sflag [#allocation3], 1
    %2471 = vsyncpa %s2470, 1
    %2472 = vsyncpa [#allocation7], 1
    %2473 = vsyncpa [#allocation10], 1
    %2474 = vsyncpa [#allocation4], 1
    %s2475 = scalar_lea.sflag [#allocation4], 1
    %2476 = vsyncpa %s2475, 1
    %2477 = vsyncpa [#allocation5], 1
    %s2478 = scalar_lea.sflag [#allocation5], 1
    %2479 = vsyncpa %s2478, 1
    %2480 = vsyncpa [#allocation14], 1

</llo_original>
